<compile_context>
chip_gen: v7x
topology: tpu7x:2x2x1
jax: 0.10.0
libtpu: 0.0.40
codegen_flags: <defaults>
</compile_context>

<pallas_src>
import jax
import jax.numpy as jnp
from jax import lax
from jax.experimental import pallas as pl
from jax.experimental.pallas import tpu as pltpu

# ---- module hyper-parameters (from the PyTorch __init__) --------------------
WINDOW_SIZE = (3, 3)
DIM = 64
NUM_HEADS = 2
HEAD_DIM = DIM // NUM_HEADS
N_TOKENS = WINDOW_SIZE[0] * WINDOW_SIZE[1]          # Wh*Ww = 9
SCALE = HEAD_DIM ** (-0.5)                          # qk_scale = head_dim ** -0.5

GROUP = 8                                           # windows per attention tile
GROUP_ROWS = GROUP * N_TOKENS                       # 72 rows (9 sublane tiles)


def _round_up(a, m):
    return ((a + m - 1) // m) * m


# ---------------------------------------------------------------------------
# Pallas kernel: one grid step == `block_windows` windows (dense 2-D slab)
# ---------------------------------------------------------------------------
def window_attention_kernel(x_ref, wq_ref, wk_ref, wv_ref,
                            bq_ref, bk_ref, bv_ref, bias_ref,
                            wproj_ref, bproj_ref, o_ref):
    """Shapes inside the kernel:
       x_ref / o_ref : (block_windows*9, 64)
       wq/wk/wv      : (H, 64, 32)   (scale folded into wq)
       bq/bk/bv      : (H, 1, 32)    f32
       bias_ref      : (H, 72, 72)   block-diag rel-pos bias + off-window mask
       wproj_ref     : (H, 32, 64)   per-head slice of output projection
       bproj_ref     : (1, 64)       f32
    """
    f32 = jnp.float32
    num_groups = x_ref.shape[0] // GROUP_ROWS

    for g in range(num_groups):                       # static unroll: 8-window groups
        r0 = g * GROUP_ROWS
        xg = x_ref[pl.ds(r0, GROUP_ROWS), :]          # (72, 64)

        out_g = jnp.zeros((GROUP_ROWS, DIM), f32)
        for h in range(NUM_HEADS):                    # static unroll over heads
            qg = jnp.dot(xg, wq_ref[h], preferred_element_type=f32) + bq_ref[h]
            kg = jnp.dot(xg, wk_ref[h], preferred_element_type=f32) + bk_ref[h]
            vg = jnp.dot(xg, wv_ref[h], preferred_element_type=f32) + bv_ref[h]

            # scores: contract head_dim directly (no explicit k transpose)
            s = lax.dot_general(qg, kg, (((1,), (1,)), ((), ())),
                                preferred_element_type=f32)            # (72, 72)
            s = s + bias_ref[h]                        # rel-pos bias + block-diag mask

            # softmax(dim=-1), stabilized; reciprocal on the EUP
            m = jnp.max(s, axis=-1, keepdims=True)
            e = jnp.exp(s - m)
            denom = jnp.sum(e, axis=-1, keepdims=True)
            p = e * pl.reciprocal(denom, approx=True)
            # attn_drop is 0.0 -> identity

            og = jnp.dot(p, vg, preferred_element_type=f32)            # (72, 32)
            # per-head output projection, accumulated (no lane concat)
            out_g = out_g + jnp.dot(og.astype(wproj_ref.dtype), wproj_ref[h],
                                    preferred_element_type=f32)

        out_g = out_g + bproj_ref[...]
        # proj_drop is 0.0 -> identity
        o_ref[pl.ds(r0, GROUP_ROWS), :] = out_g.astype(o_ref.dtype)


# ---------------------------------------------------------------------------
# Wrapper
# ---------------------------------------------------------------------------
def window_attention(x, params, *, block_windows=256,
                     compute_dtype=jnp.float32, mask=None):
    """x: (B_, N, C) = (num_windows*B, Wh*Ww, dim).  Returns (B_, N, C)."""
    # TODO(synk): optional attention-mask path (mask is not None) not implemented.
    assert mask is None
    wq, wk, wv, bq, bk, bv, bias_group, wproj_h, bproj = params
    B_, N, C = x.shape
    assert N == N_TOKENS and C == DIM
    out_dtype = x.dtype

    # block size: multiple of the 8-window group; shrink for tiny inputs
    tb = min(block_windows, _round_up(B_, GROUP))
    tb = _round_up(tb, GROUP)
    padded_B = _round_up(B_, tb)
    num_blocks = padded_B // tb
    rows = tb * N_TOKENS

    xc = x.astype(compute_dtype)
    if padded_B != B_:
        xc = jnp.pad(xc, ((0, padded_B - B_), (0, 0), (0, 0)))
    x2 = xc.reshape(padded_B * N_TOKENS, C)           # lane/sublane-dense 2-D I/O

    wq_c = wq.astype(compute_dtype)
    wk_c = wk.astype(compute_dtype)
    wv_c = wv.astype(compute_dtype)
    wp_c = wproj_h.astype(compute_dtype)

    out2 = pl.pallas_call(
        window_attention_kernel,
        out_shape=jax.ShapeDtypeStruct((padded_B * N_TOKENS, C), out_dtype),
        grid_spec=pltpu.PrefetchScalarGridSpec(
            num_scalar_prefetch=0,
            grid=(num_blocks,),
            in_specs=[
                pl.BlockSpec((rows, C), lambda i: (i, 0)),
                pl.BlockSpec((NUM_HEADS, C, HEAD_DIM), lambda i: (0, 0, 0)),
                pl.BlockSpec((NUM_HEADS, C, HEAD_DIM), lambda i: (0, 0, 0)),
                pl.BlockSpec((NUM_HEADS, C, HEAD_DIM), lambda i: (0, 0, 0)),
                pl.BlockSpec((NUM_HEADS, 1, HEAD_DIM), lambda i: (0, 0, 0)),
                pl.BlockSpec((NUM_HEADS, 1, HEAD_DIM), lambda i: (0, 0, 0)),
                pl.BlockSpec((NUM_HEADS, 1, HEAD_DIM), lambda i: (0, 0, 0)),
                pl.BlockSpec((NUM_HEADS, GROUP_ROWS, GROUP_ROWS),
                             lambda i: (0, 0, 0)),
                pl.BlockSpec((NUM_HEADS, HEAD_DIM, C), lambda i: (0, 0, 0)),
                pl.BlockSpec((1, C), lambda i: (0, 0)),
            ],
            out_specs=pl.BlockSpec((rows, C), lambda i: (i, 0)),
        ),
        compiler_params=pltpu.CompilerParams(
            dimension_semantics=("parallel",)),
    )(x2, wq_c, wk_c, wv_c, bq, bk, bv, bias_group, wp_c, bproj)

    return out2.reshape(padded_B, N_TOKENS, C)[:B_]


# ---------------------------------------------------------------------------
# Parameter setup (deterministic, synthetic) + relative position bias
# ---------------------------------------------------------------------------
def make_params(key):
    k_tab, k_wqkv, k_bqkv, k_wproj, k_bproj = jax.random.split(key, 5)
    num_rel = (2 * WINDOW_SIZE[0] - 1) * (2 * WINDOW_SIZE[1] - 1)   # 25
    table = jnp.clip(0.02 * jax.random.normal(k_tab, (num_rel, NUM_HEADS)),
                     -0.04, 0.04).astype(jnp.float32)
    w_qkv = 0.02 * jax.random.normal(k_wqkv, (3 * DIM, DIM), jnp.float32)
    b_qkv = 0.02 * jax.random.normal(k_bqkv, (3 * DIM,), jnp.float32)
    w_proj = 0.02 * jax.random.normal(k_wproj, (DIM, DIM), jnp.float32)
    b_proj = 0.02 * jax.random.normal(k_bproj, (DIM,), jnp.float32)
    return table, w_qkv, b_qkv, w_proj, b_proj


def relative_position_bias(table):
    """table: ((2Wh-1)*(2Ww-1), H) -> dense (H, N, N) bias."""
    coords_h = jnp.arange(WINDOW_SIZE[0])
    coords_w = jnp.arange(WINDOW_SIZE[1])
    coords = jnp.stack(jnp.meshgrid(coords_h, coords_w, indexing="ij"))
    coords_flatten = coords.reshape(2, -1)
    rel = coords_flatten[:, :, None] - coords_flatten[:, None, :]
    rel = jnp.transpose(rel, (1, 2, 0))
    rel = rel.at[:, :, 0].add(WINDOW_SIZE[0] - 1)
    rel = rel.at[:, :, 1].add(WINDOW_SIZE[1] - 1)
    rel = rel.at[:, :, 0].multiply(2 * WINDOW_SIZE[1] - 1)
    index = rel.sum(-1)
    bias = table[index.reshape(-1)].reshape(N_TOKENS, N_TOKENS, NUM_HEADS)
    return jnp.transpose(bias, (2, 0, 1)).astype(jnp.float32)


def prepare_kernel_params(table, w_qkv, b_qkv, w_proj, b_proj):
    """One-time restructuring of the PyTorch-layout parameters for the kernel."""
    C, H, hd = DIM, NUM_HEADS, HEAD_DIM
    # qkv.weight is (3C, C); output columns of x @ W^T are ordered [3][H][hd]
    w = jnp.transpose(w_qkv).reshape(C, 3, H, hd).transpose(1, 2, 0, 3)   # (3,H,C,hd)
    b = b_qkv.reshape(3, H, 1, hd)
    wq, wk, wv = w[0] * SCALE, w[1], w[2]            # fold qk_scale into Wq
    bq, bk, bv = b[0] * SCALE, b[1], b[2]            # ...and its bias

    wproj_h = jnp.transpose(w_proj).reshape(H, hd, C)  # per-head slice of proj
    bproj = b_proj.reshape(1, C)

    bias = relative_position_bias(table)                                   # (H,N,N)
    eye = jnp.eye(GROUP, dtype=jnp.float32)
    ones = jnp.ones((N_TOKENS, N_TOKENS), jnp.float32)
    diag_mask = jnp.kron(eye, ones)                                        # (72,72)
    bias_group = jnp.stack([jnp.kron(eye, bias[h]) for h in range(H)])     # (H,72,72)
    bias_group = bias_group + (diag_mask - 1.0) * 1e9   # off-window pairs -> -1e9
    return (wq, wk, wv, bq, bk, bv, bias_group, wproj_h, bproj)


def reference_forward(x, w_qkv, b_qkv, rel_bias, w_proj, b_proj):
    """Pure-JAX re-implementation of the PyTorch forward (mask=None)."""
    B_, N, C = x.shape
    qkv = x @ w_qkv.T + b_qkv
    qkv = qkv.reshape(B_, N, 3, NUM_HEADS, HEAD_DIM).transpose(2, 0, 3, 1, 4)
    q, k, v = qkv[0], qkv[1], qkv[2]
    q = q * SCALE
    attn = jnp.einsum("bhnd,bhmd->bhnm", q, k) + rel_bias[None]
    attn = jax.nn.softmax(attn, axis=-1)
    out = jnp.einsum("bhnm,bhmd->bhnd", attn, v)
    out = out.transpose(0, 2, 1, 3).reshape(B_, N, C)
    return out @ w_proj.T + b_proj


if __name__ == "__main__":
    key = jax.random.PRNGKey(0)
    k_params, k_x = jax.random.split(key)

    table, w_qkv, b_qkv, w_proj, b_proj = make_params(k_params)
    params = prepare_kernel_params(table, w_qkv, b_qkv, w_proj, b_proj)

    B_ = 20                                   # num_windows * batch (exercises padding)
    x = jax.random.normal(k_x, (B_, N_TOKENS, DIM), jnp.float32)

    # f32 compute path (v5e-friendly)
    out = window_attention(x, params, block_windows=16)
    out = jax.block_until_ready(out)

    rel_bias = relative_position_bias(table)
    ref = reference_forward(x, w_qkv, b_qkv, rel_bias, w_proj, b_proj)
    assert out.shape == (B_, N_TOKENS, DIM)
    assert jnp.allclose(out, ref, atol=1e-3, rtol=1e-3), (
        "f32 mismatch vs reference, max err "
        f"{float(jnp.max(jnp.abs(out - ref)))}")

    # bf16 MXU path (v6e/v7x recommendation): matmuls in bf16, softmax/acc in f32
    out_bf16 = window_attention(x, params, block_windows=16,
                                compute_dtype=jnp.bfloat16)
    out_bf16 = jax.block_until_ready(out_bf16)
    assert jnp.allclose(out_bf16, ref, atol=1e-2, rtol=1e-2), (
        "bf16 mismatch vs reference, max err "
        f"{float(jnp.max(jnp.abs(out_bf16 - ref)))}")

    print("KERNEL_OK")
</pallas_src>

<mosaic_0001>
module attributes {stable_mosaic.version = 11 : i64} {
  func.func @window_attention_kernel(%arg0: i32, %arg1: memref<144x64xf32, #tpu.memory_space<vmem>>, %arg2: memref<2x64x32xf32, #tpu.memory_space<vmem>>, %arg3: memref<2x64x32xf32, #tpu.memory_space<vmem>>, %arg4: memref<2x64x32xf32, #tpu.memory_space<vmem>>, %arg5: memref<2x1x32xf32, #tpu.memory_space<vmem>>, %arg6: memref<2x1x32xf32, #tpu.memory_space<vmem>>, %arg7: memref<2x1x32xf32, #tpu.memory_space<vmem>>, %arg8: memref<2x72x72xf32, #tpu.memory_space<vmem>>, %arg9: memref<2x32x64xf32, #tpu.memory_space<vmem>>, %arg10: memref<1x64xf32, #tpu.memory_space<vmem>>, %arg11: memref<144x64xf32, #tpu.memory_space<vmem>>) attributes {dimension_semantics = [#tpu.dimension_semantics<parallel>], iteration_bounds = array<i64: 2>, scalar_prefetch = 0 : i64, scratch_operands = 0 : i64, tpu.core_type = #tpu.core_type<tc>, window_params = [{transform_indices = @transform_0, window_bounds = array<i64: 144, 64>}, {pipeline_mode = #tpu.pipeline_mode<synchronous>, transform_indices = @transform_1, window_bounds = array<i64: 2, 64, 32>}, {pipeline_mode = #tpu.pipeline_mode<synchronous>, transform_indices = @transform_2, window_bounds = array<i64: 2, 64, 32>}, {pipeline_mode = #tpu.pipeline_mode<synchronous>, transform_indices = @transform_3, window_bounds = array<i64: 2, 64, 32>}, {pipeline_mode = #tpu.pipeline_mode<synchronous>, transform_indices = @transform_4, window_bounds = array<i64: 2, 1, 32>}, {pipeline_mode = #tpu.pipeline_mode<synchronous>, transform_indices = @transform_5, window_bounds = array<i64: 2, 1, 32>}, {pipeline_mode = #tpu.pipeline_mode<synchronous>, transform_indices = @transform_6, window_bounds = array<i64: 2, 1, 32>}, {pipeline_mode = #tpu.pipeline_mode<synchronous>, transform_indices = @transform_7, window_bounds = array<i64: 2, 72, 72>}, {pipeline_mode = #tpu.pipeline_mode<synchronous>, transform_indices = @transform_8, window_bounds = array<i64: 2, 32, 64>}, {pipeline_mode = #tpu.pipeline_mode<synchronous>, transform_indices = @transform_9, window_bounds = array<i64: 1, 64>}, {transform_indices = @transform_10, window_bounds = array<i64: 144, 64>}]} {
    %c0 = arith.constant 0 : index
    %c0_0 = arith.constant 0 : index
    %0 = vector.load %arg1[%c0, %c0_0] : memref<144x64xf32, #tpu.memory_space<vmem>>, vector<72x64xf32>
    %cst = arith.constant 0.000000e+00 : f32
    %1 = vector.broadcast %cst : f32 to vector<72x64xf32>
    %c0_1 = arith.constant 0 : index
    %c0_2 = arith.constant 0 : index
    %c0_3 = arith.constant 0 : index
    %2 = vector.load %arg2[%c0_1, %c0_2, %c0_3] : memref<2x64x32xf32, #tpu.memory_space<vmem>>, vector<1x64x32xf32>
    %3 = vector.shape_cast %2 : vector<1x64x32xf32> to vector<64x32xf32>
    %cst_4 = arith.constant dense<0.000000e+00> : vector<72x32xf32>
    %4 = tpu.matmul %0, %3, %cst_4 {dimension_numbers = #tpu.dot_dimension_numbers<[1], [0], [0], [1], [0, 0, 1, 1], [], []>} : vector<72x64xf32>, vector<64x32xf32>, vector<72x32xf32> -> vector<72x32xf32>
    %c0_5 = arith.constant 0 : index
    %c0_6 = arith.constant 0 : index
    %c0_7 = arith.constant 0 : index
    %5 = vector.load %arg5[%c0_5, %c0_6, %c0_7] : memref<2x1x32xf32, #tpu.memory_space<vmem>>, vector<1x1x32xf32>
    %6 = vector.shape_cast %5 : vector<1x1x32xf32> to vector<1x32xf32>
    %7 = vector.broadcast %6 : vector<1x32xf32> to vector<72x32xf32>
    %8 = arith.addf %4, %7 : vector<72x32xf32>
    %c0_8 = arith.constant 0 : index
    %c0_9 = arith.constant 0 : index
    %c0_10 = arith.constant 0 : index
    %9 = vector.load %arg3[%c0_8, %c0_9, %c0_10] : memref<2x64x32xf32, #tpu.memory_space<vmem>>, vector<1x64x32xf32>
    %10 = vector.shape_cast %9 : vector<1x64x32xf32> to vector<64x32xf32>
    %cst_11 = arith.constant dense<0.000000e+00> : vector<72x32xf32>
    %11 = tpu.matmul %0, %10, %cst_11 {dimension_numbers = #tpu.dot_dimension_numbers<[1], [0], [0], [1], [0, 0, 1, 1], [], []>} : vector<72x64xf32>, vector<64x32xf32>, vector<72x32xf32> -> vector<72x32xf32>
    %c0_12 = arith.constant 0 : index
    %c0_13 = arith.constant 0 : index
    %c0_14 = arith.constant 0 : index
    %12 = vector.load %arg6[%c0_12, %c0_13, %c0_14] : memref<2x1x32xf32, #tpu.memory_space<vmem>>, vector<1x1x32xf32>
    %13 = vector.shape_cast %12 : vector<1x1x32xf32> to vector<1x32xf32>
    %14 = vector.broadcast %13 : vector<1x32xf32> to vector<72x32xf32>
    %15 = arith.addf %11, %14 : vector<72x32xf32>
    %c0_15 = arith.constant 0 : index
    %c0_16 = arith.constant 0 : index
    %c0_17 = arith.constant 0 : index
    %16 = vector.load %arg4[%c0_15, %c0_16, %c0_17] : memref<2x64x32xf32, #tpu.memory_space<vmem>>, vector<1x64x32xf32>
    %17 = vector.shape_cast %16 : vector<1x64x32xf32> to vector<64x32xf32>
    %cst_18 = arith.constant dense<0.000000e+00> : vector<72x32xf32>
    %18 = tpu.matmul %0, %17, %cst_18 {dimension_numbers = #tpu.dot_dimension_numbers<[1], [0], [0], [1], [0, 0, 1, 1], [], []>} : vector<72x64xf32>, vector<64x32xf32>, vector<72x32xf32> -> vector<72x32xf32>
    %c0_19 = arith.constant 0 : index
    %c0_20 = arith.constant 0 : index
    %c0_21 = arith.constant 0 : index
    %19 = vector.load %arg7[%c0_19, %c0_20, %c0_21] : memref<2x1x32xf32, #tpu.memory_space<vmem>>, vector<1x1x32xf32>
    %20 = vector.shape_cast %19 : vector<1x1x32xf32> to vector<1x32xf32>
    %21 = vector.broadcast %20 : vector<1x32xf32> to vector<72x32xf32>
    %22 = arith.addf %18, %21 : vector<72x32xf32>
    %cst_22 = arith.constant dense<0.000000e+00> : vector<72x72xf32>
    %23 = tpu.matmul %8, %15, %cst_22 {dimension_numbers = #tpu.dot_dimension_numbers<[1], [1], [0], [0], [0, 0, 1, 0], [], []>} : vector<72x32xf32>, vector<72x32xf32>, vector<72x72xf32> -> vector<72x72xf32>
    %c0_23 = arith.constant 0 : index
    %c0_24 = arith.constant 0 : index
    %c0_25 = arith.constant 0 : index
    %24 = vector.load %arg8[%c0_23, %c0_24, %c0_25] : memref<2x72x72xf32, #tpu.memory_space<vmem>>, vector<1x72x72xf32>
    %25 = vector.shape_cast %24 : vector<1x72x72xf32> to vector<72x72xf32>
    %26 = arith.addf %23, %25 : vector<72x72xf32>
    %cst_26 = arith.constant dense<0xFF800000> : vector<72xf32>
    %27 = vector.multi_reduction <maximumf>, %26, %cst_26 [1] : vector<72x72xf32> to vector<72xf32>
    %28 = vector.shape_cast %27 : vector<72xf32> to vector<72x1xf32>
    %29 = vector.broadcast %28 : vector<72x1xf32> to vector<72x72xf32>
    %30 = arith.subf %26, %29 : vector<72x72xf32>
    %31 = math.exp %30 : vector<72x72xf32>
    %cst_27 = arith.constant dense<0.000000e+00> : vector<72xf32>
    %32 = vector.multi_reduction <add>, %31, %cst_27 [1] : vector<72x72xf32> to vector<72xf32>
    %33 = vector.shape_cast %32 : vector<72xf32> to vector<72x1xf32>
    %34 = tpu.reciprocal %33 {approx = true} : vector<72x1xf32> -> vector<72x1xf32>
    %35 = vector.broadcast %34 : vector<72x1xf32> to vector<72x72xf32>
    %36 = arith.mulf %31, %35 : vector<72x72xf32>
    %cst_28 = arith.constant dense<0.000000e+00> : vector<72x32xf32>
    %37 = tpu.matmul %36, %22, %cst_28 {dimension_numbers = #tpu.dot_dimension_numbers<[1], [0], [0], [1], [0, 0, 1, 1], [], []>} : vector<72x72xf32>, vector<72x32xf32>, vector<72x32xf32> -> vector<72x32xf32>
    %c0_29 = arith.constant 0 : index
    %c0_30 = arith.constant 0 : index
    %c0_31 = arith.constant 0 : index
    %38 = vector.load %arg9[%c0_29, %c0_30, %c0_31] : memref<2x32x64xf32, #tpu.memory_space<vmem>>, vector<1x32x64xf32>
    %39 = vector.shape_cast %38 : vector<1x32x64xf32> to vector<32x64xf32>
    %cst_32 = arith.constant dense<0.000000e+00> : vector<72x64xf32>
    %40 = tpu.matmul %37, %39, %cst_32 {dimension_numbers = #tpu.dot_dimension_numbers<[1], [0], [0], [1], [0, 0, 1, 1], [], []>} : vector<72x32xf32>, vector<32x64xf32>, vector<72x64xf32> -> vector<72x64xf32>
    %41 = arith.addf %1, %40 : vector<72x64xf32>
    %c1 = arith.constant 1 : index
    %c0_33 = arith.constant 0 : index
    %c0_34 = arith.constant 0 : index
    %42 = vector.load %arg2[%c1, %c0_33, %c0_34] : memref<2x64x32xf32, #tpu.memory_space<vmem>>, vector<1x64x32xf32>
    %43 = vector.shape_cast %42 : vector<1x64x32xf32> to vector<64x32xf32>
    %cst_35 = arith.constant dense<0.000000e+00> : vector<72x32xf32>
    %44 = tpu.matmul %0, %43, %cst_35 {dimension_numbers = #tpu.dot_dimension_numbers<[1], [0], [0], [1], [0, 0, 1, 1], [], []>} : vector<72x64xf32>, vector<64x32xf32>, vector<72x32xf32> -> vector<72x32xf32>
    %c1_36 = arith.constant 1 : index
    %c0_37 = arith.constant 0 : index
    %c0_38 = arith.constant 0 : index
    %45 = vector.load %arg5[%c1_36, %c0_37, %c0_38] : memref<2x1x32xf32, #tpu.memory_space<vmem>>, vector<1x1x32xf32>
    %46 = vector.shape_cast %45 : vector<1x1x32xf32> to vector<1x32xf32>
    %47 = vector.broadcast %46 : vector<1x32xf32> to vector<72x32xf32>
    %48 = arith.addf %44, %47 : vector<72x32xf32>
    %c1_39 = arith.constant 1 : index
    %c0_40 = arith.constant 0 : index
    %c0_41 = arith.constant 0 : index
    %49 = vector.load %arg3[%c1_39, %c0_40, %c0_41] : memref<2x64x32xf32, #tpu.memory_space<vmem>>, vector<1x64x32xf32>
    %50 = vector.shape_cast %49 : vector<1x64x32xf32> to vector<64x32xf32>
    %cst_42 = arith.constant dense<0.000000e+00> : vector<72x32xf32>
    %51 = tpu.matmul %0, %50, %cst_42 {dimension_numbers = #tpu.dot_dimension_numbers<[1], [0], [0], [1], [0, 0, 1, 1], [], []>} : vector<72x64xf32>, vector<64x32xf32>, vector<72x32xf32> -> vector<72x32xf32>
    %c1_43 = arith.constant 1 : index
    %c0_44 = arith.constant 0 : index
    %c0_45 = arith.constant 0 : index
    %52 = vector.load %arg6[%c1_43, %c0_44, %c0_45] : memref<2x1x32xf32, #tpu.memory_space<vmem>>, vector<1x1x32xf32>
    %53 = vector.shape_cast %52 : vector<1x1x32xf32> to vector<1x32xf32>
    %54 = vector.broadcast %53 : vector<1x32xf32> to vector<72x32xf32>
    %55 = arith.addf %51, %54 : vector<72x32xf32>
    %c1_46 = arith.constant 1 : index
    %c0_47 = arith.constant 0 : index
    %c0_48 = arith.constant 0 : index
    %56 = vector.load %arg4[%c1_46, %c0_47, %c0_48] : memref<2x64x32xf32, #tpu.memory_space<vmem>>, vector<1x64x32xf32>
    %57 = vector.shape_cast %56 : vector<1x64x32xf32> to vector<64x32xf32>
    %cst_49 = arith.constant dense<0.000000e+00> : vector<72x32xf32>
    %58 = tpu.matmul %0, %57, %cst_49 {dimension_numbers = #tpu.dot_dimension_numbers<[1], [0], [0], [1], [0, 0, 1, 1], [], []>} : vector<72x64xf32>, vector<64x32xf32>, vector<72x32xf32> -> vector<72x32xf32>
    %c1_50 = arith.constant 1 : index
    %c0_51 = arith.constant 0 : index
    %c0_52 = arith.constant 0 : index
    %59 = vector.load %arg7[%c1_50, %c0_51, %c0_52] : memref<2x1x32xf32, #tpu.memory_space<vmem>>, vector<1x1x32xf32>
    %60 = vector.shape_cast %59 : vector<1x1x32xf32> to vector<1x32xf32>
    %61 = vector.broadcast %60 : vector<1x32xf32> to vector<72x32xf32>
    %62 = arith.addf %58, %61 : vector<72x32xf32>
    %cst_53 = arith.constant dense<0.000000e+00> : vector<72x72xf32>
    %63 = tpu.matmul %48, %55, %cst_53 {dimension_numbers = #tpu.dot_dimension_numbers<[1], [1], [0], [0], [0, 0, 1, 0], [], []>} : vector<72x32xf32>, vector<72x32xf32>, vector<72x72xf32> -> vector<72x72xf32>
    %c1_54 = arith.constant 1 : index
    %c0_55 = arith.constant 0 : index
    %c0_56 = arith.constant 0 : index
    %64 = vector.load %arg8[%c1_54, %c0_55, %c0_56] : memref<2x72x72xf32, #tpu.memory_space<vmem>>, vector<1x72x72xf32>
    %65 = vector.shape_cast %64 : vector<1x72x72xf32> to vector<72x72xf32>
    %66 = arith.addf %63, %65 : vector<72x72xf32>
    %cst_57 = arith.constant dense<0xFF800000> : vector<72xf32>
    %67 = vector.multi_reduction <maximumf>, %66, %cst_57 [1] : vector<72x72xf32> to vector<72xf32>
    %68 = vector.shape_cast %67 : vector<72xf32> to vector<72x1xf32>
    %69 = vector.broadcast %68 : vector<72x1xf32> to vector<72x72xf32>
    %70 = arith.subf %66, %69 : vector<72x72xf32>
    %71 = math.exp %70 : vector<72x72xf32>
    %cst_58 = arith.constant dense<0.000000e+00> : vector<72xf32>
    %72 = vector.multi_reduction <add>, %71, %cst_58 [1] : vector<72x72xf32> to vector<72xf32>
    %73 = vector.shape_cast %72 : vector<72xf32> to vector<72x1xf32>
    %74 = tpu.reciprocal %73 {approx = true} : vector<72x1xf32> -> vector<72x1xf32>
    %75 = vector.broadcast %74 : vector<72x1xf32> to vector<72x72xf32>
    %76 = arith.mulf %71, %75 : vector<72x72xf32>
    %cst_59 = arith.constant dense<0.000000e+00> : vector<72x32xf32>
    %77 = tpu.matmul %76, %62, %cst_59 {dimension_numbers = #tpu.dot_dimension_numbers<[1], [0], [0], [1], [0, 0, 1, 1], [], []>} : vector<72x72xf32>, vector<72x32xf32>, vector<72x32xf32> -> vector<72x32xf32>
    %c1_60 = arith.constant 1 : index
    %c0_61 = arith.constant 0 : index
    %c0_62 = arith.constant 0 : index
    %78 = vector.load %arg9[%c1_60, %c0_61, %c0_62] : memref<2x32x64xf32, #tpu.memory_space<vmem>>, vector<1x32x64xf32>
    %79 = vector.shape_cast %78 : vector<1x32x64xf32> to vector<32x64xf32>
    %cst_63 = arith.constant dense<0.000000e+00> : vector<72x64xf32>
    %80 = tpu.matmul %77, %79, %cst_63 {dimension_numbers = #tpu.dot_dimension_numbers<[1], [0], [0], [1], [0, 0, 1, 1], [], []>} : vector<72x32xf32>, vector<32x64xf32>, vector<72x64xf32> -> vector<72x64xf32>
    %81 = arith.addf %41, %80 : vector<72x64xf32>
    %c0_64 = arith.constant 0 : index
    %c0_65 = arith.constant 0 : index
    %82 = vector.load %arg10[%c0_64, %c0_65] : memref<1x64xf32, #tpu.memory_space<vmem>>, vector<1x64xf32>
    %83 = vector.broadcast %82 : vector<1x64xf32> to vector<72x64xf32>
    %84 = arith.addf %81, %83 : vector<72x64xf32>
    %c0_66 = arith.constant 0 : index
    %c0_67 = arith.constant 0 : index
    %85 = vector.load %arg11[%c0_66, %c0_67] : memref<144x64xf32, #tpu.memory_space<vmem>>, vector<72x64xf32>
    tpu.vector_store %arg11[%c0_66, %c0_67], %84 {strides = array<i32>} : memref<144x64xf32, #tpu.memory_space<vmem>>, vector<72x64xf32>,
    %c72 = arith.constant 72 : index
    %c0_68 = arith.constant 0 : index
    %86 = vector.load %arg1[%c72, %c0_68] : memref<144x64xf32, #tpu.memory_space<vmem>>, vector<72x64xf32>
    %cst_69 = arith.constant 0.000000e+00 : f32
    %87 = vector.broadcast %cst_69 : f32 to vector<72x64xf32>
    %c0_70 = arith.constant 0 : index
    %c0_71 = arith.constant 0 : index
    %c0_72 = arith.constant 0 : index
    %88 = vector.load %arg2[%c0_70, %c0_71, %c0_72] : memref<2x64x32xf32, #tpu.memory_space<vmem>>, vector<1x64x32xf32>
    %89 = vector.shape_cast %88 : vector<1x64x32xf32> to vector<64x32xf32>
    %cst_73 = arith.constant dense<0.000000e+00> : vector<72x32xf32>
    %90 = tpu.matmul %86, %89, %cst_73 {dimension_numbers = #tpu.dot_dimension_numbers<[1], [0], [0], [1], [0, 0, 1, 1], [], []>} : vector<72x64xf32>, vector<64x32xf32>, vector<72x32xf32> -> vector<72x32xf32>
    %c0_74 = arith.constant 0 : index
    %c0_75 = arith.constant 0 : index
    %c0_76 = arith.constant 0 : index
    %91 = vector.load %arg5[%c0_74, %c0_75, %c0_76] : memref<2x1x32xf32, #tpu.memory_space<vmem>>, vector<1x1x32xf32>
    %92 = vector.shape_cast %91 : vector<1x1x32xf32> to vector<1x32xf32>
    %93 = vector.broadcast %92 : vector<1x32xf32> to vector<72x32xf32>
    %94 = arith.addf %90, %93 : vector<72x32xf32>
    %c0_77 = arith.constant 0 : index
    %c0_78 = arith.constant 0 : index
    %c0_79 = arith.constant 0 : index
    %95 = vector.load %arg3[%c0_77, %c0_78, %c0_79] : memref<2x64x32xf32, #tpu.memory_space<vmem>>, vector<1x64x32xf32>
    %96 = vector.shape_cast %95 : vector<1x64x32xf32> to vector<64x32xf32>
    %cst_80 = arith.constant dense<0.000000e+00> : vector<72x32xf32>
    %97 = tpu.matmul %86, %96, %cst_80 {dimension_numbers = #tpu.dot_dimension_numbers<[1], [0], [0], [1], [0, 0, 1, 1], [], []>} : vector<72x64xf32>, vector<64x32xf32>, vector<72x32xf32> -> vector<72x32xf32>
    %c0_81 = arith.constant 0 : index
    %c0_82 = arith.constant 0 : index
    %c0_83 = arith.constant 0 : index
    %98 = vector.load %arg6[%c0_81, %c0_82, %c0_83] : memref<2x1x32xf32, #tpu.memory_space<vmem>>, vector<1x1x32xf32>
    %99 = vector.shape_cast %98 : vector<1x1x32xf32> to vector<1x32xf32>
    %100 = vector.broadcast %99 : vector<1x32xf32> to vector<72x32xf32>
    %101 = arith.addf %97, %100 : vector<72x32xf32>
    %c0_84 = arith.constant 0 : index
    %c0_85 = arith.constant 0 : index
    %c0_86 = arith.constant 0 : index
    %102 = vector.load %arg4[%c0_84, %c0_85, %c0_86] : memref<2x64x32xf32, #tpu.memory_space<vmem>>, vector<1x64x32xf32>
    %103 = vector.shape_cast %102 : vector<1x64x32xf32> to vector<64x32xf32>
    %cst_87 = arith.constant dense<0.000000e+00> : vector<72x32xf32>
    %104 = tpu.matmul %86, %103, %cst_87 {dimension_numbers = #tpu.dot_dimension_numbers<[1], [0], [0], [1], [0, 0, 1, 1], [], []>} : vector<72x64xf32>, vector<64x32xf32>, vector<72x32xf32> -> vector<72x32xf32>
    %c0_88 = arith.constant 0 : index
    %c0_89 = arith.constant 0 : index
    %c0_90 = arith.constant 0 : index
    %105 = vector.load %arg7[%c0_88, %c0_89, %c0_90] : memref<2x1x32xf32, #tpu.memory_space<vmem>>, vector<1x1x32xf32>
    %106 = vector.shape_cast %105 : vector<1x1x32xf32> to vector<1x32xf32>
    %107 = vector.broadcast %106 : vector<1x32xf32> to vector<72x32xf32>
    %108 = arith.addf %104, %107 : vector<72x32xf32>
    %cst_91 = arith.constant dense<0.000000e+00> : vector<72x72xf32>
    %109 = tpu.matmul %94, %101, %cst_91 {dimension_numbers = #tpu.dot_dimension_numbers<[1], [1], [0], [0], [0, 0, 1, 0], [], []>} : vector<72x32xf32>, vector<72x32xf32>, vector<72x72xf32> -> vector<72x72xf32>
    %c0_92 = arith.constant 0 : index
    %c0_93 = arith.constant 0 : index
    %c0_94 = arith.constant 0 : index
    %110 = vector.load %arg8[%c0_92, %c0_93, %c0_94] : memref<2x72x72xf32, #tpu.memory_space<vmem>>, vector<1x72x72xf32>
    %111 = vector.shape_cast %110 : vector<1x72x72xf32> to vector<72x72xf32>
    %112 = arith.addf %109, %111 : vector<72x72xf32>
    %cst_95 = arith.constant dense<0xFF800000> : vector<72xf32>
    %113 = vector.multi_reduction <maximumf>, %112, %cst_95 [1] : vector<72x72xf32> to vector<72xf32>
    %114 = vector.shape_cast %113 : vector<72xf32> to vector<72x1xf32>
    %115 = vector.broadcast %114 : vector<72x1xf32> to vector<72x72xf32>
    %116 = arith.subf %112, %115 : vector<72x72xf32>
    %117 = math.exp %116 : vector<72x72xf32>
    %cst_96 = arith.constant dense<0.000000e+00> : vector<72xf32>
    %118 = vector.multi_reduction <add>, %117, %cst_96 [1] : vector<72x72xf32> to vector<72xf32>
    %119 = vector.shape_cast %118 : vector<72xf32> to vector<72x1xf32>
    %120 = tpu.reciprocal %119 {approx = true} : vector<72x1xf32> -> vector<72x1xf32>
    %121 = vector.broadcast %120 : vector<72x1xf32> to vector<72x72xf32>
    %122 = arith.mulf %117, %121 : vector<72x72xf32>
    %cst_97 = arith.constant dense<0.000000e+00> : vector<72x32xf32>
    %123 = tpu.matmul %122, %108, %cst_97 {dimension_numbers = #tpu.dot_dimension_numbers<[1], [0], [0], [1], [0, 0, 1, 1], [], []>} : vector<72x72xf32>, vector<72x32xf32>, vector<72x32xf32> -> vector<72x32xf32>
    %c0_98 = arith.constant 0 : index
    %c0_99 = arith.constant 0 : index
    %c0_100 = arith.constant 0 : index
    %124 = vector.load %arg9[%c0_98, %c0_99, %c0_100] : memref<2x32x64xf32, #tpu.memory_space<vmem>>, vector<1x32x64xf32>
    %125 = vector.shape_cast %124 : vector<1x32x64xf32> to vector<32x64xf32>
    %cst_101 = arith.constant dense<0.000000e+00> : vector<72x64xf32>
    %126 = tpu.matmul %123, %125, %cst_101 {dimension_numbers = #tpu.dot_dimension_numbers<[1], [0], [0], [1], [0, 0, 1, 1], [], []>} : vector<72x32xf32>, vector<32x64xf32>, vector<72x64xf32> -> vector<72x64xf32>
    %127 = arith.addf %87, %126 : vector<72x64xf32>
    %c1_102 = arith.constant 1 : index
    %c0_103 = arith.constant 0 : index
    %c0_104 = arith.constant 0 : index
    %128 = vector.load %arg2[%c1_102, %c0_103, %c0_104] : memref<2x64x32xf32, #tpu.memory_space<vmem>>, vector<1x64x32xf32>
    %129 = vector.shape_cast %128 : vector<1x64x32xf32> to vector<64x32xf32>
    %cst_105 = arith.constant dense<0.000000e+00> : vector<72x32xf32>
    %130 = tpu.matmul %86, %129, %cst_105 {dimension_numbers = #tpu.dot_dimension_numbers<[1], [0], [0], [1], [0, 0, 1, 1], [], []>} : vector<72x64xf32>, vector<64x32xf32>, vector<72x32xf32> -> vector<72x32xf32>
    %c1_106 = arith.constant 1 : index
    %c0_107 = arith.constant 0 : index
    %c0_108 = arith.constant 0 : index
    %131 = vector.load %arg5[%c1_106, %c0_107, %c0_108] : memref<2x1x32xf32, #tpu.memory_space<vmem>>, vector<1x1x32xf32>
    %132 = vector.shape_cast %131 : vector<1x1x32xf32> to vector<1x32xf32>
    %133 = vector.broadcast %132 : vector<1x32xf32> to vector<72x32xf32>
    %134 = arith.addf %130, %133 : vector<72x32xf32>
    %c1_109 = arith.constant 1 : index
    %c0_110 = arith.constant 0 : index
    %c0_111 = arith.constant 0 : index
    %135 = vector.load %arg3[%c1_109, %c0_110, %c0_111] : memref<2x64x32xf32, #tpu.memory_space<vmem>>, vector<1x64x32xf32>
    %136 = vector.shape_cast %135 : vector<1x64x32xf32> to vector<64x32xf32>
    %cst_112 = arith.constant dense<0.000000e+00> : vector<72x32xf32>
    %137 = tpu.matmul %86, %136, %cst_112 {dimension_numbers = #tpu.dot_dimension_numbers<[1], [0], [0], [1], [0, 0, 1, 1], [], []>} : vector<72x64xf32>, vector<64x32xf32>, vector<72x32xf32> -> vector<72x32xf32>
    %c1_113 = arith.constant 1 : index
    %c0_114 = arith.constant 0 : index
    %c0_115 = arith.constant 0 : index
    %138 = vector.load %arg6[%c1_113, %c0_114, %c0_115] : memref<2x1x32xf32, #tpu.memory_space<vmem>>, vector<1x1x32xf32>
    %139 = vector.shape_cast %138 : vector<1x1x32xf32> to vector<1x32xf32>
    %140 = vector.broadcast %139 : vector<1x32xf32> to vector<72x32xf32>
    %141 = arith.addf %137, %140 : vector<72x32xf32>
    %c1_116 = arith.constant 1 : index
    %c0_117 = arith.constant 0 : index
    %c0_118 = arith.constant 0 : index
    %142 = vector.load %arg4[%c1_116, %c0_117, %c0_118] : memref<2x64x32xf32, #tpu.memory_space<vmem>>, vector<1x64x32xf32>
    %143 = vector.shape_cast %142 : vector<1x64x32xf32> to vector<64x32xf32>
    %cst_119 = arith.constant dense<0.000000e+00> : vector<72x32xf32>
    %144 = tpu.matmul %86, %143, %cst_119 {dimension_numbers = #tpu.dot_dimension_numbers<[1], [0], [0], [1], [0, 0, 1, 1], [], []>} : vector<72x64xf32>, vector<64x32xf32>, vector<72x32xf32> -> vector<72x32xf32>
    %c1_120 = arith.constant 1 : index
    %c0_121 = arith.constant 0 : index
    %c0_122 = arith.constant 0 : index
    %145 = vector.load %arg7[%c1_120, %c0_121, %c0_122] : memref<2x1x32xf32, #tpu.memory_space<vmem>>, vector<1x1x32xf32>
    %146 = vector.shape_cast %145 : vector<1x1x32xf32> to vector<1x32xf32>
    %147 = vector.broadcast %146 : vector<1x32xf32> to vector<72x32xf32>
    %148 = arith.addf %144, %147 : vector<72x32xf32>
    %cst_123 = arith.constant dense<0.000000e+00> : vector<72x72xf32>
    %149 = tpu.matmul %134, %141, %cst_123 {dimension_numbers = #tpu.dot_dimension_numbers<[1], [1], [0], [0], [0, 0, 1, 0], [], []>} : vector<72x32xf32>, vector<72x32xf32>, vector<72x72xf32> -> vector<72x72xf32>
    %c1_124 = arith.constant 1 : index
    %c0_125 = arith.constant 0 : index
    %c0_126 = arith.constant 0 : index
    %150 = vector.load %arg8[%c1_124, %c0_125, %c0_126] : memref<2x72x72xf32, #tpu.memory_space<vmem>>, vector<1x72x72xf32>
    %151 = vector.shape_cast %150 : vector<1x72x72xf32> to vector<72x72xf32>
    %152 = arith.addf %149, %151 : vector<72x72xf32>
    %cst_127 = arith.constant dense<0xFF800000> : vector<72xf32>
    %153 = vector.multi_reduction <maximumf>, %152, %cst_127 [1] : vector<72x72xf32> to vector<72xf32>
    %154 = vector.shape_cast %153 : vector<72xf32> to vector<72x1xf32>
    %155 = vector.broadcast %154 : vector<72x1xf32> to vector<72x72xf32>
    %156 = arith.subf %152, %155 : vector<72x72xf32>
    %157 = math.exp %156 : vector<72x72xf32>
    %cst_128 = arith.constant dense<0.000000e+00> : vector<72xf32>
    %158 = vector.multi_reduction <add>, %157, %cst_128 [1] : vector<72x72xf32> to vector<72xf32>
    %159 = vector.shape_cast %158 : vector<72xf32> to vector<72x1xf32>
    %160 = tpu.reciprocal %159 {approx = true} : vector<72x1xf32> -> vector<72x1xf32>
    %161 = vector.broadcast %160 : vector<72x1xf32> to vector<72x72xf32>
    %162 = arith.mulf %157, %161 : vector<72x72xf32>
    %cst_129 = arith.constant dense<0.000000e+00> : vector<72x32xf32>
    %163 = tpu.matmul %162, %148, %cst_129 {dimension_numbers = #tpu.dot_dimension_numbers<[1], [0], [0], [1], [0, 0, 1, 1], [], []>} : vector<72x72xf32>, vector<72x32xf32>, vector<72x32xf32> -> vector<72x32xf32>
    %c1_130 = arith.constant 1 : index
    %c0_131 = arith.constant 0 : index
    %c0_132 = arith.constant 0 : index
    %164 = vector.load %arg9[%c1_130, %c0_131, %c0_132] : memref<2x32x64xf32, #tpu.memory_space<vmem>>, vector<1x32x64xf32>
    %165 = vector.shape_cast %164 : vector<1x32x64xf32> to vector<32x64xf32>
    %cst_133 = arith.constant dense<0.000000e+00> : vector<72x64xf32>
    %166 = tpu.matmul %163, %165, %cst_133 {dimension_numbers = #tpu.dot_dimension_numbers<[1], [0], [0], [1], [0, 0, 1, 1], [], []>} : vector<72x32xf32>, vector<32x64xf32>, vector<72x64xf32> -> vector<72x64xf32>
    %167 = arith.addf %127, %166 : vector<72x64xf32>
    %c0_134 = arith.constant 0 : index
    %c0_135 = arith.constant 0 : index
    %168 = vector.load %arg10[%c0_134, %c0_135] : memref<1x64xf32, #tpu.memory_space<vmem>>, vector<1x64xf32>
    %169 = vector.broadcast %168 : vector<1x64xf32> to vector<72x64xf32>
    %170 = arith.addf %167, %169 : vector<72x64xf32>
    %c72_136 = arith.constant 72 : index
    %c0_137 = arith.constant 0 : index
    %171 = vector.load %arg11[%c72_136, %c0_137] : memref<144x64xf32, #tpu.memory_space<vmem>>, vector<72x64xf32>
    tpu.vector_store %arg11[%c72_136, %c0_137], %170 {strides = array<i32>} : memref<144x64xf32, #tpu.memory_space<vmem>>, vector<72x64xf32>,
    return
  }
  func.func @transform_0(%arg0: i32) -> (i32, i32) {
    %c0_i32 = arith.constant 0 : i32
    %c0_i32_0 = arith.constant 0 : i32
    return %arg0, %c0_i32 : i32, i32
  }
  func.func @transform_1(%arg0: i32) -> (i32, i32, i32) {
    %c0_i32 = arith.constant 0 : i32
    %c0_i32_0 = arith.constant 0 : i32
    %c0_i32_1 = arith.constant 0 : i32
    %c0_i32_2 = arith.constant 0 : i32
    return %c0_i32, %c0_i32_0, %c0_i32_1 : i32, i32, i32
  }
  func.func @transform_2(%arg0: i32) -> (i32, i32, i32) {
    %c0_i32 = arith.constant 0 : i32
    %c0_i32_0 = arith.constant 0 : i32
    %c0_i32_1 = arith.constant 0 : i32
    %c0_i32_2 = arith.constant 0 : i32
    return %c0_i32, %c0_i32_0, %c0_i32_1 : i32, i32, i32
  }
  func.func @transform_3(%arg0: i32) -> (i32, i32, i32) {
    %c0_i32 = arith.constant 0 : i32
    %c0_i32_0 = arith.constant 0 : i32
    %c0_i32_1 = arith.constant 0 : i32
    %c0_i32_2 = arith.constant 0 : i32
    return %c0_i32, %c0_i32_0, %c0_i32_1 : i32, i32, i32
  }
  func.func @transform_4(%arg0: i32) -> (i32, i32, i32) {
    %c0_i32 = arith.constant 0 : i32
    %c0_i32_0 = arith.constant 0 : i32
    %c0_i32_1 = arith.constant 0 : i32
    %c0_i32_2 = arith.constant 0 : i32
    return %c0_i32, %c0_i32_0, %c0_i32_1 : i32, i32, i32
  }
  func.func @transform_5(%arg0: i32) -> (i32, i32, i32) {
    %c0_i32 = arith.constant 0 : i32
    %c0_i32_0 = arith.constant 0 : i32
    %c0_i32_1 = arith.constant 0 : i32
    %c0_i32_2 = arith.constant 0 : i32
    return %c0_i32, %c0_i32_0, %c0_i32_1 : i32, i32, i32
  }
  func.func @transform_6(%arg0: i32) -> (i32, i32, i32) {
    %c0_i32 = arith.constant 0 : i32
    %c0_i32_0 = arith.constant 0 : i32
    %c0_i32_1 = arith.constant 0 : i32
    %c0_i32_2 = arith.constant 0 : i32
    return %c0_i32, %c0_i32_0, %c0_i32_1 : i32, i32, i32
  }
  func.func @transform_7(%arg0: i32) -> (i32, i32, i32) {
    %c0_i32 = arith.constant 0 : i32
    %c0_i32_0 = arith.constant 0 : i32
    %c0_i32_1 = arith.constant 0 : i32
    %c0_i32_2 = arith.constant 0 : i32
    return %c0_i32, %c0_i32_0, %c0_i32_1 : i32, i32, i32
  }
  func.func @transform_8(%arg0: i32) -> (i32, i32, i32) {
    %c0_i32 = arith.constant 0 : i32
    %c0_i32_0 = arith.constant 0 : i32
    %c0_i32_1 = arith.constant 0 : i32
    %c0_i32_2 = arith.constant 0 : i32
    return %c0_i32, %c0_i32_0, %c0_i32_1 : i32, i32, i32
  }
  func.func @transform_9(%arg0: i32) -> (i32, i32) {
    %c0_i32 = arith.constant 0 : i32
    %c0_i32_0 = arith.constant 0 : i32
    %c0_i32_1 = arith.constant 0 : i32
    return %c0_i32, %c0_i32_0 : i32, i32
  }
  func.func @transform_10(%arg0: i32) -> (i32, i32) {
    %c0_i32 = arith.constant 0 : i32
    %c0_i32_0 = arith.constant 0 : i32
    return %arg0, %c0_i32 : i32, i32
  }
}

</mosaic_0001>

<llo_original>
// kernel: tpu_custom_call.1
$region0: #{tpu_custom_call.1}
  #allocation0 [shape = 'u32[]', space=smem, size = 0x4, offset = 0x4, fixed_abs, tag = 'smem constant byte address 0x4 - core index']
  #allocation1 [shape = 'u32[144,128]{1,0:T(1,128)}', space=vmem, size = 0x12000, scoped, tag = 'internal scratch']
  %s0 = inlined_call_operand.vmem [shape: f32[288,64], index: 0, kind: input, shape index: {}]
  %s1 = inlined_call_operand.vmem [shape: f32[2,64,32], index: 1, kind: input, shape index: {}]
  %s2 = inlined_call_operand.vmem [shape: f32[2,64,32], index: 2, kind: input, shape index: {}]
  %s3 = inlined_call_operand.vmem [shape: f32[2,64,32], index: 3, kind: input, shape index: {}]
  %s4 = inlined_call_operand.vmem [shape: f32[2,1,32], index: 4, kind: input, shape index: {}]
  %s5 = inlined_call_operand.vmem [shape: f32[2,1,32], index: 5, kind: input, shape index: {}]
  %s6 = inlined_call_operand.vmem [shape: f32[2,1,32], index: 6, kind: input, shape index: {}]
  %s7 = inlined_call_operand.vmem [shape: f32[2,72,72], index: 7, kind: input, shape index: {}]
  %s8 = inlined_call_operand.vmem [shape: f32[2,32,64], index: 8, kind: input, shape index: {}]
  %s9 = inlined_call_operand.vmem [shape: f32[1,64], index: 9, kind: input, shape index: {}]
  %s10 = inlined_call_operand.vmem [shape: f32[288,64], index: 10, kind: output, shape index: {}]
  %s11 = sld [smem:[#allocation0]]
  $region73: #{tpu_custom_call.1} parent=0
    _
  %s13 = ssub.s32 1, %s11
  %s14 = scalar_select 0, %s13, %s11
  loop: start=0, step=1, limit=4
  $region2: #{tpu_custom_call.1} parent=0 // loop_pre_header
    _
  $region3: #{tpu_custom_call.1} parent=0 // loop_header
    %s16 = sphi 0, %s20
    %p17 = scmp.ge.s32.totalorder %s16, 4
    %s26 = sphi 0, %s28
    %s29 = sphi 0, %s26
    %s30 = sphi 0, %s29
    %s46 = sphi 0, %s30
    %s50 = sphi 0, %s50
    %s52 = sphi 0, %s50
    %s53 = sphi 0, %s52
    %s67 = sphi 0, %s53
    %s71 = sphi 0, %s71
    %s73 = sphi 0, %s71
    %s74 = sphi 0, %s73
    %s88 = sphi 0, %s74
    %s92 = sphi 0, %s92
    %s94 = sphi 0, %s92
    %s95 = sphi 0, %s94
    %s109 = sphi 0, %s95
    %s113 = sphi 0, %s113
    %s115 = sphi 0, %s113
    %s116 = sphi 0, %s115
    %s130 = sphi 0, %s116
    %s134 = sphi 0, %s134
    %s136 = sphi 0, %s134
    %s137 = sphi 0, %s136
    %s151 = sphi 0, %s137
    %s155 = sphi 0, %s155
    %s157 = sphi 0, %s155
    %s158 = sphi 0, %s157
    %s172 = sphi 0, %s158
    %s176 = sphi 0, %s176
    %s178 = sphi 0, %s176
    %s179 = sphi 0, %s178
    %s193 = sphi 0, %s179
    %s197 = sphi 0, %s197
    %s199 = sphi 0, %s197
    %s200 = sphi 0, %s199
    %s214 = sphi 0, %s200
    %s218 = sphi 0, %s218
    %s220 = sphi 0, %s218
    %s221 = sphi 0, %s220
    %s235 = sphi 0, %s221
    %s241 = sphi 0, %s243
    %s244 = sphi 0, %s241
    %s245 = sphi 0, %s244
    %s261 = sphi 0, %s245
  $region4: #{tpu_custom_call.1} parent=0 // loop_header_branch
    %19 = sbr.rel (%p17) target = $region8
  $region5: #{tpu_custom_call.1} parent=0 // loop_body
    %s21 = ssub.s32 %s16, 1
    %s22 = ssub.s32 %s16, 2
    %s23 = sadd.s32 %s16, 1
    %s24 = ssub.s32 %s16, %s23
    %p25 = scmp.eq.s32.totalorder %s24, 0
    %s27 = sadd.s32 %s26, 1
    %s28 = scalar_select %p25, %s26, %s27
    %p31 = pneg %p25
    %p32 = scmp.eq.s32.totalorder %s16, 1
    %p33 = por %p31, %p32
    %p34 = scmp.ne.s32.totalorder %s26, %s29
    %p35 = scmp.eq.s32.totalorder %s16, 0
    %p36 = por %p34, %p35
    %p37 = scmp.ne.s32.totalorder %s26, %s29
    %p38 = scmp.eq.s32.totalorder %s21, 1
    %p39 = por %p37, %p38
    %p40 = scmp.ne.s32.totalorder %s29, %s30
    %p41 = scmp.eq.s32.totalorder %s21, 0
    %p42 = por %p40, %p41
    %p43 = scmp.ne.s32.totalorder %s29, %s30
    %p44 = scmp.eq.s32.totalorder %s22, 1
    %p45 = por %p43, %p44
    %p47 = scmp.ne.s32.totalorder %s30, %s46
    %p48 = scmp.eq.s32.totalorder %s22, 0
    %p49 = por %p47, %p48
    %s51 = sadd.s32 %s50, 1
    %p54 = scmp.eq.s32.totalorder %s16, 1
    %p55 = scmp.ne.s32.totalorder %s50, %s52
    %p56 = scmp.eq.s32.totalorder %s16, 0
    %p57 = por %p55, %p56
    %p58 = scmp.ne.s32.totalorder %s50, %s52
    %p59 = scmp.eq.s32.totalorder %s21, 1
    %p60 = por %p58, %p59
    %p61 = scmp.ne.s32.totalorder %s52, %s53
    %p62 = scmp.eq.s32.totalorder %s21, 0
    %p63 = por %p61, %p62
    %p64 = scmp.ne.s32.totalorder %s52, %s53
    %p65 = scmp.eq.s32.totalorder %s22, 1
    %p66 = por %p64, %p65
    %p68 = scmp.ne.s32.totalorder %s53, %s67
    %p69 = scmp.eq.s32.totalorder %s22, 0
    %p70 = por %p68, %p69
    %s72 = sadd.s32 %s71, 1
    %p75 = scmp.eq.s32.totalorder %s16, 1
    %p76 = scmp.ne.s32.totalorder %s71, %s73
    %p77 = scmp.eq.s32.totalorder %s16, 0
    %p78 = por %p76, %p77
    %p79 = scmp.ne.s32.totalorder %s71, %s73
    %p80 = scmp.eq.s32.totalorder %s21, 1
    %p81 = por %p79, %p80
    %p82 = scmp.ne.s32.totalorder %s73, %s74
    %p83 = scmp.eq.s32.totalorder %s21, 0
    %p84 = por %p82, %p83
    %p85 = scmp.ne.s32.totalorder %s73, %s74
    %p86 = scmp.eq.s32.totalorder %s22, 1
    %p87 = por %p85, %p86
    %p89 = scmp.ne.s32.totalorder %s74, %s88
    %p90 = scmp.eq.s32.totalorder %s22, 0
    %p91 = por %p89, %p90
    %s93 = sadd.s32 %s92, 1
    %p96 = scmp.eq.s32.totalorder %s16, 1
    %p97 = scmp.ne.s32.totalorder %s92, %s94
    %p98 = scmp.eq.s32.totalorder %s16, 0
    %p99 = por %p97, %p98
    %p100 = scmp.ne.s32.totalorder %s92, %s94
    %p101 = scmp.eq.s32.totalorder %s21, 1
    %p102 = por %p100, %p101
    %p103 = scmp.ne.s32.totalorder %s94, %s95
    %p104 = scmp.eq.s32.totalorder %s21, 0
    %p105 = por %p103, %p104
    %p106 = scmp.ne.s32.totalorder %s94, %s95
    %p107 = scmp.eq.s32.totalorder %s22, 1
    %p108 = por %p106, %p107
    %p110 = scmp.ne.s32.totalorder %s95, %s109
    %p111 = scmp.eq.s32.totalorder %s22, 0
    %p112 = por %p110, %p111
    %s114 = sadd.s32 %s113, 1
    %p117 = scmp.eq.s32.totalorder %s16, 1
    %p118 = scmp.ne.s32.totalorder %s113, %s115
    %p119 = scmp.eq.s32.totalorder %s16, 0
    %p120 = por %p118, %p119
    %p121 = scmp.ne.s32.totalorder %s113, %s115
    %p122 = scmp.eq.s32.totalorder %s21, 1
    %p123 = por %p121, %p122
    %p124 = scmp.ne.s32.totalorder %s115, %s116
    %p125 = scmp.eq.s32.totalorder %s21, 0
    %p126 = por %p124, %p125
    %p127 = scmp.ne.s32.totalorder %s115, %s116
    %p128 = scmp.eq.s32.totalorder %s22, 1
    %p129 = por %p127, %p128
    %p131 = scmp.ne.s32.totalorder %s116, %s130
    %p132 = scmp.eq.s32.totalorder %s22, 0
    %p133 = por %p131, %p132
    %s135 = sadd.s32 %s134, 1
    %p138 = scmp.eq.s32.totalorder %s16, 1
    %p139 = scmp.ne.s32.totalorder %s134, %s136
    %p140 = scmp.eq.s32.totalorder %s16, 0
    %p141 = por %p139, %p140
    %p142 = scmp.ne.s32.totalorder %s134, %s136
    %p143 = scmp.eq.s32.totalorder %s21, 1
    %p144 = por %p142, %p143
    %p145 = scmp.ne.s32.totalorder %s136, %s137
    %p146 = scmp.eq.s32.totalorder %s21, 0
    %p147 = por %p145, %p146
    %p148 = scmp.ne.s32.totalorder %s136, %s137
    %p149 = scmp.eq.s32.totalorder %s22, 1
    %p150 = por %p148, %p149
    %p152 = scmp.ne.s32.totalorder %s137, %s151
    %p153 = scmp.eq.s32.totalorder %s22, 0
    %p154 = por %p152, %p153
    %s156 = sadd.s32 %s155, 1
    %p159 = scmp.eq.s32.totalorder %s16, 1
    %p160 = scmp.ne.s32.totalorder %s155, %s157
    %p161 = scmp.eq.s32.totalorder %s16, 0
    %p162 = por %p160, %p161
    %p163 = scmp.ne.s32.totalorder %s155, %s157
    %p164 = scmp.eq.s32.totalorder %s21, 1
    %p165 = por %p163, %p164
    %p166 = scmp.ne.s32.totalorder %s157, %s158
    %p167 = scmp.eq.s32.totalorder %s21, 0
    %p168 = por %p166, %p167
    %p169 = scmp.ne.s32.totalorder %s157, %s158
    %p170 = scmp.eq.s32.totalorder %s22, 1
    %p171 = por %p169, %p170
    %p173 = scmp.ne.s32.totalorder %s158, %s172
    %p174 = scmp.eq.s32.totalorder %s22, 0
    %p175 = por %p173, %p174
    %s177 = sadd.s32 %s176, 1
    %p180 = scmp.eq.s32.totalorder %s16, 1
    %p181 = scmp.ne.s32.totalorder %s176, %s178
    %p182 = scmp.eq.s32.totalorder %s16, 0
    %p183 = por %p181, %p182
    %p184 = scmp.ne.s32.totalorder %s176, %s178
    %p185 = scmp.eq.s32.totalorder %s21, 1
    %p186 = por %p184, %p185
    %p187 = scmp.ne.s32.totalorder %s178, %s179
    %p188 = scmp.eq.s32.totalorder %s21, 0
    %p189 = por %p187, %p188
    %p190 = scmp.ne.s32.totalorder %s178, %s179
    %p191 = scmp.eq.s32.totalorder %s22, 1
    %p192 = por %p190, %p191
    %p194 = scmp.ne.s32.totalorder %s179, %s193
    %p195 = scmp.eq.s32.totalorder %s22, 0
    %p196 = por %p194, %p195
    %s198 = sadd.s32 %s197, 1
    %p201 = scmp.eq.s32.totalorder %s16, 1
    %p202 = scmp.ne.s32.totalorder %s197, %s199
    %p203 = scmp.eq.s32.totalorder %s16, 0
    %p204 = por %p202, %p203
    %p205 = scmp.ne.s32.totalorder %s197, %s199
    %p206 = scmp.eq.s32.totalorder %s21, 1
    %p207 = por %p205, %p206
    %p208 = scmp.ne.s32.totalorder %s199, %s200
    %p209 = scmp.eq.s32.totalorder %s21, 0
    %p210 = por %p208, %p209
    %p211 = scmp.ne.s32.totalorder %s199, %s200
    %p212 = scmp.eq.s32.totalorder %s22, 1
    %p213 = por %p211, %p212
    %p215 = scmp.ne.s32.totalorder %s200, %s214
    %p216 = scmp.eq.s32.totalorder %s22, 0
    %p217 = por %p215, %p216
    %s219 = sadd.s32 %s218, 1
    %p222 = scmp.eq.s32.totalorder %s16, 1
    %p223 = scmp.ne.s32.totalorder %s218, %s220
    %p224 = scmp.eq.s32.totalorder %s16, 0
    %p225 = por %p223, %p224
    %p226 = scmp.ne.s32.totalorder %s218, %s220
    %p227 = scmp.eq.s32.totalorder %s21, 1
    %p228 = por %p226, %p227
    %p229 = scmp.ne.s32.totalorder %s220, %s221
    %p230 = scmp.eq.s32.totalorder %s21, 0
    %p231 = por %p229, %p230
    %p232 = scmp.ne.s32.totalorder %s220, %s221
    %p233 = scmp.eq.s32.totalorder %s22, 1
    %p234 = por %p232, %p233
    %p236 = scmp.ne.s32.totalorder %s221, %s235
    %p237 = scmp.eq.s32.totalorder %s22, 0
    %p238 = por %p236, %p237
    %s239 = ssub.s32 %s16, %s23
    %p240 = scmp.eq.s32.totalorder %s239, 0
    %s242 = sadd.s32 %s241, 1
    %s243 = scalar_select %p240, %s241, %s242
    %p246 = pneg %p240
    %p247 = scmp.eq.s32.totalorder %s16, 1
    %p248 = por %p246, %p247
    %p249 = scmp.ne.s32.totalorder %s241, %s244
    %p250 = scmp.eq.s32.totalorder %s16, 0
    %p251 = por %p249, %p250
    %p252 = scmp.ne.s32.totalorder %s241, %s244
    %p253 = scmp.eq.s32.totalorder %s21, 1
    %p254 = por %p252, %p253
    %p255 = scmp.ne.s32.totalorder %s244, %s245
    %p256 = scmp.eq.s32.totalorder %s21, 0
    %p257 = por %p255, %p256
    %p258 = scmp.ne.s32.totalorder %s244, %s245
    %p259 = scmp.eq.s32.totalorder %s22, 1
    %p260 = por %p258, %p259
    %p262 = scmp.ne.s32.totalorder %s245, %s261
    %p263 = scmp.eq.s32.totalorder %s22, 0
    %p264 = por %p262, %p263
    %p265 = scmp.le.s32.totalorder 1, %s16
    %p266 = scmp.lt.s32.totalorder %s16, 3
    %p267 = pnand %p265, %p266
    %p268 = pneg %p267
    // Predicated region
    $region9: #{tpu_custom_call.1} parent=5 // pred_check
      _
    $region10: #{tpu_custom_call.1} parent=5 // pred_check_branch
      %270 = sbr.rel (%p267) target = $region12
    $region11: #{tpu_custom_call.1} parent=5 // pred_region
      %s271 = ssub.s32 %s16, 1
      // Predicated region
      $region13: #{tpu_custom_call.1} parent=11 // pred_check
        %p272 = pneg %p63
      $region14: #{tpu_custom_call.1} parent=11 // pred_check_branch
        %274 = sbr.rel (%p272) target = $region16
      $region15: #{tpu_custom_call.1} parent=11 // pred_region
        _
      $region16: #{tpu_custom_call.1} parent=11 // pred_fallthru
        _
      // Predicated region
      $region17: #{tpu_custom_call.1} parent=11 // pred_check
        %p275 = pneg %p84
      $region18: #{tpu_custom_call.1} parent=11 // pred_check_branch
        %277 = sbr.rel (%p275) target = $region20
      $region19: #{tpu_custom_call.1} parent=11 // pred_region
        _
      $region20: #{tpu_custom_call.1} parent=11 // pred_fallthru
        _
      // Predicated region
      $region21: #{tpu_custom_call.1} parent=11 // pred_check
        %p278 = pneg %p105
      $region22: #{tpu_custom_call.1} parent=11 // pred_check_branch
        %280 = sbr.rel (%p278) target = $region24
      $region23: #{tpu_custom_call.1} parent=11 // pred_region
        _
      $region24: #{tpu_custom_call.1} parent=11 // pred_fallthru
        _
      // Predicated region
      $region25: #{tpu_custom_call.1} parent=11 // pred_check
        %p281 = pneg %p126
      $region26: #{tpu_custom_call.1} parent=11 // pred_check_branch
        %283 = sbr.rel (%p281) target = $region28
      $region27: #{tpu_custom_call.1} parent=11 // pred_region
        _
      $region28: #{tpu_custom_call.1} parent=11 // pred_fallthru
        _
      // Predicated region
      $region29: #{tpu_custom_call.1} parent=11 // pred_check
        %p284 = pneg %p147
      $region30: #{tpu_custom_call.1} parent=11 // pred_check_branch
        %286 = sbr.rel (%p284) target = $region32
      $region31: #{tpu_custom_call.1} parent=11 // pred_region
        _
      $region32: #{tpu_custom_call.1} parent=11 // pred_fallthru
        _
      // Predicated region
      $region33: #{tpu_custom_call.1} parent=11 // pred_check
        %p287 = pneg %p168
      $region34: #{tpu_custom_call.1} parent=11 // pred_check_branch
        %289 = sbr.rel (%p287) target = $region36
      $region35: #{tpu_custom_call.1} parent=11 // pred_region
        _
      $region36: #{tpu_custom_call.1} parent=11 // pred_fallthru
        _
      // Predicated region
      $region37: #{tpu_custom_call.1} parent=11 // pred_check
        %p290 = pneg %p189
      $region38: #{tpu_custom_call.1} parent=11 // pred_check_branch
        %292 = sbr.rel (%p290) target = $region40
      $region39: #{tpu_custom_call.1} parent=11 // pred_region
        _
      $region40: #{tpu_custom_call.1} parent=11 // pred_fallthru
        _
      // Predicated region
      $region41: #{tpu_custom_call.1} parent=11 // pred_check
        %p293 = pneg %p210
      $region42: #{tpu_custom_call.1} parent=11 // pred_check_branch
        %295 = sbr.rel (%p293) target = $region44
      $region43: #{tpu_custom_call.1} parent=11 // pred_region
        _
      $region44: #{tpu_custom_call.1} parent=11 // pred_fallthru
        _
      // Predicated region
      $region45: #{tpu_custom_call.1} parent=11 // pred_check
        %p296 = pneg %p231
      $region46: #{tpu_custom_call.1} parent=11 // pred_check_branch
        %298 = sbr.rel (%p296) target = $region48
      $region47: #{tpu_custom_call.1} parent=11 // pred_region
        _
      $region48: #{tpu_custom_call.1} parent=11 // pred_fallthru
        _
    $region12: #{tpu_custom_call.1} parent=5 // pred_fallthru
      _
    %p299 = scmp.lt.s32.totalorder %s16, 2
    // Predicated region
    $region49: #{tpu_custom_call.1} parent=5 // pred_check
      %p300 = pneg %p299
    $region50: #{tpu_custom_call.1} parent=5 // pred_check_branch
      %302 = sbr.rel (%p300) target = $region52
    $region51: #{tpu_custom_call.1} parent=5 // pred_region
      // Predicated region
      $region53: #{tpu_custom_call.1} parent=51 // pred_check
        %p303 = pneg %p36
      $region54: #{tpu_custom_call.1} parent=51 // pred_check_branch
        %305 = sbr.rel (%p303) target = $region56
      $region55: #{tpu_custom_call.1} parent=51 // pred_region
        %s306 = smul.u32 18, %s16
        %p307 = scmp.lt.s32.totalorder %s306, 35
        %s308 = scalar_select %p307, %s306, 35
        %s309 = smul.addr %s308, 8
        %s310 = scalar_lea.vmem %s0, %s309
        %s311 = smul.u32 18, %s16
      $region56: #{tpu_custom_call.1} parent=51 // pred_fallthru
        _
    $region52: #{tpu_custom_call.1} parent=5 // pred_fallthru
      _
    %p312 = scmp.le.s32.totalorder 1, %s16
    %p313 = scmp.lt.s32.totalorder %s16, 3
    %p314 = pnand %p312, %p313
    %p315 = pneg %p314
    // Predicated region
    $region57: #{tpu_custom_call.1} parent=5 // pred_check
      _
    $region58: #{tpu_custom_call.1} parent=5 // pred_check_branch
      %317 = sbr.rel (%p314) target = $region60
    $region59: #{tpu_custom_call.1} parent=5 // pred_region
      %s318 = ssub.s32 %s16, 1
      %s319 = smul.u32 18, %s21
      %p320 = scmp.lt.s32.totalorder %s319, 35
      %s321 = scalar_select %p320, %s319, 35
      %s322 = smul.addr %s321, 8
      %s323 = scalar_lea.vmem %s0, %s322
      %p324 = pneg %p42
      %p325 = pneg %p39
      %p326 = pneg %p63
      %p327 = pneg %p60
      %p328 = pneg %p84
      %p329 = pneg %p81
      %p330 = pneg %p105
      %p331 = pneg %p102
      %p332 = pneg %p126
      %p333 = pneg %p123
      %p334 = pneg %p147
      %p335 = pneg %p144
      %p336 = pneg %p168
      %p337 = pneg %p165
      %p338 = pneg %p189
      %p339 = pneg %p186
      %p340 = pneg %p210
      %p341 = pneg %p207
      %p342 = pneg %p231
      %p343 = pneg %p228
      %p344 = pneg %p257
      %p345 = pneg %p254
      %s346 = smul.u32 18, %s21
      %p347 = scmp.lt.s32.totalorder %s346, 35
      %s348 = scalar_select %p347, %s346, 35
      %s349 = smul.addr %s348, 8
      %s350 = scalar_lea.vmem %s10, %s349
      %s351 = smul.u32 18, %s21
      %p352 = scmp.lt.s32.totalorder %s351, 35
      %s353 = scalar_select %p352, %s351, 35
      %s354 = smul.addr %s353, 8
      %s355 = scalar_lea.vmem %s0, %s354
      %s356 = smul.u32 18, %s21
      %s357 = smul.u32 18, %s21
      %p358 = scmp.lt.s32.totalorder %s357, 35
      %s359 = scalar_select %p358, %s357, 35
      %s360 = smul.addr %s359, 8
      %s361 = scalar_lea.vmem %s10, %s360
      %s362 = smul.u32 18, %s21
      %v363 = vld [vmem:[%s355] sm:$0xff]
      %v364 = vld [vmem:[%s355 + $0x8] sm:$0xff]
      %v365 = vld [vmem:[%s355 + $0x10] sm:$0xff]
      %v366 = vld [vmem:[%s355 + $0x18] sm:$0xff]
      %v367 = vld [vmem:[%s355 + $0x20] sm:$0xff]
      %v368 = vld [vmem:[%s355 + $0x28] sm:$0xff]
      %v369 = vld [vmem:[%s355 + $0x30] sm:$0xff]
      %v370 = vld [vmem:[%s355 + $0x38] sm:$0xff]
      %v371 = vld [vmem:[%s355 + $0x40] sm:$0xff]
      %v372 = vld [vmem:[%s1] sm:$0xff]
      %v373 = vld [vmem:[%s1 + $0x8] sm:$0xff]
      %v374 = vld [vmem:[%s1 + $0x10] sm:$0xff]
      %v375 = vld [vmem:[%s1 + $0x18] sm:$0xff]
      %v376 = vld [vmem:[%s1 + $0x20] sm:$0xff]
      %v377 = vld [vmem:[%s1 + $0x28] sm:$0xff]
      %v378 = vld [vmem:[%s1 + $0x30] sm:$0xff]
      %v379 = vld [vmem:[%s1 + $0x38] sm:$0xff]
      %v380 = vld [vmem:[%s4] sm:$0x1]
      %v382 = vlaneseq
      %v383 = vshrl.u32 %v382, 7
      %v384 = vsub.s32 0, %v383
      %v385 = vrot.slane %v380, %v384
      %vm387 = vcmask 523264
      %v389 = vsel %vm387, %v363, 0
      %v392 = vsel %vm387, %v364, 0
      %v395 = vsel %vm387, %v365, 0
      %v398 = vsel %vm387, %v366, 0
      %v401 = vsel %vm387, %v367, 0
      %v404 = vsel %vm387, %v368, 0
      %v407 = vsel %vm387, %v369, 0
      %v410 = vsel %vm387, %v370, 0
      %v413 = vsel %vm387, %v371, 0
      %415 = vmatprep.subr.mxu0 0.0
      %416 = vmatpush1.msra.mxu0 %v372
      %417 = vmatprep.subr.mxu0 0.0
      %418 = vmatpush1.msra.mxu0 %v373
      %419 = vmatprep.subr.mxu0 0.0
      %420 = vmatpush1.msra.mxu0 %v374
      %421 = vmatprep.subr.mxu0 0.0
      %422 = vmatpush1.msra.mxu0 %v375
      %423 = vmatprep.subr.mxu0 0.0
      %424 = vmatpush1.msra.mxu0 %v376
      %425 = vmatprep.subr.mxu0 0.0
      %426 = vmatpush1.msra.mxu0 %v377
      %427 = vmatprep.subr.mxu0 0.0
      %428 = vmatpush1.msra.mxu0 %v378
      %429 = vmatprep.subr.mxu0 0.0
      %430 = vmatpush1.msra.mxu0 %v379
      %431 = vmatprep.subr.mxu0 0.0
      %432 = vmatpush1.msra.mxu0 0.0
      %433 = vmatprep.subr.mxu0 0.0
      %434 = vmatpush1.msra.mxu0 0.0
      %435 = vmatprep.subr.mxu0 0.0
      %436 = vmatpush1.msra.mxu0 0.0
      %437 = vmatprep.subr.mxu0 0.0
      %438 = vmatpush1.msra.mxu0 0.0
      %439 = vmatprep.subr.mxu0 0.0
      %440 = vmatpush1.msra.mxu0 0.0
      %441 = vmatprep.subr.mxu0 0.0
      %442 = vmatpush1.msra.mxu0 0.0
      %443 = vmatprep.subr.mxu0 0.0
      %444 = vmatpush1.msra.mxu0 0.0
      %445 = vmatprep.subr.mxu0 0.0
      %446 = vmatpush1.msra.mxu0 0.0
      %447 = vmatprep.subr.mxu0 0.0
      %448 = vmatpush1.msra.mxu0 0.0
      %449 = vmatprep.subr.mxu0 0.0
      %450 = vmatpush1.msra.mxu0 0.0
      %451 = vmatprep.subr.mxu0 0.0
      %452 = vmatpush1.msra.mxu0 0.0
      %453 = vmatprep.subr.mxu0 0.0
      %454 = vmatpush1.msra.mxu0 0.0
      %455 = vmatprep.subr.mxu0 0.0
      %456 = vmatpush1.msra.mxu0 0.0
      %457 = vmatprep.subr.mxu0 0.0
      %458 = vmatpush1.msra.mxu0 0.0
      %459 = vmatprep.subr.mxu0 0.0
      %460 = vmatpush1.msra.mxu0 0.0
      %461 = vmatprep.subr.mxu0 0.0
      %462 = vmatpush1.msra.mxu0 0.0
      %463 = vmatprep.subr.mxu0 0.0
      %464 = vmatpush1.msra.mxu0 0.0
      %465 = vmatprep.subr.mxu0 0.0
      %466 = vmatpush1.msra.mxu0 0.0
      %467 = vmatprep.subr.mxu0 0.0
      %468 = vmatpush1.msra.mxu0 0.0
      %469 = vmatprep.subr.mxu0 0.0
      %470 = vmatpush1.msra.mxu0 0.0
      %471 = vmatprep.subr.mxu0 0.0
      %472 = vmatpush1.msra.mxu0 0.0
      %473 = vmatprep.subr.mxu0 0.0
      %474 = vmatpush1.msra.mxu0 0.0
      %475 = vmatprep.subr.mxu0 0.0
      %476 = vmatpush1.msra.mxu0 0.0
      %477 = vmatprep.subr.mxu0 0.0
      %478 = vmatpush1.msra.mxu0 0.0
      %479 = vmatprep.mubr.f32.mxu0 0.0
      %480 = vmatmul.mubr.f32.gmra.mrb[0].mxu0 %v389
      %v481 = vpop.f32.mrb[0].mxu0
      %v482 = vadd.f32 %v385, %v481
      %v483 = vpop.f32.mrb[0].mxu0
      %484 = vmatprep.mubr.f32.mxu0 0.0
      %485 = vmatmul.mubr.f32.gmra.mrb[0].mxu0 %v392
      %v486 = vpop.f32.mrb[0].mxu0
      %v487 = vadd.f32 %v385, %v486
      %v488 = vpop.f32.mrb[0].mxu0
      %489 = vmatprep.mubr.f32.mxu0 0.0
      %490 = vmatmul.mubr.f32.gmra.mrb[0].mxu0 %v395
      %v491 = vpop.f32.mrb[0].mxu0
      %v492 = vadd.f32 %v385, %v491
      %v493 = vpop.f32.mrb[0].mxu0
      %494 = vmatprep.mubr.f32.mxu0 0.0
      %495 = vmatmul.mubr.f32.gmra.mrb[0].mxu0 %v398
      %v496 = vpop.f32.mrb[0].mxu0
      %v497 = vadd.f32 %v385, %v496
      %v498 = vpop.f32.mrb[0].mxu0
      %499 = vmatprep.mubr.f32.mxu0 0.0
      %500 = vmatmul.mubr.f32.gmra.mrb[0].mxu0 %v401
      %v501 = vpop.f32.mrb[0].mxu0
      %v502 = vadd.f32 %v385, %v501
      %v503 = vpop.f32.mrb[0].mxu0
      %504 = vmatprep.mubr.f32.mxu0 0.0
      %505 = vmatmul.mubr.f32.gmra.mrb[0].mxu0 %v404
      %v506 = vpop.f32.mrb[0].mxu0
      %v507 = vadd.f32 %v385, %v506
      %v508 = vpop.f32.mrb[0].mxu0
      %509 = vmatprep.mubr.f32.mxu0 0.0
      %510 = vmatmul.mubr.f32.gmra.mrb[0].mxu0 %v407
      %v511 = vpop.f32.mrb[0].mxu0
      %v512 = vadd.f32 %v385, %v511
      %v513 = vpop.f32.mrb[0].mxu0
      %514 = vmatprep.mubr.f32.mxu0 0.0
      %515 = vmatmul.mubr.f32.gmra.mrb[0].mxu0 %v410
      %v516 = vpop.f32.mrb[0].mxu0
      %v517 = vadd.f32 %v385, %v516
      %v518 = vpop.f32.mrb[0].mxu0
      %519 = vmatprep.mubr.f32.mxu0 0.0
      %520 = vmatmul.mubr.f32.gmra.mrb[0].mxu0 %v413
      %v521 = vpop.f32.mrb[0].mxu0
      %v522 = vadd.f32 %v385, %v521
      %v523 = vpop.f32.mrb[0].mxu0
      %524 = vdwg.mxu0
      %v525 = vld [vmem:[%s2] sm:$0xff]
      %v526 = vld [vmem:[%s2 + $0x8] sm:$0xff]
      %v527 = vld [vmem:[%s2 + $0x10] sm:$0xff]
      %v528 = vld [vmem:[%s2 + $0x18] sm:$0xff]
      %v529 = vld [vmem:[%s2 + $0x20] sm:$0xff]
      %v530 = vld [vmem:[%s2 + $0x28] sm:$0xff]
      %v531 = vld [vmem:[%s2 + $0x30] sm:$0xff]
      %v532 = vld [vmem:[%s2 + $0x38] sm:$0xff]
      %v533 = vld [vmem:[%s5] sm:$0x1]
      %v535 = vlaneseq
      %v536 = vshrl.u32 %v535, 7
      %v537 = vsub.s32 0, %v536
      %v538 = vrot.slane %v533, %v537
      %540 = vmatprep.subr.mxu0 0.0
      %541 = vmatpush1.msra.mxu0 %v525
      %542 = vmatprep.subr.mxu0 0.0
      %543 = vmatpush1.msra.mxu0 %v526
      %544 = vmatprep.subr.mxu0 0.0
      %545 = vmatpush1.msra.mxu0 %v527
      %546 = vmatprep.subr.mxu0 0.0
      %547 = vmatpush1.msra.mxu0 %v528
      %548 = vmatprep.subr.mxu0 0.0
      %549 = vmatpush1.msra.mxu0 %v529
      %550 = vmatprep.subr.mxu0 0.0
      %551 = vmatpush1.msra.mxu0 %v530
      %552 = vmatprep.subr.mxu0 0.0
      %553 = vmatpush1.msra.mxu0 %v531
      %554 = vmatprep.subr.mxu0 0.0
      %555 = vmatpush1.msra.mxu0 %v532
      %556 = vmatprep.subr.mxu0 0.0
      %557 = vmatpush1.msra.mxu0 0.0
      %558 = vmatprep.subr.mxu0 0.0
      %559 = vmatpush1.msra.mxu0 0.0
      %560 = vmatprep.subr.mxu0 0.0
      %561 = vmatpush1.msra.mxu0 0.0
      %562 = vmatprep.subr.mxu0 0.0
      %563 = vmatpush1.msra.mxu0 0.0
      %564 = vmatprep.subr.mxu0 0.0
      %565 = vmatpush1.msra.mxu0 0.0
      %566 = vmatprep.subr.mxu0 0.0
      %567 = vmatpush1.msra.mxu0 0.0
      %568 = vmatprep.subr.mxu0 0.0
      %569 = vmatpush1.msra.mxu0 0.0
      %570 = vmatprep.subr.mxu0 0.0
      %571 = vmatpush1.msra.mxu0 0.0
      %572 = vmatprep.subr.mxu0 0.0
      %573 = vmatpush1.msra.mxu0 0.0
      %574 = vmatprep.subr.mxu0 0.0
      %575 = vmatpush1.msra.mxu0 0.0
      %576 = vmatprep.subr.mxu0 0.0
      %577 = vmatpush1.msra.mxu0 0.0
      %578 = vmatprep.subr.mxu0 0.0
      %579 = vmatpush1.msra.mxu0 0.0
      %580 = vmatprep.subr.mxu0 0.0
      %581 = vmatpush1.msra.mxu0 0.0
      %582 = vmatprep.subr.mxu0 0.0
      %583 = vmatpush1.msra.mxu0 0.0
      %584 = vmatprep.subr.mxu0 0.0
      %585 = vmatpush1.msra.mxu0 0.0
      %586 = vmatprep.subr.mxu0 0.0
      %587 = vmatpush1.msra.mxu0 0.0
      %588 = vmatprep.subr.mxu0 0.0
      %589 = vmatpush1.msra.mxu0 0.0
      %590 = vmatprep.subr.mxu0 0.0
      %591 = vmatpush1.msra.mxu0 0.0
      %592 = vmatprep.subr.mxu0 0.0
      %593 = vmatpush1.msra.mxu0 0.0
      %594 = vmatprep.subr.mxu0 0.0
      %595 = vmatpush1.msra.mxu0 0.0
      %596 = vmatprep.subr.mxu0 0.0
      %597 = vmatpush1.msra.mxu0 0.0
      %598 = vmatprep.subr.mxu0 0.0
      %599 = vmatpush1.msra.mxu0 0.0
      %600 = vmatprep.subr.mxu0 0.0
      %601 = vmatpush1.msra.mxu0 0.0
      %602 = vmatprep.subr.mxu0 0.0
      %603 = vmatpush1.msra.mxu0 0.0
      %604 = vmatprep.mubr.f32.mxu0 0.0
      %605 = vmatmul.mubr.f32.gmra.mrb[0].mxu0 %v389
      %v606 = vpop.f32.mrb[0].mxu0
      %v607 = vadd.f32 %v538, %v606
      %v608 = vpop.f32.mrb[0].mxu0
      %609 = vmatprep.mubr.f32.mxu0 0.0
      %610 = vmatmul.mubr.f32.gmra.mrb[0].mxu0 %v392
      %v611 = vpop.f32.mrb[0].mxu0
      %v612 = vadd.f32 %v538, %v611
      %v613 = vpop.f32.mrb[0].mxu0
      %614 = vmatprep.mubr.f32.mxu0 0.0
      %615 = vmatmul.mubr.f32.gmra.mrb[0].mxu0 %v395
      %v616 = vpop.f32.mrb[0].mxu0
      %v617 = vadd.f32 %v538, %v616
      %v618 = vpop.f32.mrb[0].mxu0
      %619 = vmatprep.mubr.f32.mxu0 0.0
      %620 = vmatmul.mubr.f32.gmra.mrb[0].mxu0 %v398
      %v621 = vpop.f32.mrb[0].mxu0
      %v622 = vadd.f32 %v538, %v621
      %v623 = vpop.f32.mrb[0].mxu0
      %624 = vmatprep.mubr.f32.mxu0 0.0
      %625 = vmatmul.mubr.f32.gmra.mrb[0].mxu0 %v401
      %v626 = vpop.f32.mrb[0].mxu0
      %v627 = vadd.f32 %v538, %v626
      %v628 = vpop.f32.mrb[0].mxu0
      %629 = vmatprep.mubr.f32.mxu0 0.0
      %630 = vmatmul.mubr.f32.gmra.mrb[0].mxu0 %v404
      %v631 = vpop.f32.mrb[0].mxu0
      %v632 = vadd.f32 %v538, %v631
      %v633 = vpop.f32.mrb[0].mxu0
      %634 = vmatprep.mubr.f32.mxu0 0.0
      %635 = vmatmul.mubr.f32.gmra.mrb[0].mxu0 %v407
      %v636 = vpop.f32.mrb[0].mxu0
      %v637 = vadd.f32 %v538, %v636
      %v638 = vpop.f32.mrb[0].mxu0
      %639 = vmatprep.mubr.f32.mxu0 0.0
      %640 = vmatmul.mubr.f32.gmra.mrb[0].mxu0 %v410
      %v641 = vpop.f32.mrb[0].mxu0
      %v642 = vadd.f32 %v538, %v641
      %v643 = vpop.f32.mrb[0].mxu0
      %644 = vmatprep.mubr.f32.mxu0 0.0
      %645 = vmatmul.mubr.f32.gmra.mrb[0].mxu0 %v413
      %v646 = vpop.f32.mrb[0].mxu0
      %v647 = vadd.f32 %v538, %v646
      %v648 = vpop.f32.mrb[0].mxu0
      %649 = vdwg.mxu0
      %v650 = vld [vmem:[%s3] sm:$0xff]
      %v651 = vld [vmem:[%s3 + $0x8] sm:$0xff]
      %v652 = vld [vmem:[%s3 + $0x10] sm:$0xff]
      %v653 = vld [vmem:[%s3 + $0x18] sm:$0xff]
      %v654 = vld [vmem:[%s3 + $0x20] sm:$0xff]
      %v655 = vld [vmem:[%s3 + $0x28] sm:$0xff]
      %v656 = vld [vmem:[%s3 + $0x30] sm:$0xff]
      %v657 = vld [vmem:[%s3 + $0x38] sm:$0xff]
      %v658 = vld [vmem:[%s6] sm:$0x1]
      %v660 = vlaneseq
      %v661 = vshrl.u32 %v660, 7
      %v662 = vsub.s32 0, %v661
      %v663 = vrot.slane %v658, %v662
      %665 = vmatprep.subr.mxu0 0.0
      %666 = vmatpush1.msra.mxu0 %v650
      %667 = vmatprep.subr.mxu0 0.0
      %668 = vmatpush1.msra.mxu0 %v651
      %669 = vmatprep.subr.mxu0 0.0
      %670 = vmatpush1.msra.mxu0 %v652
      %671 = vmatprep.subr.mxu0 0.0
      %672 = vmatpush1.msra.mxu0 %v653
      %673 = vmatprep.subr.mxu0 0.0
      %674 = vmatpush1.msra.mxu0 %v654
      %675 = vmatprep.subr.mxu0 0.0
      %676 = vmatpush1.msra.mxu0 %v655
      %677 = vmatprep.subr.mxu0 0.0
      %678 = vmatpush1.msra.mxu0 %v656
      %679 = vmatprep.subr.mxu0 0.0
      %680 = vmatpush1.msra.mxu0 %v657
      %681 = vmatprep.subr.mxu0 0.0
      %682 = vmatpush1.msra.mxu0 0.0
      %683 = vmatprep.subr.mxu0 0.0
      %684 = vmatpush1.msra.mxu0 0.0
      %685 = vmatprep.subr.mxu0 0.0
      %686 = vmatpush1.msra.mxu0 0.0
      %687 = vmatprep.subr.mxu0 0.0
      %688 = vmatpush1.msra.mxu0 0.0
      %689 = vmatprep.subr.mxu0 0.0
      %690 = vmatpush1.msra.mxu0 0.0
      %691 = vmatprep.subr.mxu0 0.0
      %692 = vmatpush1.msra.mxu0 0.0
      %693 = vmatprep.subr.mxu0 0.0
      %694 = vmatpush1.msra.mxu0 0.0
      %695 = vmatprep.subr.mxu0 0.0
      %696 = vmatpush1.msra.mxu0 0.0
      %697 = vmatprep.subr.mxu0 0.0
      %698 = vmatpush1.msra.mxu0 0.0
      %699 = vmatprep.subr.mxu0 0.0
      %700 = vmatpush1.msra.mxu0 0.0
      %701 = vmatprep.subr.mxu0 0.0
      %702 = vmatpush1.msra.mxu0 0.0
      %703 = vmatprep.subr.mxu0 0.0
      %704 = vmatpush1.msra.mxu0 0.0
      %705 = vmatprep.subr.mxu0 0.0
      %706 = vmatpush1.msra.mxu0 0.0
      %707 = vmatprep.subr.mxu0 0.0
      %708 = vmatpush1.msra.mxu0 0.0
      %709 = vmatprep.subr.mxu0 0.0
      %710 = vmatpush1.msra.mxu0 0.0
      %711 = vmatprep.subr.mxu0 0.0
      %712 = vmatpush1.msra.mxu0 0.0
      %713 = vmatprep.subr.mxu0 0.0
      %714 = vmatpush1.msra.mxu0 0.0
      %715 = vmatprep.subr.mxu0 0.0
      %716 = vmatpush1.msra.mxu0 0.0
      %717 = vmatprep.subr.mxu0 0.0
      %718 = vmatpush1.msra.mxu0 0.0
      %719 = vmatprep.subr.mxu0 0.0
      %720 = vmatpush1.msra.mxu0 0.0
      %721 = vmatprep.subr.mxu0 0.0
      %722 = vmatpush1.msra.mxu0 0.0
      %723 = vmatprep.subr.mxu0 0.0
      %724 = vmatpush1.msra.mxu0 0.0
      %725 = vmatprep.subr.mxu0 0.0
      %726 = vmatpush1.msra.mxu0 0.0
      %727 = vmatprep.subr.mxu0 0.0
      %728 = vmatpush1.msra.mxu0 0.0
      %729 = vmatprep.mubr.f32.mxu0 0.0
      %730 = vmatmul.mubr.f32.gmra.mrb[0].mxu0 %v389
      %v731 = vpop.f32.mrb[0].mxu0
      %v732 = vadd.f32 %v663, %v731
      %v733 = vpop.f32.mrb[0].mxu0
      %734 = vmatprep.mubr.f32.mxu0 0.0
      %735 = vmatmul.mubr.f32.gmra.mrb[0].mxu0 %v392
      %v736 = vpop.f32.mrb[0].mxu0
      %v737 = vadd.f32 %v663, %v736
      %v738 = vpop.f32.mrb[0].mxu0
      %739 = vmatprep.mubr.f32.mxu0 0.0
      %740 = vmatmul.mubr.f32.gmra.mrb[0].mxu0 %v395
      %v741 = vpop.f32.mrb[0].mxu0
      %v742 = vadd.f32 %v663, %v741
      %v743 = vpop.f32.mrb[0].mxu0
      %744 = vmatprep.mubr.f32.mxu0 0.0
      %745 = vmatmul.mubr.f32.gmra.mrb[0].mxu0 %v398
      %v746 = vpop.f32.mrb[0].mxu0
      %v747 = vadd.f32 %v663, %v746
      %v748 = vpop.f32.mrb[0].mxu0
      %749 = vmatprep.mubr.f32.mxu0 0.0
      %750 = vmatmul.mubr.f32.gmra.mrb[0].mxu0 %v401
      %v751 = vpop.f32.mrb[0].mxu0
      %v752 = vadd.f32 %v663, %v751
      %v753 = vpop.f32.mrb[0].mxu0
      %754 = vmatprep.mubr.f32.mxu0 0.0
      %755 = vmatmul.mubr.f32.gmra.mrb[0].mxu0 %v404
      %v756 = vpop.f32.mrb[0].mxu0
      %v757 = vadd.f32 %v663, %v756
      %v758 = vpop.f32.mrb[0].mxu0
      %759 = vmatprep.mubr.f32.mxu0 0.0
      %760 = vmatmul.mubr.f32.gmra.mrb[0].mxu0 %v407
      %v761 = vpop.f32.mrb[0].mxu0
      %v762 = vadd.f32 %v663, %v761
      %v763 = vpop.f32.mrb[0].mxu0
      %764 = vmatprep.mubr.f32.mxu0 0.0
      %765 = vmatmul.mubr.f32.gmra.mrb[0].mxu0 %v410
      %v766 = vpop.f32.mrb[0].mxu0
      %v767 = vadd.f32 %v663, %v766
      %v768 = vpop.f32.mrb[0].mxu0
      %769 = vmatprep.mubr.f32.mxu0 0.0
      %770 = vmatmul.mubr.f32.gmra.mrb[0].mxu0 %v413
      %v771 = vpop.f32.mrb[0].mxu0
      %v772 = vadd.f32 %v663, %v771
      %v773 = vpop.f32.mrb[0].mxu0
      %774 = vdwg.mxu0
      %v775 = vld [vmem:[%s7] sm:$0xff]
      %v776 = vld [vmem:[%s7 + $0x8] sm:$0xff]
      %v777 = vld [vmem:[%s7 + $0x10] sm:$0xff]
      %v778 = vld [vmem:[%s7 + $0x18] sm:$0xff]
      %v779 = vld [vmem:[%s7 + $0x20] sm:$0xff]
      %v780 = vld [vmem:[%s7 + $0x28] sm:$0xff]
      %v781 = vld [vmem:[%s7 + $0x30] sm:$0xff]
      %v782 = vld [vmem:[%s7 + $0x38] sm:$0xff]
      %v783 = vld [vmem:[%s7 + $0x40] sm:$0xff]
      %vm784 = vcmask 261120
      %v786 = vsel %vm784, %v482, 0
      %v789 = vsel %vm784, %v487, 0
      %v792 = vsel %vm784, %v492, 0
      %v795 = vsel %vm784, %v497, 0
      %v798 = vsel %vm784, %v502, 0
      %v801 = vsel %vm784, %v507, 0
      %v804 = vsel %vm784, %v512, 0
      %v807 = vsel %vm784, %v517, 0
      %v810 = vsel %vm784, %v522, 0
      %v813 = vsel %vm784, %v607, 0
      %v816 = vsel %vm784, %v612, 0
      %v819 = vsel %vm784, %v617, 0
      %v822 = vsel %vm784, %v622, 0
      %v825 = vsel %vm784, %v627, 0
      %v828 = vsel %vm784, %v632, 0
      %v831 = vsel %vm784, %v637, 0
      %v834 = vsel %vm784, %v642, 0
      %v837 = vsel %vm784, %v647, 0
      %839 = vmatprep.subr.mxu0 0.0
      %840 = vmatpush1.xpose.msra.mxu0 %v813
      %841 = vmatprep.subr.mxu0 0.0
      %842 = vmatpush1.xpose.msra.mxu0 %v816
      %843 = vmatprep.subr.mxu0 0.0
      %844 = vmatpush1.xpose.msra.mxu0 %v819
      %845 = vmatprep.subr.mxu0 0.0
      %846 = vmatpush1.xpose.msra.mxu0 %v822
      %847 = vmatprep.subr.mxu0 0.0
      %848 = vmatpush1.xpose.msra.mxu0 %v825
      %849 = vmatprep.subr.mxu0 0.0
      %850 = vmatpush1.xpose.msra.mxu0 %v828
      %851 = vmatprep.subr.mxu0 0.0
      %852 = vmatpush1.xpose.msra.mxu0 %v831
      %853 = vmatprep.subr.mxu0 0.0
      %854 = vmatpush1.xpose.msra.mxu0 %v834
      %855 = vmatprep.subr.mxu0 0.0
      %856 = vmatpush1.xpose.msra.mxu0 %v837
      %857 = vmatprep.subr.mxu0 0.0
      %858 = vmatpush1.xpose.msra.mxu0 0.0
      %859 = vmatprep.subr.mxu0 0.0
      %860 = vmatpush1.xpose.msra.mxu0 0.0
      %861 = vmatprep.subr.mxu0 0.0
      %862 = vmatpush1.xpose.msra.mxu0 0.0
      %863 = vmatprep.subr.mxu0 0.0
      %864 = vmatpush1.xpose.msra.mxu0 0.0
      %865 = vmatprep.subr.mxu0 0.0
      %866 = vmatpush1.xpose.msra.mxu0 0.0
      %867 = vmatprep.subr.mxu0 0.0
      %868 = vmatpush1.xpose.msra.mxu0 0.0
      %869 = vmatprep.subr.mxu0 0.0
      %870 = vmatpush1.xpose.msra.mxu0 0.0
      %871 = vmatprep.subr.mxu0 0.0
      %872 = vmatpush1.xpose.msra.mxu0 0.0
      %873 = vmatprep.subr.mxu0 0.0
      %874 = vmatpush1.xpose.msra.mxu0 0.0
      %875 = vmatprep.subr.mxu0 0.0
      %876 = vmatpush1.xpose.msra.mxu0 0.0
      %877 = vmatprep.subr.mxu0 0.0
      %878 = vmatpush1.xpose.msra.mxu0 0.0
      %879 = vmatprep.subr.mxu0 0.0
      %880 = vmatpush1.xpose.msra.mxu0 0.0
      %881 = vmatprep.subr.mxu0 0.0
      %882 = vmatpush1.xpose.msra.mxu0 0.0
      %883 = vmatprep.subr.mxu0 0.0
      %884 = vmatpush1.xpose.msra.mxu0 0.0
      %885 = vmatprep.subr.mxu0 0.0
      %886 = vmatpush1.xpose.msra.mxu0 0.0
      %887 = vmatprep.subr.mxu0 0.0
      %888 = vmatpush1.xpose.msra.mxu0 0.0
      %889 = vmatprep.subr.mxu0 0.0
      %890 = vmatpush1.xpose.msra.mxu0 0.0
      %891 = vmatprep.subr.mxu0 0.0
      %892 = vmatpush1.xpose.msra.mxu0 0.0
      %893 = vmatprep.subr.mxu0 0.0
      %894 = vmatpush1.xpose.msra.mxu0 0.0
      %895 = vmatprep.subr.mxu0 0.0
      %896 = vmatpush1.xpose.msra.mxu0 0.0
      %897 = vmatprep.subr.mxu0 0.0
      %898 = vmatpush1.xpose.msra.mxu0 0.0
      %899 = vmatprep.subr.mxu0 0.0
      %900 = vmatpush1.xpose.msra.mxu0 0.0
      %901 = vmatprep.subr.mxu0 0.0
      %902 = vmatpush1.xpose.msra.mxu0 0.0
      %903 = vmatprep.mubr.f32.mxu0 0.0
      %904 = vmatmul.mubr.f32.gmra.mrb[0].mxu0 %v786
      %v905 = vpop.f32.mrb[0].mxu0
      %v906 = vadd.f32 %v775, %v905
      %v907 = vpop.f32.mrb[0].mxu0
      %908 = vmatprep.mubr.f32.mxu0 0.0
      %909 = vmatmul.mubr.f32.gmra.mrb[0].mxu0 %v789
      %v910 = vpop.f32.mrb[0].mxu0
      %v911 = vadd.f32 %v776, %v910
      %v912 = vpop.f32.mrb[0].mxu0
      %913 = vmatprep.mubr.f32.mxu0 0.0
      %914 = vmatmul.mubr.f32.gmra.mrb[0].mxu0 %v792
      %v915 = vpop.f32.mrb[0].mxu0
      %v916 = vadd.f32 %v777, %v915
      %v917 = vpop.f32.mrb[0].mxu0
      %918 = vmatprep.mubr.f32.mxu0 0.0
      %919 = vmatmul.mubr.f32.gmra.mrb[0].mxu0 %v795
      %v920 = vpop.f32.mrb[0].mxu0
      %v921 = vadd.f32 %v778, %v920
      %v922 = vpop.f32.mrb[0].mxu0
      %923 = vmatprep.mubr.f32.mxu0 0.0
      %924 = vmatmul.mubr.f32.gmra.mrb[0].mxu0 %v798
      %v925 = vpop.f32.mrb[0].mxu0
      %v926 = vadd.f32 %v779, %v925
      %v927 = vpop.f32.mrb[0].mxu0
      %928 = vmatprep.mubr.f32.mxu0 0.0
      %929 = vmatmul.mubr.f32.gmra.mrb[0].mxu0 %v801
      %v930 = vpop.f32.mrb[0].mxu0
      %v931 = vadd.f32 %v780, %v930
      %v932 = vpop.f32.mrb[0].mxu0
      %933 = vmatprep.mubr.f32.mxu0 0.0
      %934 = vmatmul.mubr.f32.gmra.mrb[0].mxu0 %v804
      %v935 = vpop.f32.mrb[0].mxu0
      %v936 = vadd.f32 %v781, %v935
      %v937 = vpop.f32.mrb[0].mxu0
      %938 = vmatprep.mubr.f32.mxu0 0.0
      %939 = vmatmul.mubr.f32.gmra.mrb[0].mxu0 %v807
      %v940 = vpop.f32.mrb[0].mxu0
      %v941 = vadd.f32 %v782, %v940
      %v942 = vpop.f32.mrb[0].mxu0
      %943 = vmatprep.mubr.f32.mxu0 0.0
      %944 = vmatmul.mubr.f32.gmra.mrb[0].mxu0 %v810
      %v945 = vpop.f32.mrb[0].mxu0
      %v946 = vadd.f32 %v783, %v945
      %v947 = vpop.f32.mrb[0].mxu0
      %948 = vdwg.mxu0
      %vm949 = vcmask 588800
      %v950 = vsel %vm949, %v906, -inf
      %951 = vmax.xlane.f32.xlu0 %v950
      %v952 = vpop.xlane.xlu0 %951
      %v953 = vsel %vm949, %v911, -inf
      %954 = vmax.xlane.f32.xlu0 %v953
      %v955 = vpop.xlane.xlu0 %954
      %v956 = vsel %vm949, %v916, -inf
      %957 = vmax.xlane.f32.xlu0 %v956
      %v958 = vpop.xlane.xlu0 %957
      %v959 = vsel %vm949, %v921, -inf
      %960 = vmax.xlane.f32.xlu0 %v959
      %v961 = vpop.xlane.xlu0 %960
      %v962 = vsel %vm949, %v926, -inf
      %963 = vmax.xlane.f32.xlu0 %v962
      %v964 = vpop.xlane.xlu0 %963
      %v965 = vsel %vm949, %v931, -inf
      %966 = vmax.xlane.f32.xlu0 %v965
      %v967 = vpop.xlane.xlu0 %966
      %v968 = vsel %vm949, %v936, -inf
      %969 = vmax.xlane.f32.xlu0 %v968
      %v970 = vpop.xlane.xlu0 %969
      %v971 = vsel %vm949, %v941, -inf
      %972 = vmax.xlane.f32.xlu0 %v971
      %v973 = vpop.xlane.xlu0 %972
      %v974 = vsel %vm949, %v946, -inf
      %975 = vmax.xlane.f32.xlu0 %v974
      %v976 = vpop.xlane.xlu0 %975
      %v977 = vsub.f32 %v906, %v952
      %v978 = vsub.f32 %v911, %v955
      %v979 = vsub.f32 %v916, %v958
      %v980 = vsub.f32 %v921, %v961
      %v981 = vsub.f32 %v926, %v964
      %v982 = vsub.f32 %v931, %v967
      %v983 = vsub.f32 %v936, %v970
      %v984 = vsub.f32 %v941, %v973
      %v985 = vsub.f32 %v946, %v976
      %v986 = vmul.f32 %v977, 1.442695
      %v987 = vpow.pop %v986
      %v988 = vmul.f32 %v978, 1.442695
      %v989 = vpow.pop %v988
      %v990 = vmul.f32 %v979, 1.442695
      %v991 = vpow.pop %v990
      %v992 = vmul.f32 %v980, 1.442695
      %v993 = vpow.pop %v992
      %v994 = vmul.f32 %v981, 1.442695
      %v995 = vpow.pop %v994
      %v996 = vmul.f32 %v982, 1.442695
      %v997 = vpow.pop %v996
      %v998 = vmul.f32 %v983, 1.442695
      %v999 = vpow.pop %v998
      %v1000 = vmul.f32 %v984, 1.442695
      %v1001 = vpow.pop %v1000
      %v1002 = vmul.f32 %v985, 1.442695
      %v1003 = vpow.pop %v1002
      %v1004 = vsel %vm949, %v987, 0.0
      %1005 = vadd.xlane.f32.xlu0 %v1004
      %v1006 = vpop.xlane.xlu0 %1005
      %v1007 = vsel %vm949, %v989, 0.0
      %1008 = vadd.xlane.f32.xlu0 %v1007
      %v1009 = vpop.xlane.xlu0 %1008
      %v1010 = vsel %vm949, %v991, 0.0
      %1011 = vadd.xlane.f32.xlu0 %v1010
      %v1012 = vpop.xlane.xlu0 %1011
      %v1013 = vsel %vm949, %v993, 0.0
      %1014 = vadd.xlane.f32.xlu0 %v1013
      %v1015 = vpop.xlane.xlu0 %1014
      %v1016 = vsel %vm949, %v995, 0.0
      %1017 = vadd.xlane.f32.xlu0 %v1016
      %v1018 = vpop.xlane.xlu0 %1017
      %v1019 = vsel %vm949, %v997, 0.0
      %1020 = vadd.xlane.f32.xlu0 %v1019
      %v1021 = vpop.xlane.xlu0 %1020
      %v1022 = vsel %vm949, %v999, 0.0
      %1023 = vadd.xlane.f32.xlu0 %v1022
      %v1024 = vpop.xlane.xlu0 %1023
      %v1025 = vsel %vm949, %v1001, 0.0
      %1026 = vadd.xlane.f32.xlu0 %v1025
      %v1027 = vpop.xlane.xlu0 %1026
      %v1028 = vsel %vm949, %v1003, 0.0
      %1029 = vadd.xlane.f32.xlu0 %v1028
      %v1030 = vpop.xlane.xlu0 %1029
      %v1031 = vrcp.pop %v1006
      %v1032 = vrcp.pop %v1009
      %v1033 = vrcp.pop %v1012
      %v1034 = vrcp.pop %v1015
      %v1035 = vrcp.pop %v1018
      %v1036 = vrcp.pop %v1021
      %v1037 = vrcp.pop %v1024
      %v1038 = vrcp.pop %v1027
      %v1039 = vrcp.pop %v1030
      %v1040 = vmul.f32 %v987, %v1031
      %v1041 = vmul.f32 %v989, %v1032
      %v1042 = vmul.f32 %v991, %v1033
      %v1043 = vmul.f32 %v993, %v1034
      %v1044 = vmul.f32 %v995, %v1035
      %v1045 = vmul.f32 %v997, %v1036
      %v1046 = vmul.f32 %v999, %v1037
      %v1047 = vmul.f32 %v1001, %v1038
      %v1048 = vmul.f32 %v1003, %v1039
      %v1050 = vsel %vm949, %v1040, 0
      %v1053 = vsel %vm949, %v1041, 0
      %v1056 = vsel %vm949, %v1042, 0
      %v1059 = vsel %vm949, %v1043, 0
      %v1062 = vsel %vm949, %v1044, 0
      %v1065 = vsel %vm949, %v1045, 0
      %v1068 = vsel %vm949, %v1046, 0
      %v1071 = vsel %vm949, %v1047, 0
      %v1074 = vsel %vm949, %v1048, 0
      %1076 = vmatprep.subr.mxu0 0.0
      %1077 = vmatpush1.msra.mxu0 %v732
      %1078 = vmatprep.subr.mxu0 0.0
      %1079 = vmatpush1.msra.mxu0 %v737
      %1080 = vmatprep.subr.mxu0 0.0
      %1081 = vmatpush1.msra.mxu0 %v742
      %1082 = vmatprep.subr.mxu0 0.0
      %1083 = vmatpush1.msra.mxu0 %v747
      %1084 = vmatprep.subr.mxu0 0.0
      %1085 = vmatpush1.msra.mxu0 %v752
      %1086 = vmatprep.subr.mxu0 0.0
      %1087 = vmatpush1.msra.mxu0 %v757
      %1088 = vmatprep.subr.mxu0 0.0
      %1089 = vmatpush1.msra.mxu0 %v762
      %1090 = vmatprep.subr.mxu0 0.0
      %1091 = vmatpush1.msra.mxu0 %v767
      %1092 = vmatprep.subr.mxu0 0.0
      %1093 = vmatpush1.msra.mxu0 %v772
      %1094 = vmatprep.subr.mxu0 0.0
      %1095 = vmatpush1.msra.mxu0 0.0
      %1096 = vmatprep.subr.mxu0 0.0
      %1097 = vmatpush1.msra.mxu0 0.0
      %1098 = vmatprep.subr.mxu0 0.0
      %1099 = vmatpush1.msra.mxu0 0.0
      %1100 = vmatprep.subr.mxu0 0.0
      %1101 = vmatpush1.msra.mxu0 0.0
      %1102 = vmatprep.subr.mxu0 0.0
      %1103 = vmatpush1.msra.mxu0 0.0
      %1104 = vmatprep.subr.mxu0 0.0
      %1105 = vmatpush1.msra.mxu0 0.0
      %1106 = vmatprep.subr.mxu0 0.0
      %1107 = vmatpush1.msra.mxu0 0.0
      %1108 = vmatprep.subr.mxu0 0.0
      %1109 = vmatpush1.msra.mxu0 0.0
      %1110 = vmatprep.subr.mxu0 0.0
      %1111 = vmatpush1.msra.mxu0 0.0
      %1112 = vmatprep.subr.mxu0 0.0
      %1113 = vmatpush1.msra.mxu0 0.0
      %1114 = vmatprep.subr.mxu0 0.0
      %1115 = vmatpush1.msra.mxu0 0.0
      %1116 = vmatprep.subr.mxu0 0.0
      %1117 = vmatpush1.msra.mxu0 0.0
      %1118 = vmatprep.subr.mxu0 0.0
      %1119 = vmatpush1.msra.mxu0 0.0
      %1120 = vmatprep.subr.mxu0 0.0
      %1121 = vmatpush1.msra.mxu0 0.0
      %1122 = vmatprep.subr.mxu0 0.0
      %1123 = vmatpush1.msra.mxu0 0.0
      %1124 = vmatprep.subr.mxu0 0.0
      %1125 = vmatpush1.msra.mxu0 0.0
      %1126 = vmatprep.subr.mxu0 0.0
      %1127 = vmatpush1.msra.mxu0 0.0
      %1128 = vmatprep.subr.mxu0 0.0
      %1129 = vmatpush1.msra.mxu0 0.0
      %1130 = vmatprep.subr.mxu0 0.0
      %1131 = vmatpush1.msra.mxu0 0.0
      %1132 = vmatprep.subr.mxu0 0.0
      %1133 = vmatpush1.msra.mxu0 0.0
      %1134 = vmatprep.subr.mxu0 0.0
      %1135 = vmatpush1.msra.mxu0 0.0
      %1136 = vmatprep.subr.mxu0 0.0
      %1137 = vmatpush1.msra.mxu0 0.0
      %1138 = vmatprep.subr.mxu0 0.0
      %1139 = vmatpush1.msra.mxu0 0.0
      %1140 = vmatprep.mubr.f32.mxu0 0.0
      %1141 = vmatmul.mubr.f32.gmra.mrb[0].mxu0 %v1050
      %v1142 = vpop.f32.mrb[0].mxu0
      %v1143 = vadd.f32 0.0, %v1142
      %v1144 = vpop.f32.mrb[0].mxu0
      %1145 = vmatprep.mubr.f32.mxu0 0.0
      %1146 = vmatmul.mubr.f32.gmra.mrb[0].mxu0 %v1053
      %v1147 = vpop.f32.mrb[0].mxu0
      %v1148 = vadd.f32 0.0, %v1147
      %v1149 = vpop.f32.mrb[0].mxu0
      %1150 = vmatprep.mubr.f32.mxu0 0.0
      %1151 = vmatmul.mubr.f32.gmra.mrb[0].mxu0 %v1056
      %v1152 = vpop.f32.mrb[0].mxu0
      %v1153 = vadd.f32 0.0, %v1152
      %v1154 = vpop.f32.mrb[0].mxu0
      %1155 = vmatprep.mubr.f32.mxu0 0.0
      %1156 = vmatmul.mubr.f32.gmra.mrb[0].mxu0 %v1059
      %v1157 = vpop.f32.mrb[0].mxu0
      %v1158 = vadd.f32 0.0, %v1157
      %v1159 = vpop.f32.mrb[0].mxu0
      %1160 = vmatprep.mubr.f32.mxu0 0.0
      %1161 = vmatmul.mubr.f32.gmra.mrb[0].mxu0 %v1062
      %v1162 = vpop.f32.mrb[0].mxu0
      %v1163 = vadd.f32 0.0, %v1162
      %v1164 = vpop.f32.mrb[0].mxu0
      %1165 = vmatprep.mubr.f32.mxu0 0.0
      %1166 = vmatmul.mubr.f32.gmra.mrb[0].mxu0 %v1065
      %v1167 = vpop.f32.mrb[0].mxu0
      %v1168 = vadd.f32 0.0, %v1167
      %v1169 = vpop.f32.mrb[0].mxu0
      %1170 = vmatprep.mubr.f32.mxu0 0.0
      %1171 = vmatmul.mubr.f32.gmra.mrb[0].mxu0 %v1068
      %v1172 = vpop.f32.mrb[0].mxu0
      %v1173 = vadd.f32 0.0, %v1172
      %v1174 = vpop.f32.mrb[0].mxu0
      %1175 = vmatprep.mubr.f32.mxu0 0.0
      %1176 = vmatmul.mubr.f32.gmra.mrb[0].mxu0 %v1071
      %v1177 = vpop.f32.mrb[0].mxu0
      %v1178 = vadd.f32 0.0, %v1177
      %v1179 = vpop.f32.mrb[0].mxu0
      %1180 = vmatprep.mubr.f32.mxu0 0.0
      %1181 = vmatmul.mubr.f32.gmra.mrb[0].mxu0 %v1074
      %v1182 = vpop.f32.mrb[0].mxu0
      %v1183 = vadd.f32 0.0, %v1182
      %v1184 = vpop.f32.mrb[0].mxu0
      %1185 = vdwg.mxu0
      %v1186 = vld [vmem:[%s8] sm:$0xff]
      %v1187 = vld [vmem:[%s8 + $0x8] sm:$0xff]
      %v1188 = vld [vmem:[%s8 + $0x10] sm:$0xff]
      %v1189 = vld [vmem:[%s8 + $0x18] sm:$0xff]
      %s1190 = scalar_lea.vmem %s1, 64
      %v1191 = vld [vmem:[%s1190] sm:$0xff]
      %v1192 = vld [vmem:[%s1190 + $0x8] sm:$0xff]
      %v1193 = vld [vmem:[%s1190 + $0x10] sm:$0xff]
      %v1194 = vld [vmem:[%s1190 + $0x18] sm:$0xff]
      %v1195 = vld [vmem:[%s1190 + $0x20] sm:$0xff]
      %v1196 = vld [vmem:[%s1190 + $0x28] sm:$0xff]
      %v1197 = vld [vmem:[%s1190 + $0x30] sm:$0xff]
      %v1198 = vld [vmem:[%s1190 + $0x38] sm:$0xff]
      %s1199 = scalar_lea.vmem %s4, 1
      %v1200 = vld [vmem:[%s1199] sm:$0x1]
      %v1202 = vlaneseq
      %v1203 = vshrl.u32 %v1202, 7
      %v1204 = vsub.s32 0, %v1203
      %v1205 = vrot.slane %v1200, %v1204
      %1207 = vmatprep.subr.mxu0 0.0
      %1208 = vmatpush1.msra.mxu0 %v1191
      %1209 = vmatprep.subr.mxu0 0.0
      %1210 = vmatpush1.msra.mxu0 %v1192
      %1211 = vmatprep.subr.mxu0 0.0
      %1212 = vmatpush1.msra.mxu0 %v1193
      %1213 = vmatprep.subr.mxu0 0.0
      %1214 = vmatpush1.msra.mxu0 %v1194
      %1215 = vmatprep.subr.mxu0 0.0
      %1216 = vmatpush1.msra.mxu0 %v1195
      %1217 = vmatprep.subr.mxu0 0.0
      %1218 = vmatpush1.msra.mxu0 %v1196
      %1219 = vmatprep.subr.mxu0 0.0
      %1220 = vmatpush1.msra.mxu0 %v1197
      %1221 = vmatprep.subr.mxu0 0.0
      %1222 = vmatpush1.msra.mxu0 %v1198
      %1223 = vmatprep.subr.mxu0 0.0
      %1224 = vmatpush1.msra.mxu0 0.0
      %1225 = vmatprep.subr.mxu0 0.0
      %1226 = vmatpush1.msra.mxu0 0.0
      %1227 = vmatprep.subr.mxu0 0.0
      %1228 = vmatpush1.msra.mxu0 0.0
      %1229 = vmatprep.subr.mxu0 0.0
      %1230 = vmatpush1.msra.mxu0 0.0
      %1231 = vmatprep.subr.mxu0 0.0
      %1232 = vmatpush1.msra.mxu0 0.0
      %1233 = vmatprep.subr.mxu0 0.0
      %1234 = vmatpush1.msra.mxu0 0.0
      %1235 = vmatprep.subr.mxu0 0.0
      %1236 = vmatpush1.msra.mxu0 0.0
      %1237 = vmatprep.subr.mxu0 0.0
      %1238 = vmatpush1.msra.mxu0 0.0
      %1239 = vmatprep.subr.mxu0 0.0
      %1240 = vmatpush1.msra.mxu0 0.0
      %1241 = vmatprep.subr.mxu0 0.0
      %1242 = vmatpush1.msra.mxu0 0.0
      %1243 = vmatprep.subr.mxu0 0.0
      %1244 = vmatpush1.msra.mxu0 0.0
      %1245 = vmatprep.subr.mxu0 0.0
      %1246 = vmatpush1.msra.mxu0 0.0
      %1247 = vmatprep.subr.mxu0 0.0
      %1248 = vmatpush1.msra.mxu0 0.0
      %1249 = vmatprep.subr.mxu0 0.0
      %1250 = vmatpush1.msra.mxu0 0.0
      %1251 = vmatprep.subr.mxu0 0.0
      %1252 = vmatpush1.msra.mxu0 0.0
      %1253 = vmatprep.subr.mxu0 0.0
      %1254 = vmatpush1.msra.mxu0 0.0
      %1255 = vmatprep.subr.mxu0 0.0
      %1256 = vmatpush1.msra.mxu0 0.0
      %1257 = vmatprep.subr.mxu0 0.0
      %1258 = vmatpush1.msra.mxu0 0.0
      %1259 = vmatprep.subr.mxu0 0.0
      %1260 = vmatpush1.msra.mxu0 0.0
      %1261 = vmatprep.subr.mxu0 0.0
      %1262 = vmatpush1.msra.mxu0 0.0
      %1263 = vmatprep.subr.mxu0 0.0
      %1264 = vmatpush1.msra.mxu0 0.0
      %1265 = vmatprep.subr.mxu0 0.0
      %1266 = vmatpush1.msra.mxu0 0.0
      %1267 = vmatprep.subr.mxu0 0.0
      %1268 = vmatpush1.msra.mxu0 0.0
      %1269 = vmatprep.subr.mxu0 0.0
      %1270 = vmatpush1.msra.mxu0 0.0
      %1271 = vmatprep.mubr.f32.mxu0 0.0
      %1272 = vmatmul.mubr.f32.gmra.mrb[0].mxu0 %v389
      %v1273 = vpop.f32.mrb[0].mxu0
      %v1274 = vadd.f32 %v1205, %v1273
      %v1275 = vpop.f32.mrb[0].mxu0
      %1276 = vmatprep.mubr.f32.mxu0 0.0
      %1277 = vmatmul.mubr.f32.gmra.mrb[0].mxu0 %v392
      %v1278 = vpop.f32.mrb[0].mxu0
      %v1279 = vadd.f32 %v1205, %v1278
      %v1280 = vpop.f32.mrb[0].mxu0
      %1281 = vmatprep.mubr.f32.mxu0 0.0
      %1282 = vmatmul.mubr.f32.gmra.mrb[0].mxu0 %v395
      %v1283 = vpop.f32.mrb[0].mxu0
      %v1284 = vadd.f32 %v1205, %v1283
      %v1285 = vpop.f32.mrb[0].mxu0
      %1286 = vmatprep.mubr.f32.mxu0 0.0
      %1287 = vmatmul.mubr.f32.gmra.mrb[0].mxu0 %v398
      %v1288 = vpop.f32.mrb[0].mxu0
      %v1289 = vadd.f32 %v1205, %v1288
      %v1290 = vpop.f32.mrb[0].mxu0
      %1291 = vmatprep.mubr.f32.mxu0 0.0
      %1292 = vmatmul.mubr.f32.gmra.mrb[0].mxu0 %v401
      %v1293 = vpop.f32.mrb[0].mxu0
      %v1294 = vadd.f32 %v1205, %v1293
      %v1295 = vpop.f32.mrb[0].mxu0
      %1296 = vmatprep.mubr.f32.mxu0 0.0
      %1297 = vmatmul.mubr.f32.gmra.mrb[0].mxu0 %v404
      %v1298 = vpop.f32.mrb[0].mxu0
      %v1299 = vadd.f32 %v1205, %v1298
      %v1300 = vpop.f32.mrb[0].mxu0
      %1301 = vmatprep.mubr.f32.mxu0 0.0
      %1302 = vmatmul.mubr.f32.gmra.mrb[0].mxu0 %v407
      %v1303 = vpop.f32.mrb[0].mxu0
      %v1304 = vadd.f32 %v1205, %v1303
      %v1305 = vpop.f32.mrb[0].mxu0
      %1306 = vmatprep.mubr.f32.mxu0 0.0
      %1307 = vmatmul.mubr.f32.gmra.mrb[0].mxu0 %v410
      %v1308 = vpop.f32.mrb[0].mxu0
      %v1309 = vadd.f32 %v1205, %v1308
      %v1310 = vpop.f32.mrb[0].mxu0
      %1311 = vmatprep.mubr.f32.mxu0 0.0
      %1312 = vmatmul.mubr.f32.gmra.mrb[0].mxu0 %v413
      %v1313 = vpop.f32.mrb[0].mxu0
      %v1314 = vadd.f32 %v1205, %v1313
      %v1315 = vpop.f32.mrb[0].mxu0
      %1316 = vdwg.mxu0
      %s1317 = scalar_lea.vmem %s2, 64
      %v1318 = vld [vmem:[%s1317] sm:$0xff]
      %v1319 = vld [vmem:[%s1317 + $0x8] sm:$0xff]
      %v1320 = vld [vmem:[%s1317 + $0x10] sm:$0xff]
      %v1321 = vld [vmem:[%s1317 + $0x18] sm:$0xff]
      %v1322 = vld [vmem:[%s1317 + $0x20] sm:$0xff]
      %v1323 = vld [vmem:[%s1317 + $0x28] sm:$0xff]
      %v1324 = vld [vmem:[%s1317 + $0x30] sm:$0xff]
      %v1325 = vld [vmem:[%s1317 + $0x38] sm:$0xff]
      %s1326 = scalar_lea.vmem %s5, 1
      %v1327 = vld [vmem:[%s1326] sm:$0x1]
      %v1329 = vlaneseq
      %v1330 = vshrl.u32 %v1329, 7
      %v1331 = vsub.s32 0, %v1330
      %v1332 = vrot.slane %v1327, %v1331
      %1334 = vmatprep.subr.mxu0 0.0
      %1335 = vmatpush1.msra.mxu0 %v1318
      %1336 = vmatprep.subr.mxu0 0.0
      %1337 = vmatpush1.msra.mxu0 %v1319
      %1338 = vmatprep.subr.mxu0 0.0
      %1339 = vmatpush1.msra.mxu0 %v1320
      %1340 = vmatprep.subr.mxu0 0.0
      %1341 = vmatpush1.msra.mxu0 %v1321
      %1342 = vmatprep.subr.mxu0 0.0
      %1343 = vmatpush1.msra.mxu0 %v1322
      %1344 = vmatprep.subr.mxu0 0.0
      %1345 = vmatpush1.msra.mxu0 %v1323
      %1346 = vmatprep.subr.mxu0 0.0
      %1347 = vmatpush1.msra.mxu0 %v1324
      %1348 = vmatprep.subr.mxu0 0.0
      %1349 = vmatpush1.msra.mxu0 %v1325
      %1350 = vmatprep.subr.mxu0 0.0
      %1351 = vmatpush1.msra.mxu0 0.0
      %1352 = vmatprep.subr.mxu0 0.0
      %1353 = vmatpush1.msra.mxu0 0.0
      %1354 = vmatprep.subr.mxu0 0.0
      %1355 = vmatpush1.msra.mxu0 0.0
      %1356 = vmatprep.subr.mxu0 0.0
      %1357 = vmatpush1.msra.mxu0 0.0
      %1358 = vmatprep.subr.mxu0 0.0
      %1359 = vmatpush1.msra.mxu0 0.0
      %1360 = vmatprep.subr.mxu0 0.0
      %1361 = vmatpush1.msra.mxu0 0.0
      %1362 = vmatprep.subr.mxu0 0.0
      %1363 = vmatpush1.msra.mxu0 0.0
      %1364 = vmatprep.subr.mxu0 0.0
      %1365 = vmatpush1.msra.mxu0 0.0
      %1366 = vmatprep.subr.mxu0 0.0
      %1367 = vmatpush1.msra.mxu0 0.0
      %1368 = vmatprep.subr.mxu0 0.0
      %1369 = vmatpush1.msra.mxu0 0.0
      %1370 = vmatprep.subr.mxu0 0.0
      %1371 = vmatpush1.msra.mxu0 0.0
      %1372 = vmatprep.subr.mxu0 0.0
      %1373 = vmatpush1.msra.mxu0 0.0
      %1374 = vmatprep.subr.mxu0 0.0
      %1375 = vmatpush1.msra.mxu0 0.0
      %1376 = vmatprep.subr.mxu0 0.0
      %1377 = vmatpush1.msra.mxu0 0.0
      %1378 = vmatprep.subr.mxu0 0.0
      %1379 = vmatpush1.msra.mxu0 0.0
      %1380 = vmatprep.subr.mxu0 0.0
      %1381 = vmatpush1.msra.mxu0 0.0
      %1382 = vmatprep.subr.mxu0 0.0
      %1383 = vmatpush1.msra.mxu0 0.0
      %1384 = vmatprep.subr.mxu0 0.0
      %1385 = vmatpush1.msra.mxu0 0.0
      %1386 = vmatprep.subr.mxu0 0.0
      %1387 = vmatpush1.msra.mxu0 0.0
      %1388 = vmatprep.subr.mxu0 0.0
      %1389 = vmatpush1.msra.mxu0 0.0
      %1390 = vmatprep.subr.mxu0 0.0
      %1391 = vmatpush1.msra.mxu0 0.0
      %1392 = vmatprep.subr.mxu0 0.0
      %1393 = vmatpush1.msra.mxu0 0.0
      %1394 = vmatprep.subr.mxu0 0.0
      %1395 = vmatpush1.msra.mxu0 0.0
      %1396 = vmatprep.subr.mxu0 0.0
      %1397 = vmatpush1.msra.mxu0 0.0
      %1398 = vmatprep.mubr.f32.mxu0 0.0
      %1399 = vmatmul.mubr.f32.gmra.mrb[0].mxu0 %v389
      %v1400 = vpop.f32.mrb[0].mxu0
      %v1401 = vadd.f32 %v1332, %v1400
      %v1402 = vpop.f32.mrb[0].mxu0
      %1403 = vmatprep.mubr.f32.mxu0 0.0
      %1404 = vmatmul.mubr.f32.gmra.mrb[0].mxu0 %v392
      %v1405 = vpop.f32.mrb[0].mxu0
      %v1406 = vadd.f32 %v1332, %v1405
      %v1407 = vpop.f32.mrb[0].mxu0
      %1408 = vmatprep.mubr.f32.mxu0 0.0
      %1409 = vmatmul.mubr.f32.gmra.mrb[0].mxu0 %v395
      %v1410 = vpop.f32.mrb[0].mxu0
      %v1411 = vadd.f32 %v1332, %v1410
      %v1412 = vpop.f32.mrb[0].mxu0
      %1413 = vmatprep.mubr.f32.mxu0 0.0
      %1414 = vmatmul.mubr.f32.gmra.mrb[0].mxu0 %v398
      %v1415 = vpop.f32.mrb[0].mxu0
      %v1416 = vadd.f32 %v1332, %v1415
      %v1417 = vpop.f32.mrb[0].mxu0
      %1418 = vmatprep.mubr.f32.mxu0 0.0
      %1419 = vmatmul.mubr.f32.gmra.mrb[0].mxu0 %v401
      %v1420 = vpop.f32.mrb[0].mxu0
      %v1421 = vadd.f32 %v1332, %v1420
      %v1422 = vpop.f32.mrb[0].mxu0
      %1423 = vmatprep.mubr.f32.mxu0 0.0
      %1424 = vmatmul.mubr.f32.gmra.mrb[0].mxu0 %v404
      %v1425 = vpop.f32.mrb[0].mxu0
      %v1426 = vadd.f32 %v1332, %v1425
      %v1427 = vpop.f32.mrb[0].mxu0
      %1428 = vmatprep.mubr.f32.mxu0 0.0
      %1429 = vmatmul.mubr.f32.gmra.mrb[0].mxu0 %v407
      %v1430 = vpop.f32.mrb[0].mxu0
      %v1431 = vadd.f32 %v1332, %v1430
      %v1432 = vpop.f32.mrb[0].mxu0
      %1433 = vmatprep.mubr.f32.mxu0 0.0
      %1434 = vmatmul.mubr.f32.gmra.mrb[0].mxu0 %v410
      %v1435 = vpop.f32.mrb[0].mxu0
      %v1436 = vadd.f32 %v1332, %v1435
      %v1437 = vpop.f32.mrb[0].mxu0
      %1438 = vmatprep.mubr.f32.mxu0 0.0
      %1439 = vmatmul.mubr.f32.gmra.mrb[0].mxu0 %v413
      %v1440 = vpop.f32.mrb[0].mxu0
      %v1441 = vadd.f32 %v1332, %v1440
      %v1442 = vpop.f32.mrb[0].mxu0
      %1443 = vdwg.mxu0
      %s1444 = scalar_lea.vmem %s3, 64
      %v1445 = vld [vmem:[%s1444] sm:$0xff]
      %v1446 = vld [vmem:[%s1444 + $0x8] sm:$0xff]
      %v1447 = vld [vmem:[%s1444 + $0x10] sm:$0xff]
      %v1448 = vld [vmem:[%s1444 + $0x18] sm:$0xff]
      %v1449 = vld [vmem:[%s1444 + $0x20] sm:$0xff]
      %v1450 = vld [vmem:[%s1444 + $0x28] sm:$0xff]
      %v1451 = vld [vmem:[%s1444 + $0x30] sm:$0xff]
      %v1452 = vld [vmem:[%s1444 + $0x38] sm:$0xff]
      %s1453 = scalar_lea.vmem %s6, 1
      %v1454 = vld [vmem:[%s1453] sm:$0x1]
      %v1456 = vlaneseq
      %v1457 = vshrl.u32 %v1456, 7
      %v1458 = vsub.s32 0, %v1457
      %v1459 = vrot.slane %v1454, %v1458
      %1461 = vmatprep.subr.mxu0 0.0
      %1462 = vmatpush1.msra.mxu0 %v1445
      %1463 = vmatprep.subr.mxu0 0.0
      %1464 = vmatpush1.msra.mxu0 %v1446
      %1465 = vmatprep.subr.mxu0 0.0
      %1466 = vmatpush1.msra.mxu0 %v1447
      %1467 = vmatprep.subr.mxu0 0.0
      %1468 = vmatpush1.msra.mxu0 %v1448
      %1469 = vmatprep.subr.mxu0 0.0
      %1470 = vmatpush1.msra.mxu0 %v1449
      %1471 = vmatprep.subr.mxu0 0.0
      %1472 = vmatpush1.msra.mxu0 %v1450
      %1473 = vmatprep.subr.mxu0 0.0
      %1474 = vmatpush1.msra.mxu0 %v1451
      %1475 = vmatprep.subr.mxu0 0.0
      %1476 = vmatpush1.msra.mxu0 %v1452
      %1477 = vmatprep.subr.mxu0 0.0
      %1478 = vmatpush1.msra.mxu0 0.0
      %1479 = vmatprep.subr.mxu0 0.0
      %1480 = vmatpush1.msra.mxu0 0.0
      %1481 = vmatprep.subr.mxu0 0.0
      %1482 = vmatpush1.msra.mxu0 0.0
      %1483 = vmatprep.subr.mxu0 0.0
      %1484 = vmatpush1.msra.mxu0 0.0
      %1485 = vmatprep.subr.mxu0 0.0
      %1486 = vmatpush1.msra.mxu0 0.0
      %1487 = vmatprep.subr.mxu0 0.0
      %1488 = vmatpush1.msra.mxu0 0.0
      %1489 = vmatprep.subr.mxu0 0.0
      %1490 = vmatpush1.msra.mxu0 0.0
      %1491 = vmatprep.subr.mxu0 0.0
      %1492 = vmatpush1.msra.mxu0 0.0
      %1493 = vmatprep.subr.mxu0 0.0
      %1494 = vmatpush1.msra.mxu0 0.0
      %1495 = vmatprep.subr.mxu0 0.0
      %1496 = vmatpush1.msra.mxu0 0.0
      %1497 = vmatprep.subr.mxu0 0.0
      %1498 = vmatpush1.msra.mxu0 0.0
      %1499 = vmatprep.subr.mxu0 0.0
      %1500 = vmatpush1.msra.mxu0 0.0
      %1501 = vmatprep.subr.mxu0 0.0
      %1502 = vmatpush1.msra.mxu0 0.0
      %1503 = vmatprep.subr.mxu0 0.0
      %1504 = vmatpush1.msra.mxu0 0.0
      %1505 = vmatprep.subr.mxu0 0.0
      %1506 = vmatpush1.msra.mxu0 0.0
      %1507 = vmatprep.subr.mxu0 0.0
      %1508 = vmatpush1.msra.mxu0 0.0
      %1509 = vmatprep.subr.mxu0 0.0
      %1510 = vmatpush1.msra.mxu0 0.0
      %1511 = vmatprep.subr.mxu0 0.0
      %1512 = vmatpush1.msra.mxu0 0.0
      %1513 = vmatprep.subr.mxu0 0.0
      %1514 = vmatpush1.msra.mxu0 0.0
      %1515 = vmatprep.subr.mxu0 0.0
      %1516 = vmatpush1.msra.mxu0 0.0
      %1517 = vmatprep.subr.mxu0 0.0
      %1518 = vmatpush1.msra.mxu0 0.0
      %1519 = vmatprep.subr.mxu0 0.0
      %1520 = vmatpush1.msra.mxu0 0.0
      %1521 = vmatprep.subr.mxu0 0.0
      %1522 = vmatpush1.msra.mxu0 0.0
      %1523 = vmatprep.subr.mxu0 0.0
      %1524 = vmatpush1.msra.mxu0 0.0
      %1525 = vmatprep.mubr.f32.mxu0 0.0
      %1526 = vmatmul.mubr.f32.gmra.mrb[0].mxu0 %v389
      %v1527 = vpop.f32.mrb[0].mxu0
      %v1528 = vadd.f32 %v1459, %v1527
      %v1529 = vpop.f32.mrb[0].mxu0
      %1530 = vmatprep.mubr.f32.mxu0 0.0
      %1531 = vmatmul.mubr.f32.gmra.mrb[0].mxu0 %v392
      %v1532 = vpop.f32.mrb[0].mxu0
      %v1533 = vadd.f32 %v1459, %v1532
      %v1534 = vpop.f32.mrb[0].mxu0
      %1535 = vmatprep.mubr.f32.mxu0 0.0
      %1536 = vmatmul.mubr.f32.gmra.mrb[0].mxu0 %v395
      %v1537 = vpop.f32.mrb[0].mxu0
      %v1538 = vadd.f32 %v1459, %v1537
      %v1539 = vpop.f32.mrb[0].mxu0
      %1540 = vmatprep.mubr.f32.mxu0 0.0
      %1541 = vmatmul.mubr.f32.gmra.mrb[0].mxu0 %v398
      %v1542 = vpop.f32.mrb[0].mxu0
      %v1543 = vadd.f32 %v1459, %v1542
      %v1544 = vpop.f32.mrb[0].mxu0
      %1545 = vmatprep.mubr.f32.mxu0 0.0
      %1546 = vmatmul.mubr.f32.gmra.mrb[0].mxu0 %v401
      %v1547 = vpop.f32.mrb[0].mxu0
      %v1548 = vadd.f32 %v1459, %v1547
      %v1549 = vpop.f32.mrb[0].mxu0
      %1550 = vmatprep.mubr.f32.mxu0 0.0
      %1551 = vmatmul.mubr.f32.gmra.mrb[0].mxu0 %v404
      %v1552 = vpop.f32.mrb[0].mxu0
      %v1553 = vadd.f32 %v1459, %v1552
      %v1554 = vpop.f32.mrb[0].mxu0
      %1555 = vmatprep.mubr.f32.mxu0 0.0
      %1556 = vmatmul.mubr.f32.gmra.mrb[0].mxu0 %v407
      %v1557 = vpop.f32.mrb[0].mxu0
      %v1558 = vadd.f32 %v1459, %v1557
      %v1559 = vpop.f32.mrb[0].mxu0
      %1560 = vmatprep.mubr.f32.mxu0 0.0
      %1561 = vmatmul.mubr.f32.gmra.mrb[0].mxu0 %v410
      %v1562 = vpop.f32.mrb[0].mxu0
      %v1563 = vadd.f32 %v1459, %v1562
      %v1564 = vpop.f32.mrb[0].mxu0
      %1565 = vmatprep.mubr.f32.mxu0 0.0
      %1566 = vmatmul.mubr.f32.gmra.mrb[0].mxu0 %v413
      %v1567 = vpop.f32.mrb[0].mxu0
      %v1568 = vadd.f32 %v1459, %v1567
      %v1569 = vpop.f32.mrb[0].mxu0
      %1570 = vdwg.mxu0
      %s1571 = scalar_lea.vmem %s7, 72
      %v1572 = vld [vmem:[%s1571] sm:$0xff]
      %v1573 = vld [vmem:[%s1571 + $0x8] sm:$0xff]
      %v1574 = vld [vmem:[%s1571 + $0x10] sm:$0xff]
      %v1575 = vld [vmem:[%s1571 + $0x18] sm:$0xff]
      %v1576 = vld [vmem:[%s1571 + $0x20] sm:$0xff]
      %v1577 = vld [vmem:[%s1571 + $0x28] sm:$0xff]
      %v1578 = vld [vmem:[%s1571 + $0x30] sm:$0xff]
      %v1579 = vld [vmem:[%s1571 + $0x38] sm:$0xff]
      %v1580 = vld [vmem:[%s1571 + $0x40] sm:$0xff]
      %v1582 = vsel %vm784, %v1274, 0
      %v1585 = vsel %vm784, %v1279, 0
      %v1588 = vsel %vm784, %v1284, 0
      %v1591 = vsel %vm784, %v1289, 0
      %v1594 = vsel %vm784, %v1294, 0
      %v1597 = vsel %vm784, %v1299, 0
      %v1600 = vsel %vm784, %v1304, 0
      %v1603 = vsel %vm784, %v1309, 0
      %v1606 = vsel %vm784, %v1314, 0
      %v1609 = vsel %vm784, %v1401, 0
      %v1612 = vsel %vm784, %v1406, 0
      %v1615 = vsel %vm784, %v1411, 0
      %v1618 = vsel %vm784, %v1416, 0
      %v1621 = vsel %vm784, %v1421, 0
      %v1624 = vsel %vm784, %v1426, 0
      %v1627 = vsel %vm784, %v1431, 0
      %v1630 = vsel %vm784, %v1436, 0
      %v1633 = vsel %vm784, %v1441, 0
      %1635 = vmatprep.subr.mxu0 0.0
      %1636 = vmatpush1.xpose.msra.mxu0 %v1609
      %1637 = vmatprep.subr.mxu0 0.0
      %1638 = vmatpush1.xpose.msra.mxu0 %v1612
      %1639 = vmatprep.subr.mxu0 0.0
      %1640 = vmatpush1.xpose.msra.mxu0 %v1615
      %1641 = vmatprep.subr.mxu0 0.0
      %1642 = vmatpush1.xpose.msra.mxu0 %v1618
      %1643 = vmatprep.subr.mxu0 0.0
      %1644 = vmatpush1.xpose.msra.mxu0 %v1621
      %1645 = vmatprep.subr.mxu0 0.0
      %1646 = vmatpush1.xpose.msra.mxu0 %v1624
      %1647 = vmatprep.subr.mxu0 0.0
      %1648 = vmatpush1.xpose.msra.mxu0 %v1627
      %1649 = vmatprep.subr.mxu0 0.0
      %1650 = vmatpush1.xpose.msra.mxu0 %v1630
      %1651 = vmatprep.subr.mxu0 0.0
      %1652 = vmatpush1.xpose.msra.mxu0 %v1633
      %1653 = vmatprep.subr.mxu0 0.0
      %1654 = vmatpush1.xpose.msra.mxu0 0.0
      %1655 = vmatprep.subr.mxu0 0.0
      %1656 = vmatpush1.xpose.msra.mxu0 0.0
      %1657 = vmatprep.subr.mxu0 0.0
      %1658 = vmatpush1.xpose.msra.mxu0 0.0
      %1659 = vmatprep.subr.mxu0 0.0
      %1660 = vmatpush1.xpose.msra.mxu0 0.0
      %1661 = vmatprep.subr.mxu0 0.0
      %1662 = vmatpush1.xpose.msra.mxu0 0.0
      %1663 = vmatprep.subr.mxu0 0.0
      %1664 = vmatpush1.xpose.msra.mxu0 0.0
      %1665 = vmatprep.subr.mxu0 0.0
      %1666 = vmatpush1.xpose.msra.mxu0 0.0
      %1667 = vmatprep.subr.mxu0 0.0
      %1668 = vmatpush1.xpose.msra.mxu0 0.0
      %1669 = vmatprep.subr.mxu0 0.0
      %1670 = vmatpush1.xpose.msra.mxu0 0.0
      %1671 = vmatprep.subr.mxu0 0.0
      %1672 = vmatpush1.xpose.msra.mxu0 0.0
      %1673 = vmatprep.subr.mxu0 0.0
      %1674 = vmatpush1.xpose.msra.mxu0 0.0
      %1675 = vmatprep.subr.mxu0 0.0
      %1676 = vmatpush1.xpose.msra.mxu0 0.0
      %1677 = vmatprep.subr.mxu0 0.0
      %1678 = vmatpush1.xpose.msra.mxu0 0.0
      %1679 = vmatprep.subr.mxu0 0.0
      %1680 = vmatpush1.xpose.msra.mxu0 0.0
      %1681 = vmatprep.subr.mxu0 0.0
      %1682 = vmatpush1.xpose.msra.mxu0 0.0
      %1683 = vmatprep.subr.mxu0 0.0
      %1684 = vmatpush1.xpose.msra.mxu0 0.0
      %1685 = vmatprep.subr.mxu0 0.0
      %1686 = vmatpush1.xpose.msra.mxu0 0.0
      %1687 = vmatprep.subr.mxu0 0.0
      %1688 = vmatpush1.xpose.msra.mxu0 0.0
      %1689 = vmatprep.subr.mxu0 0.0
      %1690 = vmatpush1.xpose.msra.mxu0 0.0
      %1691 = vmatprep.subr.mxu0 0.0
      %1692 = vmatpush1.xpose.msra.mxu0 0.0
      %1693 = vmatprep.subr.mxu0 0.0
      %1694 = vmatpush1.xpose.msra.mxu0 0.0
      %1695 = vmatprep.subr.mxu0 0.0
      %1696 = vmatpush1.xpose.msra.mxu0 0.0
      %1697 = vmatprep.subr.mxu0 0.0
      %1698 = vmatpush1.xpose.msra.mxu0 0.0
      %1699 = vmatprep.mubr.f32.mxu0 0.0
      %1700 = vmatmul.mubr.f32.gmra.mrb[0].mxu0 %v1582
      %v1701 = vpop.f32.mrb[0].mxu0
      %v1702 = vadd.f32 %v1572, %v1701
      %v1703 = vpop.f32.mrb[0].mxu0
      %1704 = vmatprep.mubr.f32.mxu0 0.0
      %1705 = vmatmul.mubr.f32.gmra.mrb[0].mxu0 %v1585
      %v1706 = vpop.f32.mrb[0].mxu0
      %v1707 = vadd.f32 %v1573, %v1706
      %v1708 = vpop.f32.mrb[0].mxu0
      %1709 = vmatprep.mubr.f32.mxu0 0.0
      %1710 = vmatmul.mubr.f32.gmra.mrb[0].mxu0 %v1588
      %v1711 = vpop.f32.mrb[0].mxu0
      %v1712 = vadd.f32 %v1574, %v1711
      %v1713 = vpop.f32.mrb[0].mxu0
      %1714 = vmatprep.mubr.f32.mxu0 0.0
      %1715 = vmatmul.mubr.f32.gmra.mrb[0].mxu0 %v1591
      %v1716 = vpop.f32.mrb[0].mxu0
      %v1717 = vadd.f32 %v1575, %v1716
      %v1718 = vpop.f32.mrb[0].mxu0
      %1719 = vmatprep.mubr.f32.mxu0 0.0
      %1720 = vmatmul.mubr.f32.gmra.mrb[0].mxu0 %v1594
      %v1721 = vpop.f32.mrb[0].mxu0
      %v1722 = vadd.f32 %v1576, %v1721
      %v1723 = vpop.f32.mrb[0].mxu0
      %1724 = vmatprep.mubr.f32.mxu0 0.0
      %1725 = vmatmul.mubr.f32.gmra.mrb[0].mxu0 %v1597
      %v1726 = vpop.f32.mrb[0].mxu0
      %v1727 = vadd.f32 %v1577, %v1726
      %v1728 = vpop.f32.mrb[0].mxu0
      %1729 = vmatprep.mubr.f32.mxu0 0.0
      %1730 = vmatmul.mubr.f32.gmra.mrb[0].mxu0 %v1600
      %v1731 = vpop.f32.mrb[0].mxu0
      %v1732 = vadd.f32 %v1578, %v1731
      %v1733 = vpop.f32.mrb[0].mxu0
      %1734 = vmatprep.mubr.f32.mxu0 0.0
      %1735 = vmatmul.mubr.f32.gmra.mrb[0].mxu0 %v1603
      %v1736 = vpop.f32.mrb[0].mxu0
      %v1737 = vadd.f32 %v1579, %v1736
      %v1738 = vpop.f32.mrb[0].mxu0
      %1739 = vmatprep.mubr.f32.mxu0 0.0
      %1740 = vmatmul.mubr.f32.gmra.mrb[0].mxu0 %v1606
      %v1741 = vpop.f32.mrb[0].mxu0
      %v1742 = vadd.f32 %v1580, %v1741
      %v1743 = vpop.f32.mrb[0].mxu0
      %1744 = vdwg.mxu0
      %v1745 = vsel %vm949, %v1702, -inf
      %1746 = vmax.xlane.f32.xlu0 %v1745
      %v1747 = vpop.xlane.xlu0 %1746
      %v1748 = vsel %vm949, %v1707, -inf
      %1749 = vmax.xlane.f32.xlu0 %v1748
      %v1750 = vpop.xlane.xlu0 %1749
      %v1751 = vsel %vm949, %v1712, -inf
      %1752 = vmax.xlane.f32.xlu0 %v1751
      %v1753 = vpop.xlane.xlu0 %1752
      %v1754 = vsel %vm949, %v1717, -inf
      %1755 = vmax.xlane.f32.xlu0 %v1754
      %v1756 = vpop.xlane.xlu0 %1755
      %v1757 = vsel %vm949, %v1722, -inf
      %1758 = vmax.xlane.f32.xlu0 %v1757
      %v1759 = vpop.xlane.xlu0 %1758
      %v1760 = vsel %vm949, %v1727, -inf
      %1761 = vmax.xlane.f32.xlu0 %v1760
      %v1762 = vpop.xlane.xlu0 %1761
      %v1763 = vsel %vm949, %v1732, -inf
      %1764 = vmax.xlane.f32.xlu0 %v1763
      %v1765 = vpop.xlane.xlu0 %1764
      %v1766 = vsel %vm949, %v1737, -inf
      %1767 = vmax.xlane.f32.xlu0 %v1766
      %v1768 = vpop.xlane.xlu0 %1767
      %v1769 = vsel %vm949, %v1742, -inf
      %1770 = vmax.xlane.f32.xlu0 %v1769
      %v1771 = vpop.xlane.xlu0 %1770
      %v1772 = vsub.f32 %v1702, %v1747
      %v1773 = vsub.f32 %v1707, %v1750
      %v1774 = vsub.f32 %v1712, %v1753
      %v1775 = vsub.f32 %v1717, %v1756
      %v1776 = vsub.f32 %v1722, %v1759
      %v1777 = vsub.f32 %v1727, %v1762
      %v1778 = vsub.f32 %v1732, %v1765
      %v1779 = vsub.f32 %v1737, %v1768
      %v1780 = vsub.f32 %v1742, %v1771
      %v1781 = vmul.f32 %v1772, 1.442695
      %v1782 = vpow.pop %v1781
      %v1783 = vmul.f32 %v1773, 1.442695
      %v1784 = vpow.pop %v1783
      %v1785 = vmul.f32 %v1774, 1.442695
      %v1786 = vpow.pop %v1785
      %v1787 = vmul.f32 %v1775, 1.442695
      %v1788 = vpow.pop %v1787
      %v1789 = vmul.f32 %v1776, 1.442695
      %v1790 = vpow.pop %v1789
      %v1791 = vmul.f32 %v1777, 1.442695
      %v1792 = vpow.pop %v1791
      %v1793 = vmul.f32 %v1778, 1.442695
      %v1794 = vpow.pop %v1793
      %v1795 = vmul.f32 %v1779, 1.442695
      %v1796 = vpow.pop %v1795
      %v1797 = vmul.f32 %v1780, 1.442695
      %v1798 = vpow.pop %v1797
      %v1799 = vsel %vm949, %v1782, 0.0
      %1800 = vadd.xlane.f32.xlu0 %v1799
      %v1801 = vpop.xlane.xlu0 %1800
      %v1802 = vsel %vm949, %v1784, 0.0
      %1803 = vadd.xlane.f32.xlu0 %v1802
      %v1804 = vpop.xlane.xlu0 %1803
      %v1805 = vsel %vm949, %v1786, 0.0
      %1806 = vadd.xlane.f32.xlu0 %v1805
      %v1807 = vpop.xlane.xlu0 %1806
      %v1808 = vsel %vm949, %v1788, 0.0
      %1809 = vadd.xlane.f32.xlu0 %v1808
      %v1810 = vpop.xlane.xlu0 %1809
      %v1811 = vsel %vm949, %v1790, 0.0
      %1812 = vadd.xlane.f32.xlu0 %v1811
      %v1813 = vpop.xlane.xlu0 %1812
      %v1814 = vsel %vm949, %v1792, 0.0
      %1815 = vadd.xlane.f32.xlu0 %v1814
      %v1816 = vpop.xlane.xlu0 %1815
      %v1817 = vsel %vm949, %v1794, 0.0
      %1818 = vadd.xlane.f32.xlu0 %v1817
      %v1819 = vpop.xlane.xlu0 %1818
      %v1820 = vsel %vm949, %v1796, 0.0
      %1821 = vadd.xlane.f32.xlu0 %v1820
      %v1822 = vpop.xlane.xlu0 %1821
      %v1823 = vsel %vm949, %v1798, 0.0
      %1824 = vadd.xlane.f32.xlu0 %v1823
      %v1825 = vpop.xlane.xlu0 %1824
      %v1826 = vrcp.pop %v1801
      %v1827 = vrcp.pop %v1804
      %v1828 = vrcp.pop %v1807
      %v1829 = vrcp.pop %v1810
      %v1830 = vrcp.pop %v1813
      %v1831 = vrcp.pop %v1816
      %v1832 = vrcp.pop %v1819
      %v1833 = vrcp.pop %v1822
      %v1834 = vrcp.pop %v1825
      %v1835 = vmul.f32 %v1782, %v1826
      %v1836 = vmul.f32 %v1784, %v1827
      %v1837 = vmul.f32 %v1786, %v1828
      %v1838 = vmul.f32 %v1788, %v1829
      %v1839 = vmul.f32 %v1790, %v1830
      %v1840 = vmul.f32 %v1792, %v1831
      %v1841 = vmul.f32 %v1794, %v1832
      %v1842 = vmul.f32 %v1796, %v1833
      %v1843 = vmul.f32 %v1798, %v1834
      %v1845 = vsel %vm949, %v1835, 0
      %v1848 = vsel %vm949, %v1836, 0
      %v1851 = vsel %vm949, %v1837, 0
      %v1854 = vsel %vm949, %v1838, 0
      %v1857 = vsel %vm949, %v1839, 0
      %v1860 = vsel %vm949, %v1840, 0
      %v1863 = vsel %vm949, %v1841, 0
      %v1866 = vsel %vm949, %v1842, 0
      %v1869 = vsel %vm949, %v1843, 0
      %1871 = vmatprep.subr.mxu0 0.0
      %1872 = vmatpush1.msra.mxu0 %v1528
      %1873 = vmatprep.subr.mxu0 0.0
      %1874 = vmatpush1.msra.mxu0 %v1533
      %1875 = vmatprep.subr.mxu0 0.0
      %1876 = vmatpush1.msra.mxu0 %v1538
      %1877 = vmatprep.subr.mxu0 0.0
      %1878 = vmatpush1.msra.mxu0 %v1543
      %1879 = vmatprep.subr.mxu0 0.0
      %1880 = vmatpush1.msra.mxu0 %v1548
      %1881 = vmatprep.subr.mxu0 0.0
      %1882 = vmatpush1.msra.mxu0 %v1553
      %1883 = vmatprep.subr.mxu0 0.0
      %1884 = vmatpush1.msra.mxu0 %v1558
      %1885 = vmatprep.subr.mxu0 0.0
      %1886 = vmatpush1.msra.mxu0 %v1563
      %1887 = vmatprep.subr.mxu0 0.0
      %1888 = vmatpush1.msra.mxu0 %v1568
      %1889 = vmatprep.subr.mxu0 0.0
      %1890 = vmatpush1.msra.mxu0 0.0
      %1891 = vmatprep.subr.mxu0 0.0
      %1892 = vmatpush1.msra.mxu0 0.0
      %1893 = vmatprep.subr.mxu0 0.0
      %1894 = vmatpush1.msra.mxu0 0.0
      %1895 = vmatprep.subr.mxu0 0.0
      %1896 = vmatpush1.msra.mxu0 0.0
      %1897 = vmatprep.subr.mxu0 0.0
      %1898 = vmatpush1.msra.mxu0 0.0
      %1899 = vmatprep.subr.mxu0 0.0
      %1900 = vmatpush1.msra.mxu0 0.0
      %1901 = vmatprep.subr.mxu0 0.0
      %1902 = vmatpush1.msra.mxu0 0.0
      %1903 = vmatprep.subr.mxu0 0.0
      %1904 = vmatpush1.msra.mxu0 0.0
      %1905 = vmatprep.subr.mxu0 0.0
      %1906 = vmatpush1.msra.mxu0 0.0
      %1907 = vmatprep.subr.mxu0 0.0
      %1908 = vmatpush1.msra.mxu0 0.0
      %1909 = vmatprep.subr.mxu0 0.0
      %1910 = vmatpush1.msra.mxu0 0.0
      %1911 = vmatprep.subr.mxu0 0.0
      %1912 = vmatpush1.msra.mxu0 0.0
      %1913 = vmatprep.subr.mxu0 0.0
      %1914 = vmatpush1.msra.mxu0 0.0
      %1915 = vmatprep.subr.mxu0 0.0
      %1916 = vmatpush1.msra.mxu0 0.0
      %1917 = vmatprep.subr.mxu0 0.0
      %1918 = vmatpush1.msra.mxu0 0.0
      %1919 = vmatprep.subr.mxu0 0.0
      %1920 = vmatpush1.msra.mxu0 0.0
      %1921 = vmatprep.subr.mxu0 0.0
      %1922 = vmatpush1.msra.mxu0 0.0
      %1923 = vmatprep.subr.mxu0 0.0
      %1924 = vmatpush1.msra.mxu0 0.0
      %1925 = vmatprep.subr.mxu0 0.0
      %1926 = vmatpush1.msra.mxu0 0.0
      %1927 = vmatprep.subr.mxu0 0.0
      %1928 = vmatpush1.msra.mxu0 0.0
      %1929 = vmatprep.subr.mxu0 0.0
      %1930 = vmatpush1.msra.mxu0 0.0
      %1931 = vmatprep.subr.mxu0 0.0
      %1932 = vmatpush1.msra.mxu0 0.0
      %1933 = vmatprep.subr.mxu0 0.0
      %1934 = vmatpush1.msra.mxu0 0.0
      %1935 = vmatprep.mubr.f32.mxu0 0.0
      %1936 = vmatmul.mubr.f32.gmra.mrb[0].mxu0 %v1845
      %v1937 = vpop.f32.mrb[0].mxu0
      %v1938 = vadd.f32 0.0, %v1937
      %v1939 = vpop.f32.mrb[0].mxu0
      %1940 = vmatprep.mubr.f32.mxu0 0.0
      %1941 = vmatmul.mubr.f32.gmra.mrb[0].mxu0 %v1848
      %v1942 = vpop.f32.mrb[0].mxu0
      %v1943 = vadd.f32 0.0, %v1942
      %v1944 = vpop.f32.mrb[0].mxu0
      %1945 = vmatprep.mubr.f32.mxu0 0.0
      %1946 = vmatmul.mubr.f32.gmra.mrb[0].mxu0 %v1851
      %v1947 = vpop.f32.mrb[0].mxu0
      %v1948 = vadd.f32 0.0, %v1947
      %v1949 = vpop.f32.mrb[0].mxu0
      %1950 = vmatprep.mubr.f32.mxu0 0.0
      %1951 = vmatmul.mubr.f32.gmra.mrb[0].mxu0 %v1854
      %v1952 = vpop.f32.mrb[0].mxu0
      %v1953 = vadd.f32 0.0, %v1952
      %v1954 = vpop.f32.mrb[0].mxu0
      %1955 = vmatprep.mubr.f32.mxu0 0.0
      %1956 = vmatmul.mubr.f32.gmra.mrb[0].mxu0 %v1857
      %v1957 = vpop.f32.mrb[0].mxu0
      %v1958 = vadd.f32 0.0, %v1957
      %v1959 = vpop.f32.mrb[0].mxu0
      %1960 = vmatprep.mubr.f32.mxu0 0.0
      %1961 = vmatmul.mubr.f32.gmra.mrb[0].mxu0 %v1860
      %v1962 = vpop.f32.mrb[0].mxu0
      %v1963 = vadd.f32 0.0, %v1962
      %v1964 = vpop.f32.mrb[0].mxu0
      %1965 = vmatprep.mubr.f32.mxu0 0.0
      %1966 = vmatmul.mubr.f32.gmra.mrb[0].mxu0 %v1863
      %v1967 = vpop.f32.mrb[0].mxu0
      %v1968 = vadd.f32 0.0, %v1967
      %v1969 = vpop.f32.mrb[0].mxu0
      %1970 = vmatprep.mubr.f32.mxu0 0.0
      %1971 = vmatmul.mubr.f32.gmra.mrb[0].mxu0 %v1866
      %v1972 = vpop.f32.mrb[0].mxu0
      %v1973 = vadd.f32 0.0, %v1972
      %v1974 = vpop.f32.mrb[0].mxu0
      %1975 = vmatprep.mubr.f32.mxu0 0.0
      %1976 = vmatmul.mubr.f32.gmra.mrb[0].mxu0 %v1869
      %v1977 = vpop.f32.mrb[0].mxu0
      %v1978 = vadd.f32 0.0, %v1977
      %v1979 = vpop.f32.mrb[0].mxu0
      %1980 = vdwg.mxu0
      %s1981 = scalar_lea.vmem %s8, 32
      %v1982 = vld [vmem:[%s1981] sm:$0xff]
      %v1983 = vld [vmem:[%s1981 + $0x8] sm:$0xff]
      %v1984 = vld [vmem:[%s1981 + $0x10] sm:$0xff]
      %v1985 = vld [vmem:[%s1981 + $0x18] sm:$0xff]
      %v1987 = vsel %vm784, %v1938, 0
      %v1990 = vsel %vm784, %v1943, 0
      %v1993 = vsel %vm784, %v1948, 0
      %v1996 = vsel %vm784, %v1953, 0
      %v1999 = vsel %vm784, %v1958, 0
      %v2002 = vsel %vm784, %v1963, 0
      %v2005 = vsel %vm784, %v1968, 0
      %v2008 = vsel %vm784, %v1973, 0
      %v2011 = vsel %vm784, %v1978, 0
      %2013 = vmatprep.subr.mxu0 0.0
      %2014 = vmatpush1.msra.mxu0 %v1982
      %2015 = vmatprep.subr.mxu0 0.0
      %2016 = vmatpush1.msra.mxu0 %v1983
      %2017 = vmatprep.subr.mxu0 0.0
      %2018 = vmatpush1.msra.mxu0 %v1984
      %2019 = vmatprep.subr.mxu0 0.0
      %2020 = vmatpush1.msra.mxu0 %v1985
      %2021 = vmatprep.subr.mxu0 0.0
      %2022 = vmatpush1.msra.mxu0 0.0
      %2023 = vmatprep.subr.mxu0 0.0
      %2024 = vmatpush1.msra.mxu0 0.0
      %2025 = vmatprep.subr.mxu0 0.0
      %2026 = vmatpush1.msra.mxu0 0.0
      %2027 = vmatprep.subr.mxu0 0.0
      %2028 = vmatpush1.msra.mxu0 0.0
      %2029 = vmatprep.subr.mxu0 0.0
      %2030 = vmatpush1.msra.mxu0 0.0
      %2031 = vmatprep.subr.mxu0 0.0
      %2032 = vmatpush1.msra.mxu0 0.0
      %2033 = vmatprep.subr.mxu0 0.0
      %2034 = vmatpush1.msra.mxu0 0.0
      %2035 = vmatprep.subr.mxu0 0.0
      %2036 = vmatpush1.msra.mxu0 0.0
      %2037 = vmatprep.subr.mxu0 0.0
      %2038 = vmatpush1.msra.mxu0 0.0
      %2039 = vmatprep.subr.mxu0 0.0
      %2040 = vmatpush1.msra.mxu0 0.0
      %2041 = vmatprep.subr.mxu0 0.0
      %2042 = vmatpush1.msra.mxu0 0.0
      %2043 = vmatprep.subr.mxu0 0.0
      %2044 = vmatpush1.msra.mxu0 0.0
      %2045 = vmatprep.subr.mxu0 0.0
      %2046 = vmatpush1.msra.mxu0 0.0
      %2047 = vmatprep.subr.mxu0 0.0
      %2048 = vmatpush1.msra.mxu0 0.0
      %2049 = vmatprep.subr.mxu0 0.0
      %2050 = vmatpush1.msra.mxu0 0.0
      %2051 = vmatprep.subr.mxu0 0.0
      %2052 = vmatpush1.msra.mxu0 0.0
      %2053 = vmatprep.subr.mxu0 0.0
      %2054 = vmatpush1.msra.mxu0 0.0
      %2055 = vmatprep.subr.mxu0 0.0
      %2056 = vmatpush1.msra.mxu0 0.0
      %2057 = vmatprep.subr.mxu0 0.0
      %2058 = vmatpush1.msra.mxu0 0.0
      %2059 = vmatprep.subr.mxu0 0.0
      %2060 = vmatpush1.msra.mxu0 0.0
      %2061 = vmatprep.subr.mxu0 0.0
      %2062 = vmatpush1.msra.mxu0 0.0
      %2063 = vmatprep.subr.mxu0 0.0
      %2064 = vmatpush1.msra.mxu0 0.0
      %2065 = vmatprep.subr.mxu0 0.0
      %2066 = vmatpush1.msra.mxu0 0.0
      %2067 = vmatprep.subr.mxu0 0.0
      %2068 = vmatpush1.msra.mxu0 0.0
      %2069 = vmatprep.subr.mxu0 0.0
      %2070 = vmatpush1.msra.mxu0 0.0
      %2071 = vmatprep.subr.mxu0 0.0
      %2072 = vmatpush1.msra.mxu0 0.0
      %2073 = vmatprep.subr.mxu0 0.0
      %2074 = vmatpush1.msra.mxu0 0.0
      %2075 = vmatprep.subr.mxu0 0.0
      %2076 = vmatpush1.msra.mxu0 0.0
      %2077 = vmatprep.mubr.f32.mxu0 0.0
      %2078 = vmatmul.mubr.f32.gmra.mrb[0].mxu0 %v1987
      %v2079 = vpop.f32.mrb[0].mxu0
      %v2080 = vadd.f32 0.0, %v2079
      %v2081 = vpop.f32.mrb[0].mxu0
      %2082 = vmatprep.mubr.f32.mxu0 0.0
      %2083 = vmatmul.mubr.f32.gmra.mrb[0].mxu0 %v1990
      %v2084 = vpop.f32.mrb[0].mxu0
      %v2085 = vadd.f32 0.0, %v2084
      %v2086 = vpop.f32.mrb[0].mxu0
      %2087 = vmatprep.mubr.f32.mxu0 0.0
      %2088 = vmatmul.mubr.f32.gmra.mrb[0].mxu0 %v1993
      %v2089 = vpop.f32.mrb[0].mxu0
      %v2090 = vadd.f32 0.0, %v2089
      %v2091 = vpop.f32.mrb[0].mxu0
      %2092 = vmatprep.mubr.f32.mxu0 0.0
      %2093 = vmatmul.mubr.f32.gmra.mrb[0].mxu0 %v1996
      %v2094 = vpop.f32.mrb[0].mxu0
      %v2095 = vadd.f32 0.0, %v2094
      %v2096 = vpop.f32.mrb[0].mxu0
      %2097 = vmatprep.mubr.f32.mxu0 0.0
      %2098 = vmatmul.mubr.f32.gmra.mrb[0].mxu0 %v1999
      %v2099 = vpop.f32.mrb[0].mxu0
      %v2100 = vadd.f32 0.0, %v2099
      %v2101 = vpop.f32.mrb[0].mxu0
      %2102 = vmatprep.mubr.f32.mxu0 0.0
      %2103 = vmatmul.mubr.f32.gmra.mrb[0].mxu0 %v2002
      %v2104 = vpop.f32.mrb[0].mxu0
      %v2105 = vadd.f32 0.0, %v2104
      %v2106 = vpop.f32.mrb[0].mxu0
      %2107 = vmatprep.mubr.f32.mxu0 0.0
      %2108 = vmatmul.mubr.f32.gmra.mrb[0].mxu0 %v2005
      %v2109 = vpop.f32.mrb[0].mxu0
      %v2110 = vadd.f32 0.0, %v2109
      %v2111 = vpop.f32.mrb[0].mxu0
      %2112 = vmatprep.mubr.f32.mxu0 0.0
      %2113 = vmatmul.mubr.f32.gmra.mrb[0].mxu0 %v2008
      %v2114 = vpop.f32.mrb[0].mxu0
      %v2115 = vadd.f32 0.0, %v2114
      %v2116 = vpop.f32.mrb[0].mxu0
      %2117 = vmatprep.mubr.f32.mxu0 0.0
      %2118 = vmatmul.mubr.f32.gmra.mrb[0].mxu0 %v2011
      %v2119 = vpop.f32.mrb[0].mxu0
      %v2120 = vadd.f32 0.0, %v2119
      %v2121 = vpop.f32.mrb[0].mxu0
      %2122 = vdwg.mxu0
      %v2124 = vsel %vm784, %v1143, 0
      %v2127 = vsel %vm784, %v1148, 0
      %v2130 = vsel %vm784, %v1153, 0
      %v2133 = vsel %vm784, %v1158, 0
      %v2136 = vsel %vm784, %v1163, 0
      %v2139 = vsel %vm784, %v1168, 0
      %v2142 = vsel %vm784, %v1173, 0
      %v2145 = vsel %vm784, %v1178, 0
      %v2148 = vsel %vm784, %v1183, 0
      %2150 = vmatprep.subr.mxu0 0.0
      %2151 = vmatpush1.msra.mxu0 %v1186
      %2152 = vmatprep.subr.mxu0 0.0
      %2153 = vmatpush1.msra.mxu0 %v1187
      %2154 = vmatprep.subr.mxu0 0.0
      %2155 = vmatpush1.msra.mxu0 %v1188
      %2156 = vmatprep.subr.mxu0 0.0
      %2157 = vmatpush1.msra.mxu0 %v1189
      %2158 = vmatprep.subr.mxu0 0.0
      %2159 = vmatpush1.msra.mxu0 0.0
      %2160 = vmatprep.subr.mxu0 0.0
      %2161 = vmatpush1.msra.mxu0 0.0
      %2162 = vmatprep.subr.mxu0 0.0
      %2163 = vmatpush1.msra.mxu0 0.0
      %2164 = vmatprep.subr.mxu0 0.0
      %2165 = vmatpush1.msra.mxu0 0.0
      %2166 = vmatprep.subr.mxu0 0.0
      %2167 = vmatpush1.msra.mxu0 0.0
      %2168 = vmatprep.subr.mxu0 0.0
      %2169 = vmatpush1.msra.mxu0 0.0
      %2170 = vmatprep.subr.mxu0 0.0
      %2171 = vmatpush1.msra.mxu0 0.0
      %2172 = vmatprep.subr.mxu0 0.0
      %2173 = vmatpush1.msra.mxu0 0.0
      %2174 = vmatprep.subr.mxu0 0.0
      %2175 = vmatpush1.msra.mxu0 0.0
      %2176 = vmatprep.subr.mxu0 0.0
      %2177 = vmatpush1.msra.mxu0 0.0
      %2178 = vmatprep.subr.mxu0 0.0
      %2179 = vmatpush1.msra.mxu0 0.0
      %2180 = vmatprep.subr.mxu0 0.0
      %2181 = vmatpush1.msra.mxu0 0.0
      %2182 = vmatprep.subr.mxu0 0.0
      %2183 = vmatpush1.msra.mxu0 0.0
      %2184 = vmatprep.subr.mxu0 0.0
      %2185 = vmatpush1.msra.mxu0 0.0
      %2186 = vmatprep.subr.mxu0 0.0
      %2187 = vmatpush1.msra.mxu0 0.0
      %2188 = vmatprep.subr.mxu0 0.0
      %2189 = vmatpush1.msra.mxu0 0.0
      %2190 = vmatprep.subr.mxu0 0.0
      %2191 = vmatpush1.msra.mxu0 0.0
      %2192 = vmatprep.subr.mxu0 0.0
      %2193 = vmatpush1.msra.mxu0 0.0
      %2194 = vmatprep.subr.mxu0 0.0
      %2195 = vmatpush1.msra.mxu0 0.0
      %2196 = vmatprep.subr.mxu0 0.0
      %2197 = vmatpush1.msra.mxu0 0.0
      %2198 = vmatprep.subr.mxu0 0.0
      %2199 = vmatpush1.msra.mxu0 0.0
      %2200 = vmatprep.subr.mxu0 0.0
      %2201 = vmatpush1.msra.mxu0 0.0
      %2202 = vmatprep.subr.mxu0 0.0
      %2203 = vmatpush1.msra.mxu0 0.0
      %2204 = vmatprep.subr.mxu0 0.0
      %2205 = vmatpush1.msra.mxu0 0.0
      %2206 = vmatprep.subr.mxu0 0.0
      %2207 = vmatpush1.msra.mxu0 0.0
      %2208 = vmatprep.subr.mxu0 0.0
      %2209 = vmatpush1.msra.mxu0 0.0
      %2210 = vmatprep.subr.mxu0 0.0
      %2211 = vmatpush1.msra.mxu0 0.0
      %2212 = vmatprep.subr.mxu0 0.0
      %2213 = vmatpush1.msra.mxu0 0.0
      %2214 = vmatprep.mubr.f32.mxu0 0.0
      %2215 = vmatmul.mubr.f32.gmra.mrb[0].mxu0 %v2124
      %v2216 = vpop.f32.mrb[0].mxu0
      %v2217 = vadd.f32 %v2080, %v2216
      %v2218 = vpop.f32.mrb[0].mxu0
      %2219 = vmatprep.mubr.f32.mxu0 0.0
      %2220 = vmatmul.mubr.f32.gmra.mrb[0].mxu0 %v2127
      %v2221 = vpop.f32.mrb[0].mxu0
      %v2222 = vadd.f32 %v2085, %v2221
      %v2223 = vpop.f32.mrb[0].mxu0
      %2224 = vmatprep.mubr.f32.mxu0 0.0
      %2225 = vmatmul.mubr.f32.gmra.mrb[0].mxu0 %v2130
      %v2226 = vpop.f32.mrb[0].mxu0
      %v2227 = vadd.f32 %v2090, %v2226
      %v2228 = vpop.f32.mrb[0].mxu0
      %2229 = vmatprep.mubr.f32.mxu0 0.0
      %2230 = vmatmul.mubr.f32.gmra.mrb[0].mxu0 %v2133
      %v2231 = vpop.f32.mrb[0].mxu0
      %v2232 = vadd.f32 %v2095, %v2231
      %v2233 = vpop.f32.mrb[0].mxu0
      %2234 = vmatprep.mubr.f32.mxu0 0.0
      %2235 = vmatmul.mubr.f32.gmra.mrb[0].mxu0 %v2136
      %v2236 = vpop.f32.mrb[0].mxu0
      %v2237 = vadd.f32 %v2100, %v2236
      %v2238 = vpop.f32.mrb[0].mxu0
      %2239 = vmatprep.mubr.f32.mxu0 0.0
      %2240 = vmatmul.mubr.f32.gmra.mrb[0].mxu0 %v2139
      %v2241 = vpop.f32.mrb[0].mxu0
      %v2242 = vadd.f32 %v2105, %v2241
      %v2243 = vpop.f32.mrb[0].mxu0
      %2244 = vmatprep.mubr.f32.mxu0 0.0
      %2245 = vmatmul.mubr.f32.gmra.mrb[0].mxu0 %v2142
      %v2246 = vpop.f32.mrb[0].mxu0
      %v2247 = vadd.f32 %v2110, %v2246
      %v2248 = vpop.f32.mrb[0].mxu0
      %2249 = vmatprep.mubr.f32.mxu0 0.0
      %2250 = vmatmul.mubr.f32.gmra.mrb[0].mxu0 %v2145
      %v2251 = vpop.f32.mrb[0].mxu0
      %v2252 = vadd.f32 %v2115, %v2251
      %v2253 = vpop.f32.mrb[0].mxu0
      %2254 = vmatprep.mubr.f32.mxu0 0.0
      %2255 = vmatmul.mubr.f32.gmra.mrb[0].mxu0 %v2148
      %v2256 = vpop.f32.mrb[0].mxu0
      %v2257 = vadd.f32 %v2120, %v2256
      %v2258 = vpop.f32.mrb[0].mxu0
      %2259 = vdwg.mxu0
      %v2260 = vld [vmem:[%s9] sm:$0x1]
      %v2262 = vlaneseq
      %v2263 = vshrl.u32 %v2262, 7
      %v2264 = vsub.s32 0, %v2263
      %v2265 = vrot.slane %v2260, %v2264
      %v2267 = vadd.f32 %v2217, %v2265
      %v2268 = vadd.f32 %v2222, %v2265
      %v2269 = vadd.f32 %v2227, %v2265
      %v2270 = vadd.f32 %v2232, %v2265
      %v2271 = vadd.f32 %v2237, %v2265
      %v2272 = vadd.f32 %v2242, %v2265
      %v2273 = vadd.f32 %v2247, %v2265
      %v2274 = vadd.f32 %v2252, %v2265
      %v2275 = vadd.f32 %v2257, %v2265
      %2276 = vst.msk [vmem:[%s361] sm:$0xff] %vm387, %v2267
      %2277 = vst.msk [vmem:[%s361 + $0x8] sm:$0xff] %vm387, %v2268
      %2278 = vst.msk [vmem:[%s361 + $0x10] sm:$0xff] %vm387, %v2269
      %2279 = vst.msk [vmem:[%s361 + $0x18] sm:$0xff] %vm387, %v2270
      %2280 = vst.msk [vmem:[%s361 + $0x20] sm:$0xff] %vm387, %v2271
      %2281 = vst.msk [vmem:[%s361 + $0x28] sm:$0xff] %vm387, %v2272
      %2282 = vst.msk [vmem:[%s361 + $0x30] sm:$0xff] %vm387, %v2273
      %2283 = vst.msk [vmem:[%s361 + $0x38] sm:$0xff] %vm387, %v2274
      %2284 = vst.msk [vmem:[%s361 + $0x40] sm:$0xff] %vm387, %v2275
      %v2285 = vld [vmem:[%s355 + $0x48] sm:$0xff]
      %v2286 = vld [vmem:[%s355 + $0x50] sm:$0xff]
      %v2287 = vld [vmem:[%s355 + $0x58] sm:$0xff]
      %v2288 = vld [vmem:[%s355 + $0x60] sm:$0xff]
      %v2289 = vld [vmem:[%s355 + $0x68] sm:$0xff]
      %v2290 = vld [vmem:[%s355 + $0x70] sm:$0xff]
      %v2291 = vld [vmem:[%s355 + $0x78] sm:$0xff]
      %v2292 = vld [vmem:[%s355 + $0x80] sm:$0xff]
      %v2293 = vld [vmem:[%s355 + $0x88] sm:$0xff]
      %v2294 = vld [vmem:[%s1] sm:$0xff]
      %v2295 = vld [vmem:[%s1 + $0x8] sm:$0xff]
      %v2296 = vld [vmem:[%s1 + $0x10] sm:$0xff]
      %v2297 = vld [vmem:[%s1 + $0x18] sm:$0xff]
      %v2298 = vld [vmem:[%s1 + $0x20] sm:$0xff]
      %v2299 = vld [vmem:[%s1 + $0x28] sm:$0xff]
      %v2300 = vld [vmem:[%s1 + $0x30] sm:$0xff]
      %v2301 = vld [vmem:[%s1 + $0x38] sm:$0xff]
      %v2302 = vld [vmem:[%s4] sm:$0x1]
      %v2304 = vlaneseq
      %v2305 = vshrl.u32 %v2304, 7
      %v2306 = vsub.s32 0, %v2305
      %v2307 = vrot.slane %v2302, %v2306
      %v2310 = vsel %vm387, %v2285, 0
      %v2313 = vsel %vm387, %v2286, 0
      %v2316 = vsel %vm387, %v2287, 0
      %v2319 = vsel %vm387, %v2288, 0
      %v2322 = vsel %vm387, %v2289, 0
      %v2325 = vsel %vm387, %v2290, 0
      %v2328 = vsel %vm387, %v2291, 0
      %v2331 = vsel %vm387, %v2292, 0
      %v2334 = vsel %vm387, %v2293, 0
      %2336 = vmatprep.subr.mxu0 0.0
      %2337 = vmatpush1.msra.mxu0 %v2294
      %2338 = vmatprep.subr.mxu0 0.0
      %2339 = vmatpush1.msra.mxu0 %v2295
      %2340 = vmatprep.subr.mxu0 0.0
      %2341 = vmatpush1.msra.mxu0 %v2296
      %2342 = vmatprep.subr.mxu0 0.0
      %2343 = vmatpush1.msra.mxu0 %v2297
      %2344 = vmatprep.subr.mxu0 0.0
      %2345 = vmatpush1.msra.mxu0 %v2298
      %2346 = vmatprep.subr.mxu0 0.0
      %2347 = vmatpush1.msra.mxu0 %v2299
      %2348 = vmatprep.subr.mxu0 0.0
      %2349 = vmatpush1.msra.mxu0 %v2300
      %2350 = vmatprep.subr.mxu0 0.0
      %2351 = vmatpush1.msra.mxu0 %v2301
      %2352 = vmatprep.subr.mxu0 0.0
      %2353 = vmatpush1.msra.mxu0 0.0
      %2354 = vmatprep.subr.mxu0 0.0
      %2355 = vmatpush1.msra.mxu0 0.0
      %2356 = vmatprep.subr.mxu0 0.0
      %2357 = vmatpush1.msra.mxu0 0.0
      %2358 = vmatprep.subr.mxu0 0.0
      %2359 = vmatpush1.msra.mxu0 0.0
      %2360 = vmatprep.subr.mxu0 0.0
      %2361 = vmatpush1.msra.mxu0 0.0
      %2362 = vmatprep.subr.mxu0 0.0
      %2363 = vmatpush1.msra.mxu0 0.0
      %2364 = vmatprep.subr.mxu0 0.0
      %2365 = vmatpush1.msra.mxu0 0.0
      %2366 = vmatprep.subr.mxu0 0.0
      %2367 = vmatpush1.msra.mxu0 0.0
      %2368 = vmatprep.subr.mxu0 0.0
      %2369 = vmatpush1.msra.mxu0 0.0
      %2370 = vmatprep.subr.mxu0 0.0
      %2371 = vmatpush1.msra.mxu0 0.0
      %2372 = vmatprep.subr.mxu0 0.0
      %2373 = vmatpush1.msra.mxu0 0.0
      %2374 = vmatprep.subr.mxu0 0.0
      %2375 = vmatpush1.msra.mxu0 0.0
      %2376 = vmatprep.subr.mxu0 0.0
      %2377 = vmatpush1.msra.mxu0 0.0
      %2378 = vmatprep.subr.mxu0 0.0
      %2379 = vmatpush1.msra.mxu0 0.0
      %2380 = vmatprep.subr.mxu0 0.0
      %2381 = vmatpush1.msra.mxu0 0.0
      %2382 = vmatprep.subr.mxu0 0.0
      %2383 = vmatpush1.msra.mxu0 0.0
      %2384 = vmatprep.subr.mxu0 0.0
      %2385 = vmatpush1.msra.mxu0 0.0
      %2386 = vmatprep.subr.mxu0 0.0
      %2387 = vmatpush1.msra.mxu0 0.0
      %2388 = vmatprep.subr.mxu0 0.0
      %2389 = vmatpush1.msra.mxu0 0.0
      %2390 = vmatprep.subr.mxu0 0.0
      %2391 = vmatpush1.msra.mxu0 0.0
      %2392 = vmatprep.subr.mxu0 0.0
      %2393 = vmatpush1.msra.mxu0 0.0
      %2394 = vmatprep.subr.mxu0 0.0
      %2395 = vmatpush1.msra.mxu0 0.0
      %2396 = vmatprep.subr.mxu0 0.0
      %2397 = vmatpush1.msra.mxu0 0.0
      %2398 = vmatprep.subr.mxu0 0.0
      %2399 = vmatpush1.msra.mxu0 0.0
      %2400 = vmatprep.mubr.f32.mxu0 0.0
      %2401 = vmatmul.mubr.f32.gmra.mrb[0].mxu0 %v2310
      %v2402 = vpop.f32.mrb[0].mxu0
      %v2403 = vadd.f32 %v2307, %v2402
      %v2404 = vpop.f32.mrb[0].mxu0
      %2405 = vmatprep.mubr.f32.mxu0 0.0
      %2406 = vmatmul.mubr.f32.gmra.mrb[0].mxu0 %v2313
      %v2407 = vpop.f32.mrb[0].mxu0
      %v2408 = vadd.f32 %v2307, %v2407
      %v2409 = vpop.f32.mrb[0].mxu0
      %2410 = vmatprep.mubr.f32.mxu0 0.0
      %2411 = vmatmul.mubr.f32.gmra.mrb[0].mxu0 %v2316
      %v2412 = vpop.f32.mrb[0].mxu0
      %v2413 = vadd.f32 %v2307, %v2412
      %v2414 = vpop.f32.mrb[0].mxu0
      %2415 = vmatprep.mubr.f32.mxu0 0.0
      %2416 = vmatmul.mubr.f32.gmra.mrb[0].mxu0 %v2319
      %v2417 = vpop.f32.mrb[0].mxu0
      %v2418 = vadd.f32 %v2307, %v2417
      %v2419 = vpop.f32.mrb[0].mxu0
      %2420 = vmatprep.mubr.f32.mxu0 0.0
      %2421 = vmatmul.mubr.f32.gmra.mrb[0].mxu0 %v2322
      %v2422 = vpop.f32.mrb[0].mxu0
      %v2423 = vadd.f32 %v2307, %v2422
      %v2424 = vpop.f32.mrb[0].mxu0
      %2425 = vmatprep.mubr.f32.mxu0 0.0
      %2426 = vmatmul.mubr.f32.gmra.mrb[0].mxu0 %v2325
      %v2427 = vpop.f32.mrb[0].mxu0
      %v2428 = vadd.f32 %v2307, %v2427
      %v2429 = vpop.f32.mrb[0].mxu0
      %2430 = vmatprep.mubr.f32.mxu0 0.0
      %2431 = vmatmul.mubr.f32.gmra.mrb[0].mxu0 %v2328
      %v2432 = vpop.f32.mrb[0].mxu0
      %v2433 = vadd.f32 %v2307, %v2432
      %v2434 = vpop.f32.mrb[0].mxu0
      %2435 = vmatprep.mubr.f32.mxu0 0.0
      %2436 = vmatmul.mubr.f32.gmra.mrb[0].mxu0 %v2331
      %v2437 = vpop.f32.mrb[0].mxu0
      %v2438 = vadd.f32 %v2307, %v2437
      %v2439 = vpop.f32.mrb[0].mxu0
      %2440 = vmatprep.mubr.f32.mxu0 0.0
      %2441 = vmatmul.mubr.f32.gmra.mrb[0].mxu0 %v2334
      %v2442 = vpop.f32.mrb[0].mxu0
      %v2443 = vadd.f32 %v2307, %v2442
      %v2444 = vpop.f32.mrb[0].mxu0
      %2445 = vdwg.mxu0
      %v2446 = vld [vmem:[%s2] sm:$0xff]
      %v2447 = vld [vmem:[%s2 + $0x8] sm:$0xff]
      %v2448 = vld [vmem:[%s2 + $0x10] sm:$0xff]
      %v2449 = vld [vmem:[%s2 + $0x18] sm:$0xff]
      %v2450 = vld [vmem:[%s2 + $0x20] sm:$0xff]
      %v2451 = vld [vmem:[%s2 + $0x28] sm:$0xff]
      %v2452 = vld [vmem:[%s2 + $0x30] sm:$0xff]
      %v2453 = vld [vmem:[%s2 + $0x38] sm:$0xff]
      %v2454 = vld [vmem:[%s5] sm:$0x1]
      %v2456 = vlaneseq
      %v2457 = vshrl.u32 %v2456, 7
      %v2458 = vsub.s32 0, %v2457
      %v2459 = vrot.slane %v2454, %v2458
      %2461 = vmatprep.subr.mxu0 0.0
      %2462 = vmatpush1.msra.mxu0 %v2446
      %2463 = vmatprep.subr.mxu0 0.0
      %2464 = vmatpush1.msra.mxu0 %v2447
      %2465 = vmatprep.subr.mxu0 0.0
      %2466 = vmatpush1.msra.mxu0 %v2448
      %2467 = vmatprep.subr.mxu0 0.0
      %2468 = vmatpush1.msra.mxu0 %v2449
      %2469 = vmatprep.subr.mxu0 0.0
      %2470 = vmatpush1.msra.mxu0 %v2450
      %2471 = vmatprep.subr.mxu0 0.0
      %2472 = vmatpush1.msra.mxu0 %v2451
      %2473 = vmatprep.subr.mxu0 0.0
      %2474 = vmatpush1.msra.mxu0 %v2452
      %2475 = vmatprep.subr.mxu0 0.0
      %2476 = vmatpush1.msra.mxu0 %v2453
      %2477 = vmatprep.subr.mxu0 0.0
      %2478 = vmatpush1.msra.mxu0 0.0
      %2479 = vmatprep.subr.mxu0 0.0
      %2480 = vmatpush1.msra.mxu0 0.0
      %2481 = vmatprep.subr.mxu0 0.0
      %2482 = vmatpush1.msra.mxu0 0.0
      %2483 = vmatprep.subr.mxu0 0.0
      %2484 = vmatpush1.msra.mxu0 0.0
      %2485 = vmatprep.subr.mxu0 0.0
      %2486 = vmatpush1.msra.mxu0 0.0
      %2487 = vmatprep.subr.mxu0 0.0
      %2488 = vmatpush1.msra.mxu0 0.0
      %2489 = vmatprep.subr.mxu0 0.0
      %2490 = vmatpush1.msra.mxu0 0.0
      %2491 = vmatprep.subr.mxu0 0.0
      %2492 = vmatpush1.msra.mxu0 0.0
      %2493 = vmatprep.subr.mxu0 0.0
      %2494 = vmatpush1.msra.mxu0 0.0
      %2495 = vmatprep.subr.mxu0 0.0
      %2496 = vmatpush1.msra.mxu0 0.0
      %2497 = vmatprep.subr.mxu0 0.0
      %2498 = vmatpush1.msra.mxu0 0.0
      %2499 = vmatprep.subr.mxu0 0.0
      %2500 = vmatpush1.msra.mxu0 0.0
      %2501 = vmatprep.subr.mxu0 0.0
      %2502 = vmatpush1.msra.mxu0 0.0
      %2503 = vmatprep.subr.mxu0 0.0
      %2504 = vmatpush1.msra.mxu0 0.0
      %2505 = vmatprep.subr.mxu0 0.0
      %2506 = vmatpush1.msra.mxu0 0.0
      %2507 = vmatprep.subr.mxu0 0.0
      %2508 = vmatpush1.msra.mxu0 0.0
      %2509 = vmatprep.subr.mxu0 0.0
      %2510 = vmatpush1.msra.mxu0 0.0
      %2511 = vmatprep.subr.mxu0 0.0
      %2512 = vmatpush1.msra.mxu0 0.0
      %2513 = vmatprep.subr.mxu0 0.0
      %2514 = vmatpush1.msra.mxu0 0.0
      %2515 = vmatprep.subr.mxu0 0.0
      %2516 = vmatpush1.msra.mxu0 0.0
      %2517 = vmatprep.subr.mxu0 0.0
      %2518 = vmatpush1.msra.mxu0 0.0
      %2519 = vmatprep.subr.mxu0 0.0
      %2520 = vmatpush1.msra.mxu0 0.0
      %2521 = vmatprep.subr.mxu0 0.0
      %2522 = vmatpush1.msra.mxu0 0.0
      %2523 = vmatprep.subr.mxu0 0.0
      %2524 = vmatpush1.msra.mxu0 0.0
      %2525 = vmatprep.mubr.f32.mxu0 0.0
      %2526 = vmatmul.mubr.f32.gmra.mrb[0].mxu0 %v2310
      %v2527 = vpop.f32.mrb[0].mxu0
      %v2528 = vadd.f32 %v2459, %v2527
      %v2529 = vpop.f32.mrb[0].mxu0
      %2530 = vmatprep.mubr.f32.mxu0 0.0
      %2531 = vmatmul.mubr.f32.gmra.mrb[0].mxu0 %v2313
      %v2532 = vpop.f32.mrb[0].mxu0
      %v2533 = vadd.f32 %v2459, %v2532
      %v2534 = vpop.f32.mrb[0].mxu0
      %2535 = vmatprep.mubr.f32.mxu0 0.0
      %2536 = vmatmul.mubr.f32.gmra.mrb[0].mxu0 %v2316
      %v2537 = vpop.f32.mrb[0].mxu0
      %v2538 = vadd.f32 %v2459, %v2537
      %v2539 = vpop.f32.mrb[0].mxu0
      %2540 = vmatprep.mubr.f32.mxu0 0.0
      %2541 = vmatmul.mubr.f32.gmra.mrb[0].mxu0 %v2319
      %v2542 = vpop.f32.mrb[0].mxu0
      %v2543 = vadd.f32 %v2459, %v2542
      %v2544 = vpop.f32.mrb[0].mxu0
      %2545 = vmatprep.mubr.f32.mxu0 0.0
      %2546 = vmatmul.mubr.f32.gmra.mrb[0].mxu0 %v2322
      %v2547 = vpop.f32.mrb[0].mxu0
      %v2548 = vadd.f32 %v2459, %v2547
      %v2549 = vpop.f32.mrb[0].mxu0
      %2550 = vmatprep.mubr.f32.mxu0 0.0
      %2551 = vmatmul.mubr.f32.gmra.mrb[0].mxu0 %v2325
      %v2552 = vpop.f32.mrb[0].mxu0
      %v2553 = vadd.f32 %v2459, %v2552
      %v2554 = vpop.f32.mrb[0].mxu0
      %2555 = vmatprep.mubr.f32.mxu0 0.0
      %2556 = vmatmul.mubr.f32.gmra.mrb[0].mxu0 %v2328
      %v2557 = vpop.f32.mrb[0].mxu0
      %v2558 = vadd.f32 %v2459, %v2557
      %v2559 = vpop.f32.mrb[0].mxu0
      %2560 = vmatprep.mubr.f32.mxu0 0.0
      %2561 = vmatmul.mubr.f32.gmra.mrb[0].mxu0 %v2331
      %v2562 = vpop.f32.mrb[0].mxu0
      %v2563 = vadd.f32 %v2459, %v2562
      %v2564 = vpop.f32.mrb[0].mxu0
      %2565 = vmatprep.mubr.f32.mxu0 0.0
      %2566 = vmatmul.mubr.f32.gmra.mrb[0].mxu0 %v2334
      %v2567 = vpop.f32.mrb[0].mxu0
      %v2568 = vadd.f32 %v2459, %v2567
      %v2569 = vpop.f32.mrb[0].mxu0
      %2570 = vdwg.mxu0
      %v2571 = vld [vmem:[%s3] sm:$0xff]
      %v2572 = vld [vmem:[%s3 + $0x8] sm:$0xff]
      %v2573 = vld [vmem:[%s3 + $0x10] sm:$0xff]
      %v2574 = vld [vmem:[%s3 + $0x18] sm:$0xff]
      %v2575 = vld [vmem:[%s3 + $0x20] sm:$0xff]
      %v2576 = vld [vmem:[%s3 + $0x28] sm:$0xff]
      %v2577 = vld [vmem:[%s3 + $0x30] sm:$0xff]
      %v2578 = vld [vmem:[%s3 + $0x38] sm:$0xff]
      %v2579 = vld [vmem:[%s6] sm:$0x1]
      %v2581 = vlaneseq
      %v2582 = vshrl.u32 %v2581, 7
      %v2583 = vsub.s32 0, %v2582
      %v2584 = vrot.slane %v2579, %v2583
      %2586 = vmatprep.subr.mxu0 0.0
      %2587 = vmatpush1.msra.mxu0 %v2571
      %2588 = vmatprep.subr.mxu0 0.0
      %2589 = vmatpush1.msra.mxu0 %v2572
      %2590 = vmatprep.subr.mxu0 0.0
      %2591 = vmatpush1.msra.mxu0 %v2573
      %2592 = vmatprep.subr.mxu0 0.0
      %2593 = vmatpush1.msra.mxu0 %v2574
      %2594 = vmatprep.subr.mxu0 0.0
      %2595 = vmatpush1.msra.mxu0 %v2575
      %2596 = vmatprep.subr.mxu0 0.0
      %2597 = vmatpush1.msra.mxu0 %v2576
      %2598 = vmatprep.subr.mxu0 0.0
      %2599 = vmatpush1.msra.mxu0 %v2577
      %2600 = vmatprep.subr.mxu0 0.0
      %2601 = vmatpush1.msra.mxu0 %v2578
      %2602 = vmatprep.subr.mxu0 0.0
      %2603 = vmatpush1.msra.mxu0 0.0
      %2604 = vmatprep.subr.mxu0 0.0
      %2605 = vmatpush1.msra.mxu0 0.0
      %2606 = vmatprep.subr.mxu0 0.0
      %2607 = vmatpush1.msra.mxu0 0.0
      %2608 = vmatprep.subr.mxu0 0.0
      %2609 = vmatpush1.msra.mxu0 0.0
      %2610 = vmatprep.subr.mxu0 0.0
      %2611 = vmatpush1.msra.mxu0 0.0
      %2612 = vmatprep.subr.mxu0 0.0
      %2613 = vmatpush1.msra.mxu0 0.0
      %2614 = vmatprep.subr.mxu0 0.0
      %2615 = vmatpush1.msra.mxu0 0.0
      %2616 = vmatprep.subr.mxu0 0.0
      %2617 = vmatpush1.msra.mxu0 0.0
      %2618 = vmatprep.subr.mxu0 0.0
      %2619 = vmatpush1.msra.mxu0 0.0
      %2620 = vmatprep.subr.mxu0 0.0
      %2621 = vmatpush1.msra.mxu0 0.0
      %2622 = vmatprep.subr.mxu0 0.0
      %2623 = vmatpush1.msra.mxu0 0.0
      %2624 = vmatprep.subr.mxu0 0.0
      %2625 = vmatpush1.msra.mxu0 0.0
      %2626 = vmatprep.subr.mxu0 0.0
      %2627 = vmatpush1.msra.mxu0 0.0
      %2628 = vmatprep.subr.mxu0 0.0
      %2629 = vmatpush1.msra.mxu0 0.0
      %2630 = vmatprep.subr.mxu0 0.0
      %2631 = vmatpush1.msra.mxu0 0.0
      %2632 = vmatprep.subr.mxu0 0.0
      %2633 = vmatpush1.msra.mxu0 0.0
      %2634 = vmatprep.subr.mxu0 0.0
      %2635 = vmatpush1.msra.mxu0 0.0
      %2636 = vmatprep.subr.mxu0 0.0
      %2637 = vmatpush1.msra.mxu0 0.0
      %2638 = vmatprep.subr.mxu0 0.0
      %2639 = vmatpush1.msra.mxu0 0.0
      %2640 = vmatprep.subr.mxu0 0.0
      %2641 = vmatpush1.msra.mxu0 0.0
      %2642 = vmatprep.subr.mxu0 0.0
      %2643 = vmatpush1.msra.mxu0 0.0
      %2644 = vmatprep.subr.mxu0 0.0
      %2645 = vmatpush1.msra.mxu0 0.0
      %2646 = vmatprep.subr.mxu0 0.0
      %2647 = vmatpush1.msra.mxu0 0.0
      %2648 = vmatprep.subr.mxu0 0.0
      %2649 = vmatpush1.msra.mxu0 0.0
      %2650 = vmatprep.mubr.f32.mxu0 0.0
      %2651 = vmatmul.mubr.f32.gmra.mrb[0].mxu0 %v2310
      %v2652 = vpop.f32.mrb[0].mxu0
      %v2653 = vadd.f32 %v2584, %v2652
      %v2654 = vpop.f32.mrb[0].mxu0
      %2655 = vmatprep.mubr.f32.mxu0 0.0
      %2656 = vmatmul.mubr.f32.gmra.mrb[0].mxu0 %v2313
      %v2657 = vpop.f32.mrb[0].mxu0
      %v2658 = vadd.f32 %v2584, %v2657
      %v2659 = vpop.f32.mrb[0].mxu0
      %2660 = vmatprep.mubr.f32.mxu0 0.0
      %2661 = vmatmul.mubr.f32.gmra.mrb[0].mxu0 %v2316
      %v2662 = vpop.f32.mrb[0].mxu0
      %v2663 = vadd.f32 %v2584, %v2662
      %v2664 = vpop.f32.mrb[0].mxu0
      %2665 = vmatprep.mubr.f32.mxu0 0.0
      %2666 = vmatmul.mubr.f32.gmra.mrb[0].mxu0 %v2319
      %v2667 = vpop.f32.mrb[0].mxu0
      %v2668 = vadd.f32 %v2584, %v2667
      %v2669 = vpop.f32.mrb[0].mxu0
      %2670 = vmatprep.mubr.f32.mxu0 0.0
      %2671 = vmatmul.mubr.f32.gmra.mrb[0].mxu0 %v2322
      %v2672 = vpop.f32.mrb[0].mxu0
      %v2673 = vadd.f32 %v2584, %v2672
      %v2674 = vpop.f32.mrb[0].mxu0
      %2675 = vmatprep.mubr.f32.mxu0 0.0
      %2676 = vmatmul.mubr.f32.gmra.mrb[0].mxu0 %v2325
      %v2677 = vpop.f32.mrb[0].mxu0
      %v2678 = vadd.f32 %v2584, %v2677
      %v2679 = vpop.f32.mrb[0].mxu0
      %2680 = vmatprep.mubr.f32.mxu0 0.0
      %2681 = vmatmul.mubr.f32.gmra.mrb[0].mxu0 %v2328
      %v2682 = vpop.f32.mrb[0].mxu0
      %v2683 = vadd.f32 %v2584, %v2682
      %v2684 = vpop.f32.mrb[0].mxu0
      %2685 = vmatprep.mubr.f32.mxu0 0.0
      %2686 = vmatmul.mubr.f32.gmra.mrb[0].mxu0 %v2331
      %v2687 = vpop.f32.mrb[0].mxu0
      %v2688 = vadd.f32 %v2584, %v2687
      %v2689 = vpop.f32.mrb[0].mxu0
      %2690 = vmatprep.mubr.f32.mxu0 0.0
      %2691 = vmatmul.mubr.f32.gmra.mrb[0].mxu0 %v2334
      %v2692 = vpop.f32.mrb[0].mxu0
      %v2693 = vadd.f32 %v2584, %v2692
      %v2694 = vpop.f32.mrb[0].mxu0
      %2695 = vdwg.mxu0
      %v2696 = vld [vmem:[%s7] sm:$0xff]
      %v2697 = vld [vmem:[%s7 + $0x8] sm:$0xff]
      %v2698 = vld [vmem:[%s7 + $0x10] sm:$0xff]
      %v2699 = vld [vmem:[%s7 + $0x18] sm:$0xff]
      %v2700 = vld [vmem:[%s7 + $0x20] sm:$0xff]
      %v2701 = vld [vmem:[%s7 + $0x28] sm:$0xff]
      %v2702 = vld [vmem:[%s7 + $0x30] sm:$0xff]
      %v2703 = vld [vmem:[%s7 + $0x38] sm:$0xff]
      %v2704 = vld [vmem:[%s7 + $0x40] sm:$0xff]
      %v2706 = vsel %vm784, %v2403, 0
      %v2709 = vsel %vm784, %v2408, 0
      %v2712 = vsel %vm784, %v2413, 0
      %v2715 = vsel %vm784, %v2418, 0
      %v2718 = vsel %vm784, %v2423, 0
      %v2721 = vsel %vm784, %v2428, 0
      %v2724 = vsel %vm784, %v2433, 0
      %v2727 = vsel %vm784, %v2438, 0
      %v2730 = vsel %vm784, %v2443, 0
      %v2733 = vsel %vm784, %v2528, 0
      %v2736 = vsel %vm784, %v2533, 0
      %v2739 = vsel %vm784, %v2538, 0
      %v2742 = vsel %vm784, %v2543, 0
      %v2745 = vsel %vm784, %v2548, 0
      %v2748 = vsel %vm784, %v2553, 0
      %v2751 = vsel %vm784, %v2558, 0
      %v2754 = vsel %vm784, %v2563, 0
      %v2757 = vsel %vm784, %v2568, 0
      %2759 = vmatprep.subr.mxu0 0.0
      %2760 = vmatpush1.xpose.msra.mxu0 %v2733
      %2761 = vmatprep.subr.mxu0 0.0
      %2762 = vmatpush1.xpose.msra.mxu0 %v2736
      %2763 = vmatprep.subr.mxu0 0.0
      %2764 = vmatpush1.xpose.msra.mxu0 %v2739
      %2765 = vmatprep.subr.mxu0 0.0
      %2766 = vmatpush1.xpose.msra.mxu0 %v2742
      %2767 = vmatprep.subr.mxu0 0.0
      %2768 = vmatpush1.xpose.msra.mxu0 %v2745
      %2769 = vmatprep.subr.mxu0 0.0
      %2770 = vmatpush1.xpose.msra.mxu0 %v2748
      %2771 = vmatprep.subr.mxu0 0.0
      %2772 = vmatpush1.xpose.msra.mxu0 %v2751
      %2773 = vmatprep.subr.mxu0 0.0
      %2774 = vmatpush1.xpose.msra.mxu0 %v2754
      %2775 = vmatprep.subr.mxu0 0.0
      %2776 = vmatpush1.xpose.msra.mxu0 %v2757
      %2777 = vmatprep.subr.mxu0 0.0
      %2778 = vmatpush1.xpose.msra.mxu0 0.0
      %2779 = vmatprep.subr.mxu0 0.0
      %2780 = vmatpush1.xpose.msra.mxu0 0.0
      %2781 = vmatprep.subr.mxu0 0.0
      %2782 = vmatpush1.xpose.msra.mxu0 0.0
      %2783 = vmatprep.subr.mxu0 0.0
      %2784 = vmatpush1.xpose.msra.mxu0 0.0
      %2785 = vmatprep.subr.mxu0 0.0
      %2786 = vmatpush1.xpose.msra.mxu0 0.0
      %2787 = vmatprep.subr.mxu0 0.0
      %2788 = vmatpush1.xpose.msra.mxu0 0.0
      %2789 = vmatprep.subr.mxu0 0.0
      %2790 = vmatpush1.xpose.msra.mxu0 0.0
      %2791 = vmatprep.subr.mxu0 0.0
      %2792 = vmatpush1.xpose.msra.mxu0 0.0
      %2793 = vmatprep.subr.mxu0 0.0
      %2794 = vmatpush1.xpose.msra.mxu0 0.0
      %2795 = vmatprep.subr.mxu0 0.0
      %2796 = vmatpush1.xpose.msra.mxu0 0.0
      %2797 = vmatprep.subr.mxu0 0.0
      %2798 = vmatpush1.xpose.msra.mxu0 0.0
      %2799 = vmatprep.subr.mxu0 0.0
      %2800 = vmatpush1.xpose.msra.mxu0 0.0
      %2801 = vmatprep.subr.mxu0 0.0
      %2802 = vmatpush1.xpose.msra.mxu0 0.0
      %2803 = vmatprep.subr.mxu0 0.0
      %2804 = vmatpush1.xpose.msra.mxu0 0.0
      %2805 = vmatprep.subr.mxu0 0.0
      %2806 = vmatpush1.xpose.msra.mxu0 0.0
      %2807 = vmatprep.subr.mxu0 0.0
      %2808 = vmatpush1.xpose.msra.mxu0 0.0
      %2809 = vmatprep.subr.mxu0 0.0
      %2810 = vmatpush1.xpose.msra.mxu0 0.0
      %2811 = vmatprep.subr.mxu0 0.0
      %2812 = vmatpush1.xpose.msra.mxu0 0.0
      %2813 = vmatprep.subr.mxu0 0.0
      %2814 = vmatpush1.xpose.msra.mxu0 0.0
      %2815 = vmatprep.subr.mxu0 0.0
      %2816 = vmatpush1.xpose.msra.mxu0 0.0
      %2817 = vmatprep.subr.mxu0 0.0
      %2818 = vmatpush1.xpose.msra.mxu0 0.0
      %2819 = vmatprep.subr.mxu0 0.0
      %2820 = vmatpush1.xpose.msra.mxu0 0.0
      %2821 = vmatprep.subr.mxu0 0.0
      %2822 = vmatpush1.xpose.msra.mxu0 0.0
      %2823 = vmatprep.mubr.f32.mxu0 0.0
      %2824 = vmatmul.mubr.f32.gmra.mrb[0].mxu0 %v2706
      %v2825 = vpop.f32.mrb[0].mxu0
      %v2826 = vadd.f32 %v2696, %v2825
      %v2827 = vpop.f32.mrb[0].mxu0
      %2828 = vmatprep.mubr.f32.mxu0 0.0
      %2829 = vmatmul.mubr.f32.gmra.mrb[0].mxu0 %v2709
      %v2830 = vpop.f32.mrb[0].mxu0
      %v2831 = vadd.f32 %v2697, %v2830
      %v2832 = vpop.f32.mrb[0].mxu0
      %2833 = vmatprep.mubr.f32.mxu0 0.0
      %2834 = vmatmul.mubr.f32.gmra.mrb[0].mxu0 %v2712
      %v2835 = vpop.f32.mrb[0].mxu0
      %v2836 = vadd.f32 %v2698, %v2835
      %v2837 = vpop.f32.mrb[0].mxu0
      %2838 = vmatprep.mubr.f32.mxu0 0.0
      %2839 = vmatmul.mubr.f32.gmra.mrb[0].mxu0 %v2715
      %v2840 = vpop.f32.mrb[0].mxu0
      %v2841 = vadd.f32 %v2699, %v2840
      %v2842 = vpop.f32.mrb[0].mxu0
      %2843 = vmatprep.mubr.f32.mxu0 0.0
      %2844 = vmatmul.mubr.f32.gmra.mrb[0].mxu0 %v2718
      %v2845 = vpop.f32.mrb[0].mxu0
      %v2846 = vadd.f32 %v2700, %v2845
      %v2847 = vpop.f32.mrb[0].mxu0
      %2848 = vmatprep.mubr.f32.mxu0 0.0
      %2849 = vmatmul.mubr.f32.gmra.mrb[0].mxu0 %v2721
      %v2850 = vpop.f32.mrb[0].mxu0
      %v2851 = vadd.f32 %v2701, %v2850
      %v2852 = vpop.f32.mrb[0].mxu0
      %2853 = vmatprep.mubr.f32.mxu0 0.0
      %2854 = vmatmul.mubr.f32.gmra.mrb[0].mxu0 %v2724
      %v2855 = vpop.f32.mrb[0].mxu0
      %v2856 = vadd.f32 %v2702, %v2855
      %v2857 = vpop.f32.mrb[0].mxu0
      %2858 = vmatprep.mubr.f32.mxu0 0.0
      %2859 = vmatmul.mubr.f32.gmra.mrb[0].mxu0 %v2727
      %v2860 = vpop.f32.mrb[0].mxu0
      %v2861 = vadd.f32 %v2703, %v2860
      %v2862 = vpop.f32.mrb[0].mxu0
      %2863 = vmatprep.mubr.f32.mxu0 0.0
      %2864 = vmatmul.mubr.f32.gmra.mrb[0].mxu0 %v2730
      %v2865 = vpop.f32.mrb[0].mxu0
      %v2866 = vadd.f32 %v2704, %v2865
      %v2867 = vpop.f32.mrb[0].mxu0
      %2868 = vdwg.mxu0
      %v2869 = vsel %vm949, %v2826, -inf
      %2870 = vmax.xlane.f32.xlu0 %v2869
      %v2871 = vpop.xlane.xlu0 %2870
      %v2872 = vsel %vm949, %v2831, -inf
      %2873 = vmax.xlane.f32.xlu0 %v2872
      %v2874 = vpop.xlane.xlu0 %2873
      %v2875 = vsel %vm949, %v2836, -inf
      %2876 = vmax.xlane.f32.xlu0 %v2875
      %v2877 = vpop.xlane.xlu0 %2876
      %v2878 = vsel %vm949, %v2841, -inf
      %2879 = vmax.xlane.f32.xlu0 %v2878
      %v2880 = vpop.xlane.xlu0 %2879
      %v2881 = vsel %vm949, %v2846, -inf
      %2882 = vmax.xlane.f32.xlu0 %v2881
      %v2883 = vpop.xlane.xlu0 %2882
      %v2884 = vsel %vm949, %v2851, -inf
      %2885 = vmax.xlane.f32.xlu0 %v2884
      %v2886 = vpop.xlane.xlu0 %2885
      %v2887 = vsel %vm949, %v2856, -inf
      %2888 = vmax.xlane.f32.xlu0 %v2887
      %v2889 = vpop.xlane.xlu0 %2888
      %v2890 = vsel %vm949, %v2861, -inf
      %2891 = vmax.xlane.f32.xlu0 %v2890
      %v2892 = vpop.xlane.xlu0 %2891
      %v2893 = vsel %vm949, %v2866, -inf
      %2894 = vmax.xlane.f32.xlu0 %v2893
      %v2895 = vpop.xlane.xlu0 %2894
      %v2896 = vsub.f32 %v2826, %v2871
      %v2897 = vsub.f32 %v2831, %v2874
      %v2898 = vsub.f32 %v2836, %v2877
      %v2899 = vsub.f32 %v2841, %v2880
      %v2900 = vsub.f32 %v2846, %v2883
      %v2901 = vsub.f32 %v2851, %v2886
      %v2902 = vsub.f32 %v2856, %v2889
      %v2903 = vsub.f32 %v2861, %v2892
      %v2904 = vsub.f32 %v2866, %v2895
      %v2905 = vmul.f32 %v2896, 1.442695
      %v2906 = vpow.pop %v2905
      %v2907 = vmul.f32 %v2897, 1.442695
      %v2908 = vpow.pop %v2907
      %v2909 = vmul.f32 %v2898, 1.442695
      %v2910 = vpow.pop %v2909
      %v2911 = vmul.f32 %v2899, 1.442695
      %v2912 = vpow.pop %v2911
      %v2913 = vmul.f32 %v2900, 1.442695
      %v2914 = vpow.pop %v2913
      %v2915 = vmul.f32 %v2901, 1.442695
      %v2916 = vpow.pop %v2915
      %v2917 = vmul.f32 %v2902, 1.442695
      %v2918 = vpow.pop %v2917
      %v2919 = vmul.f32 %v2903, 1.442695
      %v2920 = vpow.pop %v2919
      %v2921 = vmul.f32 %v2904, 1.442695
      %v2922 = vpow.pop %v2921
      %v2923 = vsel %vm949, %v2906, 0.0
      %2924 = vadd.xlane.f32.xlu0 %v2923
      %v2925 = vpop.xlane.xlu0 %2924
      %v2926 = vsel %vm949, %v2908, 0.0
      %2927 = vadd.xlane.f32.xlu0 %v2926
      %v2928 = vpop.xlane.xlu0 %2927
      %v2929 = vsel %vm949, %v2910, 0.0
      %2930 = vadd.xlane.f32.xlu0 %v2929
      %v2931 = vpop.xlane.xlu0 %2930
      %v2932 = vsel %vm949, %v2912, 0.0
      %2933 = vadd.xlane.f32.xlu0 %v2932
      %v2934 = vpop.xlane.xlu0 %2933
      %v2935 = vsel %vm949, %v2914, 0.0
      %2936 = vadd.xlane.f32.xlu0 %v2935
      %v2937 = vpop.xlane.xlu0 %2936
      %v2938 = vsel %vm949, %v2916, 0.0
      %2939 = vadd.xlane.f32.xlu0 %v2938
      %v2940 = vpop.xlane.xlu0 %2939
      %v2941 = vsel %vm949, %v2918, 0.0
      %2942 = vadd.xlane.f32.xlu0 %v2941
      %v2943 = vpop.xlane.xlu0 %2942
      %v2944 = vsel %vm949, %v2920, 0.0
      %2945 = vadd.xlane.f32.xlu0 %v2944
      %v2946 = vpop.xlane.xlu0 %2945
      %v2947 = vsel %vm949, %v2922, 0.0
      %2948 = vadd.xlane.f32.xlu0 %v2947
      %v2949 = vpop.xlane.xlu0 %2948
      %v2950 = vrcp.pop %v2925
      %v2951 = vrcp.pop %v2928
      %v2952 = vrcp.pop %v2931
      %v2953 = vrcp.pop %v2934
      %v2954 = vrcp.pop %v2937
      %v2955 = vrcp.pop %v2940
      %v2956 = vrcp.pop %v2943
      %v2957 = vrcp.pop %v2946
      %v2958 = vrcp.pop %v2949
      %v2959 = vmul.f32 %v2906, %v2950
      %v2960 = vmul.f32 %v2908, %v2951
      %v2961 = vmul.f32 %v2910, %v2952
      %v2962 = vmul.f32 %v2912, %v2953
      %v2963 = vmul.f32 %v2914, %v2954
      %v2964 = vmul.f32 %v2916, %v2955
      %v2965 = vmul.f32 %v2918, %v2956
      %v2966 = vmul.f32 %v2920, %v2957
      %v2967 = vmul.f32 %v2922, %v2958
      %v2969 = vsel %vm949, %v2959, 0
      %v2972 = vsel %vm949, %v2960, 0
      %v2975 = vsel %vm949, %v2961, 0
      %v2978 = vsel %vm949, %v2962, 0
      %v2981 = vsel %vm949, %v2963, 0
      %v2984 = vsel %vm949, %v2964, 0
      %v2987 = vsel %vm949, %v2965, 0
      %v2990 = vsel %vm949, %v2966, 0
      %v2993 = vsel %vm949, %v2967, 0
      %2995 = vmatprep.subr.mxu0 0.0
      %2996 = vmatpush1.msra.mxu0 %v2653
      %2997 = vmatprep.subr.mxu0 0.0
      %2998 = vmatpush1.msra.mxu0 %v2658
      %2999 = vmatprep.subr.mxu0 0.0
      %3000 = vmatpush1.msra.mxu0 %v2663
      %3001 = vmatprep.subr.mxu0 0.0
      %3002 = vmatpush1.msra.mxu0 %v2668
      %3003 = vmatprep.subr.mxu0 0.0
      %3004 = vmatpush1.msra.mxu0 %v2673
      %3005 = vmatprep.subr.mxu0 0.0
      %3006 = vmatpush1.msra.mxu0 %v2678
      %3007 = vmatprep.subr.mxu0 0.0
      %3008 = vmatpush1.msra.mxu0 %v2683
      %3009 = vmatprep.subr.mxu0 0.0
      %3010 = vmatpush1.msra.mxu0 %v2688
      %3011 = vmatprep.subr.mxu0 0.0
      %3012 = vmatpush1.msra.mxu0 %v2693
      %3013 = vmatprep.subr.mxu0 0.0
      %3014 = vmatpush1.msra.mxu0 0.0
      %3015 = vmatprep.subr.mxu0 0.0
      %3016 = vmatpush1.msra.mxu0 0.0
      %3017 = vmatprep.subr.mxu0 0.0
      %3018 = vmatpush1.msra.mxu0 0.0
      %3019 = vmatprep.subr.mxu0 0.0
      %3020 = vmatpush1.msra.mxu0 0.0
      %3021 = vmatprep.subr.mxu0 0.0
      %3022 = vmatpush1.msra.mxu0 0.0
      %3023 = vmatprep.subr.mxu0 0.0
      %3024 = vmatpush1.msra.mxu0 0.0
      %3025 = vmatprep.subr.mxu0 0.0
      %3026 = vmatpush1.msra.mxu0 0.0
      %3027 = vmatprep.subr.mxu0 0.0
      %3028 = vmatpush1.msra.mxu0 0.0
      %3029 = vmatprep.subr.mxu0 0.0
      %3030 = vmatpush1.msra.mxu0 0.0
      %3031 = vmatprep.subr.mxu0 0.0
      %3032 = vmatpush1.msra.mxu0 0.0
      %3033 = vmatprep.subr.mxu0 0.0
      %3034 = vmatpush1.msra.mxu0 0.0
      %3035 = vmatprep.subr.mxu0 0.0
      %3036 = vmatpush1.msra.mxu0 0.0
      %3037 = vmatprep.subr.mxu0 0.0
      %3038 = vmatpush1.msra.mxu0 0.0
      %3039 = vmatprep.subr.mxu0 0.0
      %3040 = vmatpush1.msra.mxu0 0.0
      %3041 = vmatprep.subr.mxu0 0.0
      %3042 = vmatpush1.msra.mxu0 0.0
      %3043 = vmatprep.subr.mxu0 0.0
      %3044 = vmatpush1.msra.mxu0 0.0
      %3045 = vmatprep.subr.mxu0 0.0
      %3046 = vmatpush1.msra.mxu0 0.0
      %3047 = vmatprep.subr.mxu0 0.0
      %3048 = vmatpush1.msra.mxu0 0.0
      %3049 = vmatprep.subr.mxu0 0.0
      %3050 = vmatpush1.msra.mxu0 0.0
      %3051 = vmatprep.subr.mxu0 0.0
      %3052 = vmatpush1.msra.mxu0 0.0
      %3053 = vmatprep.subr.mxu0 0.0
      %3054 = vmatpush1.msra.mxu0 0.0
      %3055 = vmatprep.subr.mxu0 0.0
      %3056 = vmatpush1.msra.mxu0 0.0
      %3057 = vmatprep.subr.mxu0 0.0
      %3058 = vmatpush1.msra.mxu0 0.0
      %3059 = vmatprep.mubr.f32.mxu0 0.0
      %3060 = vmatmul.mubr.f32.gmra.mrb[0].mxu0 %v2969
      %v3061 = vpop.f32.mrb[0].mxu0
      %v3062 = vadd.f32 0.0, %v3061
      %v3063 = vpop.f32.mrb[0].mxu0
      %3064 = vmatprep.mubr.f32.mxu0 0.0
      %3065 = vmatmul.mubr.f32.gmra.mrb[0].mxu0 %v2972
      %v3066 = vpop.f32.mrb[0].mxu0
      %v3067 = vadd.f32 0.0, %v3066
      %v3068 = vpop.f32.mrb[0].mxu0
      %3069 = vmatprep.mubr.f32.mxu0 0.0
      %3070 = vmatmul.mubr.f32.gmra.mrb[0].mxu0 %v2975
      %v3071 = vpop.f32.mrb[0].mxu0
      %v3072 = vadd.f32 0.0, %v3071
      %v3073 = vpop.f32.mrb[0].mxu0
      %3074 = vmatprep.mubr.f32.mxu0 0.0
      %3075 = vmatmul.mubr.f32.gmra.mrb[0].mxu0 %v2978
      %v3076 = vpop.f32.mrb[0].mxu0
      %v3077 = vadd.f32 0.0, %v3076
      %v3078 = vpop.f32.mrb[0].mxu0
      %3079 = vmatprep.mubr.f32.mxu0 0.0
      %3080 = vmatmul.mubr.f32.gmra.mrb[0].mxu0 %v2981
      %v3081 = vpop.f32.mrb[0].mxu0
      %v3082 = vadd.f32 0.0, %v3081
      %v3083 = vpop.f32.mrb[0].mxu0
      %3084 = vmatprep.mubr.f32.mxu0 0.0
      %3085 = vmatmul.mubr.f32.gmra.mrb[0].mxu0 %v2984
      %v3086 = vpop.f32.mrb[0].mxu0
      %v3087 = vadd.f32 0.0, %v3086
      %v3088 = vpop.f32.mrb[0].mxu0
      %3089 = vmatprep.mubr.f32.mxu0 0.0
      %3090 = vmatmul.mubr.f32.gmra.mrb[0].mxu0 %v2987
      %v3091 = vpop.f32.mrb[0].mxu0
      %v3092 = vadd.f32 0.0, %v3091
      %v3093 = vpop.f32.mrb[0].mxu0
      %3094 = vmatprep.mubr.f32.mxu0 0.0
      %3095 = vmatmul.mubr.f32.gmra.mrb[0].mxu0 %v2990
      %v3096 = vpop.f32.mrb[0].mxu0
      %v3097 = vadd.f32 0.0, %v3096
      %v3098 = vpop.f32.mrb[0].mxu0
      %3099 = vmatprep.mubr.f32.mxu0 0.0
      %3100 = vmatmul.mubr.f32.gmra.mrb[0].mxu0 %v2993
      %v3101 = vpop.f32.mrb[0].mxu0
      %v3102 = vadd.f32 0.0, %v3101
      %v3103 = vpop.f32.mrb[0].mxu0
      %3104 = vdwg.mxu0
      %v3105 = vld [vmem:[%s8] sm:$0xff]
      %v3106 = vld [vmem:[%s8 + $0x8] sm:$0xff]
      %v3107 = vld [vmem:[%s8 + $0x10] sm:$0xff]
      %v3108 = vld [vmem:[%s8 + $0x18] sm:$0xff]
      %v3109 = vld [vmem:[%s1190] sm:$0xff]
      %v3110 = vld [vmem:[%s1190 + $0x8] sm:$0xff]
      %v3111 = vld [vmem:[%s1190 + $0x10] sm:$0xff]
      %v3112 = vld [vmem:[%s1190 + $0x18] sm:$0xff]
      %v3113 = vld [vmem:[%s1190 + $0x20] sm:$0xff]
      %v3114 = vld [vmem:[%s1190 + $0x28] sm:$0xff]
      %v3115 = vld [vmem:[%s1190 + $0x30] sm:$0xff]
      %v3116 = vld [vmem:[%s1190 + $0x38] sm:$0xff]
      %v3117 = vld [vmem:[%s1199] sm:$0x1]
      %v3119 = vlaneseq
      %v3120 = vshrl.u32 %v3119, 7
      %v3121 = vsub.s32 0, %v3120
      %v3122 = vrot.slane %v3117, %v3121
      %3124 = vmatprep.subr.mxu0 0.0
      %3125 = vmatpush1.msra.mxu0 %v3109
      %3126 = vmatprep.subr.mxu0 0.0
      %3127 = vmatpush1.msra.mxu0 %v3110
      %3128 = vmatprep.subr.mxu0 0.0
      %3129 = vmatpush1.msra.mxu0 %v3111
      %3130 = vmatprep.subr.mxu0 0.0
      %3131 = vmatpush1.msra.mxu0 %v3112
      %3132 = vmatprep.subr.mxu0 0.0
      %3133 = vmatpush1.msra.mxu0 %v3113
      %3134 = vmatprep.subr.mxu0 0.0
      %3135 = vmatpush1.msra.mxu0 %v3114
      %3136 = vmatprep.subr.mxu0 0.0
      %3137 = vmatpush1.msra.mxu0 %v3115
      %3138 = vmatprep.subr.mxu0 0.0
      %3139 = vmatpush1.msra.mxu0 %v3116
      %3140 = vmatprep.subr.mxu0 0.0
      %3141 = vmatpush1.msra.mxu0 0.0
      %3142 = vmatprep.subr.mxu0 0.0
      %3143 = vmatpush1.msra.mxu0 0.0
      %3144 = vmatprep.subr.mxu0 0.0
      %3145 = vmatpush1.msra.mxu0 0.0
      %3146 = vmatprep.subr.mxu0 0.0
      %3147 = vmatpush1.msra.mxu0 0.0
      %3148 = vmatprep.subr.mxu0 0.0
      %3149 = vmatpush1.msra.mxu0 0.0
      %3150 = vmatprep.subr.mxu0 0.0
      %3151 = vmatpush1.msra.mxu0 0.0
      %3152 = vmatprep.subr.mxu0 0.0
      %3153 = vmatpush1.msra.mxu0 0.0
      %3154 = vmatprep.subr.mxu0 0.0
      %3155 = vmatpush1.msra.mxu0 0.0
      %3156 = vmatprep.subr.mxu0 0.0
      %3157 = vmatpush1.msra.mxu0 0.0
      %3158 = vmatprep.subr.mxu0 0.0
      %3159 = vmatpush1.msra.mxu0 0.0
      %3160 = vmatprep.subr.mxu0 0.0
      %3161 = vmatpush1.msra.mxu0 0.0
      %3162 = vmatprep.subr.mxu0 0.0
      %3163 = vmatpush1.msra.mxu0 0.0
      %3164 = vmatprep.subr.mxu0 0.0
      %3165 = vmatpush1.msra.mxu0 0.0
      %3166 = vmatprep.subr.mxu0 0.0
      %3167 = vmatpush1.msra.mxu0 0.0
      %3168 = vmatprep.subr.mxu0 0.0
      %3169 = vmatpush1.msra.mxu0 0.0
      %3170 = vmatprep.subr.mxu0 0.0
      %3171 = vmatpush1.msra.mxu0 0.0
      %3172 = vmatprep.subr.mxu0 0.0
      %3173 = vmatpush1.msra.mxu0 0.0
      %3174 = vmatprep.subr.mxu0 0.0
      %3175 = vmatpush1.msra.mxu0 0.0
      %3176 = vmatprep.subr.mxu0 0.0
      %3177 = vmatpush1.msra.mxu0 0.0
      %3178 = vmatprep.subr.mxu0 0.0
      %3179 = vmatpush1.msra.mxu0 0.0
      %3180 = vmatprep.subr.mxu0 0.0
      %3181 = vmatpush1.msra.mxu0 0.0
      %3182 = vmatprep.subr.mxu0 0.0
      %3183 = vmatpush1.msra.mxu0 0.0
      %3184 = vmatprep.subr.mxu0 0.0
      %3185 = vmatpush1.msra.mxu0 0.0
      %3186 = vmatprep.subr.mxu0 0.0
      %3187 = vmatpush1.msra.mxu0 0.0
      %3188 = vmatprep.mubr.f32.mxu0 0.0
      %3189 = vmatmul.mubr.f32.gmra.mrb[0].mxu0 %v2310
      %v3190 = vpop.f32.mrb[0].mxu0
      %v3191 = vadd.f32 %v3122, %v3190
      %v3192 = vpop.f32.mrb[0].mxu0
      %3193 = vmatprep.mubr.f32.mxu0 0.0
      %3194 = vmatmul.mubr.f32.gmra.mrb[0].mxu0 %v2313
      %v3195 = vpop.f32.mrb[0].mxu0
      %v3196 = vadd.f32 %v3122, %v3195
      %v3197 = vpop.f32.mrb[0].mxu0
      %3198 = vmatprep.mubr.f32.mxu0 0.0
      %3199 = vmatmul.mubr.f32.gmra.mrb[0].mxu0 %v2316
      %v3200 = vpop.f32.mrb[0].mxu0
      %v3201 = vadd.f32 %v3122, %v3200
      %v3202 = vpop.f32.mrb[0].mxu0
      %3203 = vmatprep.mubr.f32.mxu0 0.0
      %3204 = vmatmul.mubr.f32.gmra.mrb[0].mxu0 %v2319
      %v3205 = vpop.f32.mrb[0].mxu0
      %v3206 = vadd.f32 %v3122, %v3205
      %v3207 = vpop.f32.mrb[0].mxu0
      %3208 = vmatprep.mubr.f32.mxu0 0.0
      %3209 = vmatmul.mubr.f32.gmra.mrb[0].mxu0 %v2322
      %v3210 = vpop.f32.mrb[0].mxu0
      %v3211 = vadd.f32 %v3122, %v3210
      %v3212 = vpop.f32.mrb[0].mxu0
      %3213 = vmatprep.mubr.f32.mxu0 0.0
      %3214 = vmatmul.mubr.f32.gmra.mrb[0].mxu0 %v2325
      %v3215 = vpop.f32.mrb[0].mxu0
      %v3216 = vadd.f32 %v3122, %v3215
      %v3217 = vpop.f32.mrb[0].mxu0
      %3218 = vmatprep.mubr.f32.mxu0 0.0
      %3219 = vmatmul.mubr.f32.gmra.mrb[0].mxu0 %v2328
      %v3220 = vpop.f32.mrb[0].mxu0
      %v3221 = vadd.f32 %v3122, %v3220
      %v3222 = vpop.f32.mrb[0].mxu0
      %3223 = vmatprep.mubr.f32.mxu0 0.0
      %3224 = vmatmul.mubr.f32.gmra.mrb[0].mxu0 %v2331
      %v3225 = vpop.f32.mrb[0].mxu0
      %v3226 = vadd.f32 %v3122, %v3225
      %v3227 = vpop.f32.mrb[0].mxu0
      %3228 = vmatprep.mubr.f32.mxu0 0.0
      %3229 = vmatmul.mubr.f32.gmra.mrb[0].mxu0 %v2334
      %v3230 = vpop.f32.mrb[0].mxu0
      %v3231 = vadd.f32 %v3122, %v3230
      %v3232 = vpop.f32.mrb[0].mxu0
      %3233 = vdwg.mxu0
      %v3234 = vld [vmem:[%s1317] sm:$0xff]
      %v3235 = vld [vmem:[%s1317 + $0x8] sm:$0xff]
      %v3236 = vld [vmem:[%s1317 + $0x10] sm:$0xff]
      %v3237 = vld [vmem:[%s1317 + $0x18] sm:$0xff]
      %v3238 = vld [vmem:[%s1317 + $0x20] sm:$0xff]
      %v3239 = vld [vmem:[%s1317 + $0x28] sm:$0xff]
      %v3240 = vld [vmem:[%s1317 + $0x30] sm:$0xff]
      %v3241 = vld [vmem:[%s1317 + $0x38] sm:$0xff]
      %v3242 = vld [vmem:[%s1326] sm:$0x1]
      %v3244 = vlaneseq
      %v3245 = vshrl.u32 %v3244, 7
      %v3246 = vsub.s32 0, %v3245
      %v3247 = vrot.slane %v3242, %v3246
      %3249 = vmatprep.subr.mxu0 0.0
      %3250 = vmatpush1.msra.mxu0 %v3234
      %3251 = vmatprep.subr.mxu0 0.0
      %3252 = vmatpush1.msra.mxu0 %v3235
      %3253 = vmatprep.subr.mxu0 0.0
      %3254 = vmatpush1.msra.mxu0 %v3236
      %3255 = vmatprep.subr.mxu0 0.0
      %3256 = vmatpush1.msra.mxu0 %v3237
      %3257 = vmatprep.subr.mxu0 0.0
      %3258 = vmatpush1.msra.mxu0 %v3238
      %3259 = vmatprep.subr.mxu0 0.0
      %3260 = vmatpush1.msra.mxu0 %v3239
      %3261 = vmatprep.subr.mxu0 0.0
      %3262 = vmatpush1.msra.mxu0 %v3240
      %3263 = vmatprep.subr.mxu0 0.0
      %3264 = vmatpush1.msra.mxu0 %v3241
      %3265 = vmatprep.subr.mxu0 0.0
      %3266 = vmatpush1.msra.mxu0 0.0
      %3267 = vmatprep.subr.mxu0 0.0
      %3268 = vmatpush1.msra.mxu0 0.0
      %3269 = vmatprep.subr.mxu0 0.0
      %3270 = vmatpush1.msra.mxu0 0.0
      %3271 = vmatprep.subr.mxu0 0.0
      %3272 = vmatpush1.msra.mxu0 0.0
      %3273 = vmatprep.subr.mxu0 0.0
      %3274 = vmatpush1.msra.mxu0 0.0
      %3275 = vmatprep.subr.mxu0 0.0
      %3276 = vmatpush1.msra.mxu0 0.0
      %3277 = vmatprep.subr.mxu0 0.0
      %3278 = vmatpush1.msra.mxu0 0.0
      %3279 = vmatprep.subr.mxu0 0.0
      %3280 = vmatpush1.msra.mxu0 0.0
      %3281 = vmatprep.subr.mxu0 0.0
      %3282 = vmatpush1.msra.mxu0 0.0
      %3283 = vmatprep.subr.mxu0 0.0
      %3284 = vmatpush1.msra.mxu0 0.0
      %3285 = vmatprep.subr.mxu0 0.0
      %3286 = vmatpush1.msra.mxu0 0.0
      %3287 = vmatprep.subr.mxu0 0.0
      %3288 = vmatpush1.msra.mxu0 0.0
      %3289 = vmatprep.subr.mxu0 0.0
      %3290 = vmatpush1.msra.mxu0 0.0
      %3291 = vmatprep.subr.mxu0 0.0
      %3292 = vmatpush1.msra.mxu0 0.0
      %3293 = vmatprep.subr.mxu0 0.0
      %3294 = vmatpush1.msra.mxu0 0.0
      %3295 = vmatprep.subr.mxu0 0.0
      %3296 = vmatpush1.msra.mxu0 0.0
      %3297 = vmatprep.subr.mxu0 0.0
      %3298 = vmatpush1.msra.mxu0 0.0
      %3299 = vmatprep.subr.mxu0 0.0
      %3300 = vmatpush1.msra.mxu0 0.0
      %3301 = vmatprep.subr.mxu0 0.0
      %3302 = vmatpush1.msra.mxu0 0.0
      %3303 = vmatprep.subr.mxu0 0.0
      %3304 = vmatpush1.msra.mxu0 0.0
      %3305 = vmatprep.subr.mxu0 0.0
      %3306 = vmatpush1.msra.mxu0 0.0
      %3307 = vmatprep.subr.mxu0 0.0
      %3308 = vmatpush1.msra.mxu0 0.0
      %3309 = vmatprep.subr.mxu0 0.0
      %3310 = vmatpush1.msra.mxu0 0.0
      %3311 = vmatprep.subr.mxu0 0.0
      %3312 = vmatpush1.msra.mxu0 0.0
      %3313 = vmatprep.mubr.f32.mxu0 0.0
      %3314 = vmatmul.mubr.f32.gmra.mrb[0].mxu0 %v2310
      %v3315 = vpop.f32.mrb[0].mxu0
      %v3316 = vadd.f32 %v3247, %v3315
      %v3317 = vpop.f32.mrb[0].mxu0
      %3318 = vmatprep.mubr.f32.mxu0 0.0
      %3319 = vmatmul.mubr.f32.gmra.mrb[0].mxu0 %v2313
      %v3320 = vpop.f32.mrb[0].mxu0
      %v3321 = vadd.f32 %v3247, %v3320
      %v3322 = vpop.f32.mrb[0].mxu0
      %3323 = vmatprep.mubr.f32.mxu0 0.0
      %3324 = vmatmul.mubr.f32.gmra.mrb[0].mxu0 %v2316
      %v3325 = vpop.f32.mrb[0].mxu0
      %v3326 = vadd.f32 %v3247, %v3325
      %v3327 = vpop.f32.mrb[0].mxu0
      %3328 = vmatprep.mubr.f32.mxu0 0.0
      %3329 = vmatmul.mubr.f32.gmra.mrb[0].mxu0 %v2319
      %v3330 = vpop.f32.mrb[0].mxu0
      %v3331 = vadd.f32 %v3247, %v3330
      %v3332 = vpop.f32.mrb[0].mxu0
      %3333 = vmatprep.mubr.f32.mxu0 0.0
      %3334 = vmatmul.mubr.f32.gmra.mrb[0].mxu0 %v2322
      %v3335 = vpop.f32.mrb[0].mxu0
      %v3336 = vadd.f32 %v3247, %v3335
      %v3337 = vpop.f32.mrb[0].mxu0
      %3338 = vmatprep.mubr.f32.mxu0 0.0
      %3339 = vmatmul.mubr.f32.gmra.mrb[0].mxu0 %v2325
      %v3340 = vpop.f32.mrb[0].mxu0
      %v3341 = vadd.f32 %v3247, %v3340
      %v3342 = vpop.f32.mrb[0].mxu0
      %3343 = vmatprep.mubr.f32.mxu0 0.0
      %3344 = vmatmul.mubr.f32.gmra.mrb[0].mxu0 %v2328
      %v3345 = vpop.f32.mrb[0].mxu0
      %v3346 = vadd.f32 %v3247, %v3345
      %v3347 = vpop.f32.mrb[0].mxu0
      %3348 = vmatprep.mubr.f32.mxu0 0.0
      %3349 = vmatmul.mubr.f32.gmra.mrb[0].mxu0 %v2331
      %v3350 = vpop.f32.mrb[0].mxu0
      %v3351 = vadd.f32 %v3247, %v3350
      %v3352 = vpop.f32.mrb[0].mxu0
      %3353 = vmatprep.mubr.f32.mxu0 0.0
      %3354 = vmatmul.mubr.f32.gmra.mrb[0].mxu0 %v2334
      %v3355 = vpop.f32.mrb[0].mxu0
      %v3356 = vadd.f32 %v3247, %v3355
      %v3357 = vpop.f32.mrb[0].mxu0
      %3358 = vdwg.mxu0
      %v3359 = vld [vmem:[%s1444] sm:$0xff]
      %v3360 = vld [vmem:[%s1444 + $0x8] sm:$0xff]
      %v3361 = vld [vmem:[%s1444 + $0x10] sm:$0xff]
      %v3362 = vld [vmem:[%s1444 + $0x18] sm:$0xff]
      %v3363 = vld [vmem:[%s1444 + $0x20] sm:$0xff]
      %v3364 = vld [vmem:[%s1444 + $0x28] sm:$0xff]
      %v3365 = vld [vmem:[%s1444 + $0x30] sm:$0xff]
      %v3366 = vld [vmem:[%s1444 + $0x38] sm:$0xff]
      %v3367 = vld [vmem:[%s1453] sm:$0x1]
      %v3369 = vlaneseq
      %v3370 = vshrl.u32 %v3369, 7
      %v3371 = vsub.s32 0, %v3370
      %v3372 = vrot.slane %v3367, %v3371
      %3374 = vmatprep.subr.mxu0 0.0
      %3375 = vmatpush1.msra.mxu0 %v3359
      %3376 = vmatprep.subr.mxu0 0.0
      %3377 = vmatpush1.msra.mxu0 %v3360
      %3378 = vmatprep.subr.mxu0 0.0
      %3379 = vmatpush1.msra.mxu0 %v3361
      %3380 = vmatprep.subr.mxu0 0.0
      %3381 = vmatpush1.msra.mxu0 %v3362
      %3382 = vmatprep.subr.mxu0 0.0
      %3383 = vmatpush1.msra.mxu0 %v3363
      %3384 = vmatprep.subr.mxu0 0.0
      %3385 = vmatpush1.msra.mxu0 %v3364
      %3386 = vmatprep.subr.mxu0 0.0
      %3387 = vmatpush1.msra.mxu0 %v3365
      %3388 = vmatprep.subr.mxu0 0.0
      %3389 = vmatpush1.msra.mxu0 %v3366
      %3390 = vmatprep.subr.mxu0 0.0
      %3391 = vmatpush1.msra.mxu0 0.0
      %3392 = vmatprep.subr.mxu0 0.0
      %3393 = vmatpush1.msra.mxu0 0.0
      %3394 = vmatprep.subr.mxu0 0.0
      %3395 = vmatpush1.msra.mxu0 0.0
      %3396 = vmatprep.subr.mxu0 0.0
      %3397 = vmatpush1.msra.mxu0 0.0
      %3398 = vmatprep.subr.mxu0 0.0
      %3399 = vmatpush1.msra.mxu0 0.0
      %3400 = vmatprep.subr.mxu0 0.0
      %3401 = vmatpush1.msra.mxu0 0.0
      %3402 = vmatprep.subr.mxu0 0.0
      %3403 = vmatpush1.msra.mxu0 0.0
      %3404 = vmatprep.subr.mxu0 0.0
      %3405 = vmatpush1.msra.mxu0 0.0
      %3406 = vmatprep.subr.mxu0 0.0
      %3407 = vmatpush1.msra.mxu0 0.0
      %3408 = vmatprep.subr.mxu0 0.0
      %3409 = vmatpush1.msra.mxu0 0.0
      %3410 = vmatprep.subr.mxu0 0.0
      %3411 = vmatpush1.msra.mxu0 0.0
      %3412 = vmatprep.subr.mxu0 0.0
      %3413 = vmatpush1.msra.mxu0 0.0
      %3414 = vmatprep.subr.mxu0 0.0
      %3415 = vmatpush1.msra.mxu0 0.0
      %3416 = vmatprep.subr.mxu0 0.0
      %3417 = vmatpush1.msra.mxu0 0.0
      %3418 = vmatprep.subr.mxu0 0.0
      %3419 = vmatpush1.msra.mxu0 0.0
      %3420 = vmatprep.subr.mxu0 0.0
      %3421 = vmatpush1.msra.mxu0 0.0
      %3422 = vmatprep.subr.mxu0 0.0
      %3423 = vmatpush1.msra.mxu0 0.0
      %3424 = vmatprep.subr.mxu0 0.0
      %3425 = vmatpush1.msra.mxu0 0.0
      %3426 = vmatprep.subr.mxu0 0.0
      %3427 = vmatpush1.msra.mxu0 0.0
      %3428 = vmatprep.subr.mxu0 0.0
      %3429 = vmatpush1.msra.mxu0 0.0
      %3430 = vmatprep.subr.mxu0 0.0
      %3431 = vmatpush1.msra.mxu0 0.0
      %3432 = vmatprep.subr.mxu0 0.0
      %3433 = vmatpush1.msra.mxu0 0.0
      %3434 = vmatprep.subr.mxu0 0.0
      %3435 = vmatpush1.msra.mxu0 0.0
      %3436 = vmatprep.subr.mxu0 0.0
      %3437 = vmatpush1.msra.mxu0 0.0
      %3438 = vmatprep.mubr.f32.mxu0 0.0
      %3439 = vmatmul.mubr.f32.gmra.mrb[0].mxu0 %v2310
      %v3440 = vpop.f32.mrb[0].mxu0
      %v3441 = vadd.f32 %v3372, %v3440
      %v3442 = vpop.f32.mrb[0].mxu0
      %3443 = vmatprep.mubr.f32.mxu0 0.0
      %3444 = vmatmul.mubr.f32.gmra.mrb[0].mxu0 %v2313
      %v3445 = vpop.f32.mrb[0].mxu0
      %v3446 = vadd.f32 %v3372, %v3445
      %v3447 = vpop.f32.mrb[0].mxu0
      %3448 = vmatprep.mubr.f32.mxu0 0.0
      %3449 = vmatmul.mubr.f32.gmra.mrb[0].mxu0 %v2316
      %v3450 = vpop.f32.mrb[0].mxu0
      %v3451 = vadd.f32 %v3372, %v3450
      %v3452 = vpop.f32.mrb[0].mxu0
      %3453 = vmatprep.mubr.f32.mxu0 0.0
      %3454 = vmatmul.mubr.f32.gmra.mrb[0].mxu0 %v2319
      %v3455 = vpop.f32.mrb[0].mxu0
      %v3456 = vadd.f32 %v3372, %v3455
      %v3457 = vpop.f32.mrb[0].mxu0
      %3458 = vmatprep.mubr.f32.mxu0 0.0
      %3459 = vmatmul.mubr.f32.gmra.mrb[0].mxu0 %v2322
      %v3460 = vpop.f32.mrb[0].mxu0
      %v3461 = vadd.f32 %v3372, %v3460
      %v3462 = vpop.f32.mrb[0].mxu0
      %3463 = vmatprep.mubr.f32.mxu0 0.0
      %3464 = vmatmul.mubr.f32.gmra.mrb[0].mxu0 %v2325
      %v3465 = vpop.f32.mrb[0].mxu0
      %v3466 = vadd.f32 %v3372, %v3465
      %v3467 = vpop.f32.mrb[0].mxu0
      %3468 = vmatprep.mubr.f32.mxu0 0.0
      %3469 = vmatmul.mubr.f32.gmra.mrb[0].mxu0 %v2328
      %v3470 = vpop.f32.mrb[0].mxu0
      %v3471 = vadd.f32 %v3372, %v3470
      %v3472 = vpop.f32.mrb[0].mxu0
      %3473 = vmatprep.mubr.f32.mxu0 0.0
      %3474 = vmatmul.mubr.f32.gmra.mrb[0].mxu0 %v2331
      %v3475 = vpop.f32.mrb[0].mxu0
      %v3476 = vadd.f32 %v3372, %v3475
      %v3477 = vpop.f32.mrb[0].mxu0
      %3478 = vmatprep.mubr.f32.mxu0 0.0
      %3479 = vmatmul.mubr.f32.gmra.mrb[0].mxu0 %v2334
      %v3480 = vpop.f32.mrb[0].mxu0
      %v3481 = vadd.f32 %v3372, %v3480
      %v3482 = vpop.f32.mrb[0].mxu0
      %3483 = vdwg.mxu0
      %v3484 = vld [vmem:[%s1571] sm:$0xff]
      %v3485 = vld [vmem:[%s1571 + $0x8] sm:$0xff]
      %v3486 = vld [vmem:[%s1571 + $0x10] sm:$0xff]
      %v3487 = vld [vmem:[%s1571 + $0x18] sm:$0xff]
      %v3488 = vld [vmem:[%s1571 + $0x20] sm:$0xff]
      %v3489 = vld [vmem:[%s1571 + $0x28] sm:$0xff]
      %v3490 = vld [vmem:[%s1571 + $0x30] sm:$0xff]
      %v3491 = vld [vmem:[%s1571 + $0x38] sm:$0xff]
      %v3492 = vld [vmem:[%s1571 + $0x40] sm:$0xff]
      %v3494 = vsel %vm784, %v3191, 0
      %v3497 = vsel %vm784, %v3196, 0
      %v3500 = vsel %vm784, %v3201, 0
      %v3503 = vsel %vm784, %v3206, 0
      %v3506 = vsel %vm784, %v3211, 0
      %v3509 = vsel %vm784, %v3216, 0
      %v3512 = vsel %vm784, %v3221, 0
      %v3515 = vsel %vm784, %v3226, 0
      %v3518 = vsel %vm784, %v3231, 0
      %v3521 = vsel %vm784, %v3316, 0
      %v3524 = vsel %vm784, %v3321, 0
      %v3527 = vsel %vm784, %v3326, 0
      %v3530 = vsel %vm784, %v3331, 0
      %v3533 = vsel %vm784, %v3336, 0
      %v3536 = vsel %vm784, %v3341, 0
      %v3539 = vsel %vm784, %v3346, 0
      %v3542 = vsel %vm784, %v3351, 0
      %v3545 = vsel %vm784, %v3356, 0
      %3547 = vmatprep.subr.mxu0 0.0
      %3548 = vmatpush1.xpose.msra.mxu0 %v3521
      %3549 = vmatprep.subr.mxu0 0.0
      %3550 = vmatpush1.xpose.msra.mxu0 %v3524
      %3551 = vmatprep.subr.mxu0 0.0
      %3552 = vmatpush1.xpose.msra.mxu0 %v3527
      %3553 = vmatprep.subr.mxu0 0.0
      %3554 = vmatpush1.xpose.msra.mxu0 %v3530
      %3555 = vmatprep.subr.mxu0 0.0
      %3556 = vmatpush1.xpose.msra.mxu0 %v3533
      %3557 = vmatprep.subr.mxu0 0.0
      %3558 = vmatpush1.xpose.msra.mxu0 %v3536
      %3559 = vmatprep.subr.mxu0 0.0
      %3560 = vmatpush1.xpose.msra.mxu0 %v3539
      %3561 = vmatprep.subr.mxu0 0.0
      %3562 = vmatpush1.xpose.msra.mxu0 %v3542
      %3563 = vmatprep.subr.mxu0 0.0
      %3564 = vmatpush1.xpose.msra.mxu0 %v3545
      %3565 = vmatprep.subr.mxu0 0.0
      %3566 = vmatpush1.xpose.msra.mxu0 0.0
      %3567 = vmatprep.subr.mxu0 0.0
      %3568 = vmatpush1.xpose.msra.mxu0 0.0
      %3569 = vmatprep.subr.mxu0 0.0
      %3570 = vmatpush1.xpose.msra.mxu0 0.0
      %3571 = vmatprep.subr.mxu0 0.0
      %3572 = vmatpush1.xpose.msra.mxu0 0.0
      %3573 = vmatprep.subr.mxu0 0.0
      %3574 = vmatpush1.xpose.msra.mxu0 0.0
      %3575 = vmatprep.subr.mxu0 0.0
      %3576 = vmatpush1.xpose.msra.mxu0 0.0
      %3577 = vmatprep.subr.mxu0 0.0
      %3578 = vmatpush1.xpose.msra.mxu0 0.0
      %3579 = vmatprep.subr.mxu0 0.0
      %3580 = vmatpush1.xpose.msra.mxu0 0.0
      %3581 = vmatprep.subr.mxu0 0.0
      %3582 = vmatpush1.xpose.msra.mxu0 0.0
      %3583 = vmatprep.subr.mxu0 0.0
      %3584 = vmatpush1.xpose.msra.mxu0 0.0
      %3585 = vmatprep.subr.mxu0 0.0
      %3586 = vmatpush1.xpose.msra.mxu0 0.0
      %3587 = vmatprep.subr.mxu0 0.0
      %3588 = vmatpush1.xpose.msra.mxu0 0.0
      %3589 = vmatprep.subr.mxu0 0.0
      %3590 = vmatpush1.xpose.msra.mxu0 0.0
      %3591 = vmatprep.subr.mxu0 0.0
      %3592 = vmatpush1.xpose.msra.mxu0 0.0
      %3593 = vmatprep.subr.mxu0 0.0
      %3594 = vmatpush1.xpose.msra.mxu0 0.0
      %3595 = vmatprep.subr.mxu0 0.0
      %3596 = vmatpush1.xpose.msra.mxu0 0.0
      %3597 = vmatprep.subr.mxu0 0.0
      %3598 = vmatpush1.xpose.msra.mxu0 0.0
      %3599 = vmatprep.subr.mxu0 0.0
      %3600 = vmatpush1.xpose.msra.mxu0 0.0
      %3601 = vmatprep.subr.mxu0 0.0
      %3602 = vmatpush1.xpose.msra.mxu0 0.0
      %3603 = vmatprep.subr.mxu0 0.0
      %3604 = vmatpush1.xpose.msra.mxu0 0.0
      %3605 = vmatprep.subr.mxu0 0.0
      %3606 = vmatpush1.xpose.msra.mxu0 0.0
      %3607 = vmatprep.subr.mxu0 0.0
      %3608 = vmatpush1.xpose.msra.mxu0 0.0
      %3609 = vmatprep.subr.mxu0 0.0
      %3610 = vmatpush1.xpose.msra.mxu0 0.0
      %3611 = vmatprep.mubr.f32.mxu0 0.0
      %3612 = vmatmul.mubr.f32.gmra.mrb[0].mxu0 %v3494
      %v3613 = vpop.f32.mrb[0].mxu0
      %v3614 = vadd.f32 %v3484, %v3613
      %v3615 = vpop.f32.mrb[0].mxu0
      %3616 = vmatprep.mubr.f32.mxu0 0.0
      %3617 = vmatmul.mubr.f32.gmra.mrb[0].mxu0 %v3497
      %v3618 = vpop.f32.mrb[0].mxu0
      %v3619 = vadd.f32 %v3485, %v3618
      %v3620 = vpop.f32.mrb[0].mxu0
      %3621 = vmatprep.mubr.f32.mxu0 0.0
      %3622 = vmatmul.mubr.f32.gmra.mrb[0].mxu0 %v3500
      %v3623 = vpop.f32.mrb[0].mxu0
      %v3624 = vadd.f32 %v3486, %v3623
      %v3625 = vpop.f32.mrb[0].mxu0
      %3626 = vmatprep.mubr.f32.mxu0 0.0
      %3627 = vmatmul.mubr.f32.gmra.mrb[0].mxu0 %v3503
      %v3628 = vpop.f32.mrb[0].mxu0
      %v3629 = vadd.f32 %v3487, %v3628
      %v3630 = vpop.f32.mrb[0].mxu0
      %3631 = vmatprep.mubr.f32.mxu0 0.0
      %3632 = vmatmul.mubr.f32.gmra.mrb[0].mxu0 %v3506
      %v3633 = vpop.f32.mrb[0].mxu0
      %v3634 = vadd.f32 %v3488, %v3633
      %v3635 = vpop.f32.mrb[0].mxu0
      %3636 = vmatprep.mubr.f32.mxu0 0.0
      %3637 = vmatmul.mubr.f32.gmra.mrb[0].mxu0 %v3509
      %v3638 = vpop.f32.mrb[0].mxu0
      %v3639 = vadd.f32 %v3489, %v3638
      %v3640 = vpop.f32.mrb[0].mxu0
      %3641 = vmatprep.mubr.f32.mxu0 0.0
      %3642 = vmatmul.mubr.f32.gmra.mrb[0].mxu0 %v3512
      %v3643 = vpop.f32.mrb[0].mxu0
      %v3644 = vadd.f32 %v3490, %v3643
      %v3645 = vpop.f32.mrb[0].mxu0
      %3646 = vmatprep.mubr.f32.mxu0 0.0
      %3647 = vmatmul.mubr.f32.gmra.mrb[0].mxu0 %v3515
      %v3648 = vpop.f32.mrb[0].mxu0
      %v3649 = vadd.f32 %v3491, %v3648
      %v3650 = vpop.f32.mrb[0].mxu0
      %3651 = vmatprep.mubr.f32.mxu0 0.0
      %3652 = vmatmul.mubr.f32.gmra.mrb[0].mxu0 %v3518
      %v3653 = vpop.f32.mrb[0].mxu0
      %v3654 = vadd.f32 %v3492, %v3653
      %v3655 = vpop.f32.mrb[0].mxu0
      %3656 = vdwg.mxu0
      %v3657 = vsel %vm949, %v3614, -inf
      %3658 = vmax.xlane.f32.xlu0 %v3657
      %v3659 = vpop.xlane.xlu0 %3658
      %v3660 = vsel %vm949, %v3619, -inf
      %3661 = vmax.xlane.f32.xlu0 %v3660
      %v3662 = vpop.xlane.xlu0 %3661
      %v3663 = vsel %vm949, %v3624, -inf
      %3664 = vmax.xlane.f32.xlu0 %v3663
      %v3665 = vpop.xlane.xlu0 %3664
      %v3666 = vsel %vm949, %v3629, -inf
      %3667 = vmax.xlane.f32.xlu0 %v3666
      %v3668 = vpop.xlane.xlu0 %3667
      %v3669 = vsel %vm949, %v3634, -inf
      %3670 = vmax.xlane.f32.xlu0 %v3669
      %v3671 = vpop.xlane.xlu0 %3670
      %v3672 = vsel %vm949, %v3639, -inf
      %3673 = vmax.xlane.f32.xlu0 %v3672
      %v3674 = vpop.xlane.xlu0 %3673
      %v3675 = vsel %vm949, %v3644, -inf
      %3676 = vmax.xlane.f32.xlu0 %v3675
      %v3677 = vpop.xlane.xlu0 %3676
      %v3678 = vsel %vm949, %v3649, -inf
      %3679 = vmax.xlane.f32.xlu0 %v3678
      %v3680 = vpop.xlane.xlu0 %3679
      %v3681 = vsel %vm949, %v3654, -inf
      %3682 = vmax.xlane.f32.xlu0 %v3681
      %v3683 = vpop.xlane.xlu0 %3682
      %v3684 = vsub.f32 %v3614, %v3659
      %v3685 = vsub.f32 %v3619, %v3662
      %v3686 = vsub.f32 %v3624, %v3665
      %v3687 = vsub.f32 %v3629, %v3668
      %v3688 = vsub.f32 %v3634, %v3671
      %v3689 = vsub.f32 %v3639, %v3674
      %v3690 = vsub.f32 %v3644, %v3677
      %v3691 = vsub.f32 %v3649, %v3680
      %v3692 = vsub.f32 %v3654, %v3683
      %v3693 = vmul.f32 %v3684, 1.442695
      %v3694 = vpow.pop %v3693
      %v3695 = vmul.f32 %v3685, 1.442695
      %v3696 = vpow.pop %v3695
      %v3697 = vmul.f32 %v3686, 1.442695
      %v3698 = vpow.pop %v3697
      %v3699 = vmul.f32 %v3687, 1.442695
      %v3700 = vpow.pop %v3699
      %v3701 = vmul.f32 %v3688, 1.442695
      %v3702 = vpow.pop %v3701
      %v3703 = vmul.f32 %v3689, 1.442695
      %v3704 = vpow.pop %v3703
      %v3705 = vmul.f32 %v3690, 1.442695
      %v3706 = vpow.pop %v3705
      %v3707 = vmul.f32 %v3691, 1.442695
      %v3708 = vpow.pop %v3707
      %v3709 = vmul.f32 %v3692, 1.442695
      %v3710 = vpow.pop %v3709
      %v3711 = vsel %vm949, %v3694, 0.0
      %3712 = vadd.xlane.f32.xlu0 %v3711
      %v3713 = vpop.xlane.xlu0 %3712
      %v3714 = vsel %vm949, %v3696, 0.0
      %3715 = vadd.xlane.f32.xlu0 %v3714
      %v3716 = vpop.xlane.xlu0 %3715
      %v3717 = vsel %vm949, %v3698, 0.0
      %3718 = vadd.xlane.f32.xlu0 %v3717
      %v3719 = vpop.xlane.xlu0 %3718
      %v3720 = vsel %vm949, %v3700, 0.0
      %3721 = vadd.xlane.f32.xlu0 %v3720
      %v3722 = vpop.xlane.xlu0 %3721
      %v3723 = vsel %vm949, %v3702, 0.0
      %3724 = vadd.xlane.f32.xlu0 %v3723
      %v3725 = vpop.xlane.xlu0 %3724
      %v3726 = vsel %vm949, %v3704, 0.0
      %3727 = vadd.xlane.f32.xlu0 %v3726
      %v3728 = vpop.xlane.xlu0 %3727
      %v3729 = vsel %vm949, %v3706, 0.0
      %3730 = vadd.xlane.f32.xlu0 %v3729
      %v3731 = vpop.xlane.xlu0 %3730
      %v3732 = vsel %vm949, %v3708, 0.0
      %3733 = vadd.xlane.f32.xlu0 %v3732
      %v3734 = vpop.xlane.xlu0 %3733
      %v3735 = vsel %vm949, %v3710, 0.0
      %3736 = vadd.xlane.f32.xlu0 %v3735
      %v3737 = vpop.xlane.xlu0 %3736
      %v3738 = vrcp.pop %v3713
      %v3739 = vrcp.pop %v3716
      %v3740 = vrcp.pop %v3719
      %v3741 = vrcp.pop %v3722
      %v3742 = vrcp.pop %v3725
      %v3743 = vrcp.pop %v3728
      %v3744 = vrcp.pop %v3731
      %v3745 = vrcp.pop %v3734
      %v3746 = vrcp.pop %v3737
      %v3747 = vmul.f32 %v3694, %v3738
      %v3748 = vmul.f32 %v3696, %v3739
      %v3749 = vmul.f32 %v3698, %v3740
      %v3750 = vmul.f32 %v3700, %v3741
      %v3751 = vmul.f32 %v3702, %v3742
      %v3752 = vmul.f32 %v3704, %v3743
      %v3753 = vmul.f32 %v3706, %v3744
      %v3754 = vmul.f32 %v3708, %v3745
      %v3755 = vmul.f32 %v3710, %v3746
      %v3757 = vsel %vm949, %v3747, 0
      %v3760 = vsel %vm949, %v3748, 0
      %v3763 = vsel %vm949, %v3749, 0
      %v3766 = vsel %vm949, %v3750, 0
      %v3769 = vsel %vm949, %v3751, 0
      %v3772 = vsel %vm949, %v3752, 0
      %v3775 = vsel %vm949, %v3753, 0
      %v3778 = vsel %vm949, %v3754, 0
      %v3781 = vsel %vm949, %v3755, 0
      %3783 = vmatprep.subr.mxu0 0.0
      %3784 = vmatpush1.msra.mxu0 %v3441
      %3785 = vmatprep.subr.mxu0 0.0
      %3786 = vmatpush1.msra.mxu0 %v3446
      %3787 = vmatprep.subr.mxu0 0.0
      %3788 = vmatpush1.msra.mxu0 %v3451
      %3789 = vmatprep.subr.mxu0 0.0
      %3790 = vmatpush1.msra.mxu0 %v3456
      %3791 = vmatprep.subr.mxu0 0.0
      %3792 = vmatpush1.msra.mxu0 %v3461
      %3793 = vmatprep.subr.mxu0 0.0
      %3794 = vmatpush1.msra.mxu0 %v3466
      %3795 = vmatprep.subr.mxu0 0.0
      %3796 = vmatpush1.msra.mxu0 %v3471
      %3797 = vmatprep.subr.mxu0 0.0
      %3798 = vmatpush1.msra.mxu0 %v3476
      %3799 = vmatprep.subr.mxu0 0.0
      %3800 = vmatpush1.msra.mxu0 %v3481
      %3801 = vmatprep.subr.mxu0 0.0
      %3802 = vmatpush1.msra.mxu0 0.0
      %3803 = vmatprep.subr.mxu0 0.0
      %3804 = vmatpush1.msra.mxu0 0.0
      %3805 = vmatprep.subr.mxu0 0.0
      %3806 = vmatpush1.msra.mxu0 0.0
      %3807 = vmatprep.subr.mxu0 0.0
      %3808 = vmatpush1.msra.mxu0 0.0
      %3809 = vmatprep.subr.mxu0 0.0
      %3810 = vmatpush1.msra.mxu0 0.0
      %3811 = vmatprep.subr.mxu0 0.0
      %3812 = vmatpush1.msra.mxu0 0.0
      %3813 = vmatprep.subr.mxu0 0.0
      %3814 = vmatpush1.msra.mxu0 0.0
      %3815 = vmatprep.subr.mxu0 0.0
      %3816 = vmatpush1.msra.mxu0 0.0
      %3817 = vmatprep.subr.mxu0 0.0
      %3818 = vmatpush1.msra.mxu0 0.0
      %3819 = vmatprep.subr.mxu0 0.0
      %3820 = vmatpush1.msra.mxu0 0.0
      %3821 = vmatprep.subr.mxu0 0.0
      %3822 = vmatpush1.msra.mxu0 0.0
      %3823 = vmatprep.subr.mxu0 0.0
      %3824 = vmatpush1.msra.mxu0 0.0
      %3825 = vmatprep.subr.mxu0 0.0
      %3826 = vmatpush1.msra.mxu0 0.0
      %3827 = vmatprep.subr.mxu0 0.0
      %3828 = vmatpush1.msra.mxu0 0.0
      %3829 = vmatprep.subr.mxu0 0.0
      %3830 = vmatpush1.msra.mxu0 0.0
      %3831 = vmatprep.subr.mxu0 0.0
      %3832 = vmatpush1.msra.mxu0 0.0
      %3833 = vmatprep.subr.mxu0 0.0
      %3834 = vmatpush1.msra.mxu0 0.0
      %3835 = vmatprep.subr.mxu0 0.0
      %3836 = vmatpush1.msra.mxu0 0.0
      %3837 = vmatprep.subr.mxu0 0.0
      %3838 = vmatpush1.msra.mxu0 0.0
      %3839 = vmatprep.subr.mxu0 0.0
      %3840 = vmatpush1.msra.mxu0 0.0
      %3841 = vmatprep.subr.mxu0 0.0
      %3842 = vmatpush1.msra.mxu0 0.0
      %3843 = vmatprep.subr.mxu0 0.0
      %3844 = vmatpush1.msra.mxu0 0.0
      %3845 = vmatprep.subr.mxu0 0.0
      %3846 = vmatpush1.msra.mxu0 0.0
      %3847 = vmatprep.mubr.f32.mxu0 0.0
      %3848 = vmatmul.mubr.f32.gmra.mrb[0].mxu0 %v3757
      %v3849 = vpop.f32.mrb[0].mxu0
      %v3850 = vadd.f32 0.0, %v3849
      %v3851 = vpop.f32.mrb[0].mxu0
      %3852 = vmatprep.mubr.f32.mxu0 0.0
      %3853 = vmatmul.mubr.f32.gmra.mrb[0].mxu0 %v3760
      %v3854 = vpop.f32.mrb[0].mxu0
      %v3855 = vadd.f32 0.0, %v3854
      %v3856 = vpop.f32.mrb[0].mxu0
      %3857 = vmatprep.mubr.f32.mxu0 0.0
      %3858 = vmatmul.mubr.f32.gmra.mrb[0].mxu0 %v3763
      %v3859 = vpop.f32.mrb[0].mxu0
      %v3860 = vadd.f32 0.0, %v3859
      %v3861 = vpop.f32.mrb[0].mxu0
      %3862 = vmatprep.mubr.f32.mxu0 0.0
      %3863 = vmatmul.mubr.f32.gmra.mrb[0].mxu0 %v3766
      %v3864 = vpop.f32.mrb[0].mxu0
      %v3865 = vadd.f32 0.0, %v3864
      %v3866 = vpop.f32.mrb[0].mxu0
      %3867 = vmatprep.mubr.f32.mxu0 0.0
      %3868 = vmatmul.mubr.f32.gmra.mrb[0].mxu0 %v3769
      %v3869 = vpop.f32.mrb[0].mxu0
      %v3870 = vadd.f32 0.0, %v3869
      %v3871 = vpop.f32.mrb[0].mxu0
      %3872 = vmatprep.mubr.f32.mxu0 0.0
      %3873 = vmatmul.mubr.f32.gmra.mrb[0].mxu0 %v3772
      %v3874 = vpop.f32.mrb[0].mxu0
      %v3875 = vadd.f32 0.0, %v3874
      %v3876 = vpop.f32.mrb[0].mxu0
      %3877 = vmatprep.mubr.f32.mxu0 0.0
      %3878 = vmatmul.mubr.f32.gmra.mrb[0].mxu0 %v3775
      %v3879 = vpop.f32.mrb[0].mxu0
      %v3880 = vadd.f32 0.0, %v3879
      %v3881 = vpop.f32.mrb[0].mxu0
      %3882 = vmatprep.mubr.f32.mxu0 0.0
      %3883 = vmatmul.mubr.f32.gmra.mrb[0].mxu0 %v3778
      %v3884 = vpop.f32.mrb[0].mxu0
      %v3885 = vadd.f32 0.0, %v3884
      %v3886 = vpop.f32.mrb[0].mxu0
      %3887 = vmatprep.mubr.f32.mxu0 0.0
      %3888 = vmatmul.mubr.f32.gmra.mrb[0].mxu0 %v3781
      %v3889 = vpop.f32.mrb[0].mxu0
      %v3890 = vadd.f32 0.0, %v3889
      %v3891 = vpop.f32.mrb[0].mxu0
      %3892 = vdwg.mxu0
      %v3893 = vld [vmem:[%s1981] sm:$0xff]
      %v3894 = vld [vmem:[%s1981 + $0x8] sm:$0xff]
      %v3895 = vld [vmem:[%s1981 + $0x10] sm:$0xff]
      %v3896 = vld [vmem:[%s1981 + $0x18] sm:$0xff]
      %v3898 = vsel %vm784, %v3850, 0
      %v3901 = vsel %vm784, %v3855, 0
      %v3904 = vsel %vm784, %v3860, 0
      %v3907 = vsel %vm784, %v3865, 0
      %v3910 = vsel %vm784, %v3870, 0
      %v3913 = vsel %vm784, %v3875, 0
      %v3916 = vsel %vm784, %v3880, 0
      %v3919 = vsel %vm784, %v3885, 0
      %v3922 = vsel %vm784, %v3890, 0
      %3924 = vmatprep.subr.mxu0 0.0
      %3925 = vmatpush1.msra.mxu0 %v3893
      %3926 = vmatprep.subr.mxu0 0.0
      %3927 = vmatpush1.msra.mxu0 %v3894
      %3928 = vmatprep.subr.mxu0 0.0
      %3929 = vmatpush1.msra.mxu0 %v3895
      %3930 = vmatprep.subr.mxu0 0.0
      %3931 = vmatpush1.msra.mxu0 %v3896
      %3932 = vmatprep.subr.mxu0 0.0
      %3933 = vmatpush1.msra.mxu0 0.0
      %3934 = vmatprep.subr.mxu0 0.0
      %3935 = vmatpush1.msra.mxu0 0.0
      %3936 = vmatprep.subr.mxu0 0.0
      %3937 = vmatpush1.msra.mxu0 0.0
      %3938 = vmatprep.subr.mxu0 0.0
      %3939 = vmatpush1.msra.mxu0 0.0
      %3940 = vmatprep.subr.mxu0 0.0
      %3941 = vmatpush1.msra.mxu0 0.0
      %3942 = vmatprep.subr.mxu0 0.0
      %3943 = vmatpush1.msra.mxu0 0.0
      %3944 = vmatprep.subr.mxu0 0.0
      %3945 = vmatpush1.msra.mxu0 0.0
      %3946 = vmatprep.subr.mxu0 0.0
      %3947 = vmatpush1.msra.mxu0 0.0
      %3948 = vmatprep.subr.mxu0 0.0
      %3949 = vmatpush1.msra.mxu0 0.0
      %3950 = vmatprep.subr.mxu0 0.0
      %3951 = vmatpush1.msra.mxu0 0.0
      %3952 = vmatprep.subr.mxu0 0.0
      %3953 = vmatpush1.msra.mxu0 0.0
      %3954 = vmatprep.subr.mxu0 0.0
      %3955 = vmatpush1.msra.mxu0 0.0
      %3956 = vmatprep.subr.mxu0 0.0
      %3957 = vmatpush1.msra.mxu0 0.0
      %3958 = vmatprep.subr.mxu0 0.0
      %3959 = vmatpush1.msra.mxu0 0.0
      %3960 = vmatprep.subr.mxu0 0.0
      %3961 = vmatpush1.msra.mxu0 0.0
      %3962 = vmatprep.subr.mxu0 0.0
      %3963 = vmatpush1.msra.mxu0 0.0
      %3964 = vmatprep.subr.mxu0 0.0
      %3965 = vmatpush1.msra.mxu0 0.0
      %3966 = vmatprep.subr.mxu0 0.0
      %3967 = vmatpush1.msra.mxu0 0.0
      %3968 = vmatprep.subr.mxu0 0.0
      %3969 = vmatpush1.msra.mxu0 0.0
      %3970 = vmatprep.subr.mxu0 0.0
      %3971 = vmatpush1.msra.mxu0 0.0
      %3972 = vmatprep.subr.mxu0 0.0
      %3973 = vmatpush1.msra.mxu0 0.0
      %3974 = vmatprep.subr.mxu0 0.0
      %3975 = vmatpush1.msra.mxu0 0.0
      %3976 = vmatprep.subr.mxu0 0.0
      %3977 = vmatpush1.msra.mxu0 0.0
      %3978 = vmatprep.subr.mxu0 0.0
      %3979 = vmatpush1.msra.mxu0 0.0
      %3980 = vmatprep.subr.mxu0 0.0
      %3981 = vmatpush1.msra.mxu0 0.0
      %3982 = vmatprep.subr.mxu0 0.0
      %3983 = vmatpush1.msra.mxu0 0.0
      %3984 = vmatprep.subr.mxu0 0.0
      %3985 = vmatpush1.msra.mxu0 0.0
      %3986 = vmatprep.subr.mxu0 0.0
      %3987 = vmatpush1.msra.mxu0 0.0
      %3988 = vmatprep.mubr.f32.mxu0 0.0
      %3989 = vmatmul.mubr.f32.gmra.mrb[0].mxu0 %v3898
      %v3990 = vpop.f32.mrb[0].mxu0
      %v3991 = vadd.f32 0.0, %v3990
      %v3992 = vpop.f32.mrb[0].mxu0
      %3993 = vmatprep.mubr.f32.mxu0 0.0
      %3994 = vmatmul.mubr.f32.gmra.mrb[0].mxu0 %v3901
      %v3995 = vpop.f32.mrb[0].mxu0
      %v3996 = vadd.f32 0.0, %v3995
      %v3997 = vpop.f32.mrb[0].mxu0
      %3998 = vmatprep.mubr.f32.mxu0 0.0
      %3999 = vmatmul.mubr.f32.gmra.mrb[0].mxu0 %v3904
      %v4000 = vpop.f32.mrb[0].mxu0
      %v4001 = vadd.f32 0.0, %v4000
      %v4002 = vpop.f32.mrb[0].mxu0
      %4003 = vmatprep.mubr.f32.mxu0 0.0
      %4004 = vmatmul.mubr.f32.gmra.mrb[0].mxu0 %v3907
      %v4005 = vpop.f32.mrb[0].mxu0
      %v4006 = vadd.f32 0.0, %v4005
      %v4007 = vpop.f32.mrb[0].mxu0
      %4008 = vmatprep.mubr.f32.mxu0 0.0
      %4009 = vmatmul.mubr.f32.gmra.mrb[0].mxu0 %v3910
      %v4010 = vpop.f32.mrb[0].mxu0
      %v4011 = vadd.f32 0.0, %v4010
      %v4012 = vpop.f32.mrb[0].mxu0
      %4013 = vmatprep.mubr.f32.mxu0 0.0
      %4014 = vmatmul.mubr.f32.gmra.mrb[0].mxu0 %v3913
      %v4015 = vpop.f32.mrb[0].mxu0
      %v4016 = vadd.f32 0.0, %v4015
      %v4017 = vpop.f32.mrb[0].mxu0
      %4018 = vmatprep.mubr.f32.mxu0 0.0
      %4019 = vmatmul.mubr.f32.gmra.mrb[0].mxu0 %v3916
      %v4020 = vpop.f32.mrb[0].mxu0
      %v4021 = vadd.f32 0.0, %v4020
      %v4022 = vpop.f32.mrb[0].mxu0
      %4023 = vmatprep.mubr.f32.mxu0 0.0
      %4024 = vmatmul.mubr.f32.gmra.mrb[0].mxu0 %v3919
      %v4025 = vpop.f32.mrb[0].mxu0
      %v4026 = vadd.f32 0.0, %v4025
      %v4027 = vpop.f32.mrb[0].mxu0
      %4028 = vmatprep.mubr.f32.mxu0 0.0
      %4029 = vmatmul.mubr.f32.gmra.mrb[0].mxu0 %v3922
      %v4030 = vpop.f32.mrb[0].mxu0
      %v4031 = vadd.f32 0.0, %v4030
      %v4032 = vpop.f32.mrb[0].mxu0
      %4033 = vdwg.mxu0
      %v4035 = vsel %vm784, %v3062, 0
      %v4038 = vsel %vm784, %v3067, 0
      %v4041 = vsel %vm784, %v3072, 0
      %v4044 = vsel %vm784, %v3077, 0
      %v4047 = vsel %vm784, %v3082, 0
      %v4050 = vsel %vm784, %v3087, 0
      %v4053 = vsel %vm784, %v3092, 0
      %v4056 = vsel %vm784, %v3097, 0
      %v4059 = vsel %vm784, %v3102, 0
      %4061 = vmatprep.subr.mxu0 0.0
      %4062 = vmatpush1.msra.mxu0 %v3105
      %4063 = vmatprep.subr.mxu0 0.0
      %4064 = vmatpush1.msra.mxu0 %v3106
      %4065 = vmatprep.subr.mxu0 0.0
      %4066 = vmatpush1.msra.mxu0 %v3107
      %4067 = vmatprep.subr.mxu0 0.0
      %4068 = vmatpush1.msra.mxu0 %v3108
      %4069 = vmatprep.subr.mxu0 0.0
      %4070 = vmatpush1.msra.mxu0 0.0
      %4071 = vmatprep.subr.mxu0 0.0
      %4072 = vmatpush1.msra.mxu0 0.0
      %4073 = vmatprep.subr.mxu0 0.0
      %4074 = vmatpush1.msra.mxu0 0.0
      %4075 = vmatprep.subr.mxu0 0.0
      %4076 = vmatpush1.msra.mxu0 0.0
      %4077 = vmatprep.subr.mxu0 0.0
      %4078 = vmatpush1.msra.mxu0 0.0
      %4079 = vmatprep.subr.mxu0 0.0
      %4080 = vmatpush1.msra.mxu0 0.0
      %4081 = vmatprep.subr.mxu0 0.0
      %4082 = vmatpush1.msra.mxu0 0.0
      %4083 = vmatprep.subr.mxu0 0.0
      %4084 = vmatpush1.msra.mxu0 0.0
      %4085 = vmatprep.subr.mxu0 0.0
      %4086 = vmatpush1.msra.mxu0 0.0
      %4087 = vmatprep.subr.mxu0 0.0
      %4088 = vmatpush1.msra.mxu0 0.0
      %4089 = vmatprep.subr.mxu0 0.0
      %4090 = vmatpush1.msra.mxu0 0.0
      %4091 = vmatprep.subr.mxu0 0.0
      %4092 = vmatpush1.msra.mxu0 0.0
      %4093 = vmatprep.subr.mxu0 0.0
      %4094 = vmatpush1.msra.mxu0 0.0
      %4095 = vmatprep.subr.mxu0 0.0
      %4096 = vmatpush1.msra.mxu0 0.0
      %4097 = vmatprep.subr.mxu0 0.0
      %4098 = vmatpush1.msra.mxu0 0.0
      %4099 = vmatprep.subr.mxu0 0.0
      %4100 = vmatpush1.msra.mxu0 0.0
      %4101 = vmatprep.subr.mxu0 0.0
      %4102 = vmatpush1.msra.mxu0 0.0
      %4103 = vmatprep.subr.mxu0 0.0
      %4104 = vmatpush1.msra.mxu0 0.0
      %4105 = vmatprep.subr.mxu0 0.0
      %4106 = vmatpush1.msra.mxu0 0.0
      %4107 = vmatprep.subr.mxu0 0.0
      %4108 = vmatpush1.msra.mxu0 0.0
      %4109 = vmatprep.subr.mxu0 0.0
      %4110 = vmatpush1.msra.mxu0 0.0
      %4111 = vmatprep.subr.mxu0 0.0
      %4112 = vmatpush1.msra.mxu0 0.0
      %4113 = vmatprep.subr.mxu0 0.0
      %4114 = vmatpush1.msra.mxu0 0.0
      %4115 = vmatprep.subr.mxu0 0.0
      %4116 = vmatpush1.msra.mxu0 0.0
      %4117 = vmatprep.subr.mxu0 0.0
      %4118 = vmatpush1.msra.mxu0 0.0
      %4119 = vmatprep.subr.mxu0 0.0
      %4120 = vmatpush1.msra.mxu0 0.0
      %4121 = vmatprep.subr.mxu0 0.0
      %4122 = vmatpush1.msra.mxu0 0.0
      %4123 = vmatprep.subr.mxu0 0.0
      %4124 = vmatpush1.msra.mxu0 0.0
      %4125 = vmatprep.mubr.f32.mxu0 0.0
      %4126 = vmatmul.mubr.f32.gmra.mrb[0].mxu0 %v4035
      %v4127 = vpop.f32.mrb[0].mxu0
      %v4128 = vadd.f32 %v3991, %v4127
      %v4129 = vpop.f32.mrb[0].mxu0
      %4130 = vmatprep.mubr.f32.mxu0 0.0
      %4131 = vmatmul.mubr.f32.gmra.mrb[0].mxu0 %v4038
      %v4132 = vpop.f32.mrb[0].mxu0
      %v4133 = vadd.f32 %v3996, %v4132
      %v4134 = vpop.f32.mrb[0].mxu0
      %4135 = vmatprep.mubr.f32.mxu0 0.0
      %4136 = vmatmul.mubr.f32.gmra.mrb[0].mxu0 %v4041
      %v4137 = vpop.f32.mrb[0].mxu0
      %v4138 = vadd.f32 %v4001, %v4137
      %v4139 = vpop.f32.mrb[0].mxu0
      %4140 = vmatprep.mubr.f32.mxu0 0.0
      %4141 = vmatmul.mubr.f32.gmra.mrb[0].mxu0 %v4044
      %v4142 = vpop.f32.mrb[0].mxu0
      %v4143 = vadd.f32 %v4006, %v4142
      %v4144 = vpop.f32.mrb[0].mxu0
      %4145 = vmatprep.mubr.f32.mxu0 0.0
      %4146 = vmatmul.mubr.f32.gmra.mrb[0].mxu0 %v4047
      %v4147 = vpop.f32.mrb[0].mxu0
      %v4148 = vadd.f32 %v4011, %v4147
      %v4149 = vpop.f32.mrb[0].mxu0
      %4150 = vmatprep.mubr.f32.mxu0 0.0
      %4151 = vmatmul.mubr.f32.gmra.mrb[0].mxu0 %v4050
      %v4152 = vpop.f32.mrb[0].mxu0
      %v4153 = vadd.f32 %v4016, %v4152
      %v4154 = vpop.f32.mrb[0].mxu0
      %4155 = vmatprep.mubr.f32.mxu0 0.0
      %4156 = vmatmul.mubr.f32.gmra.mrb[0].mxu0 %v4053
      %v4157 = vpop.f32.mrb[0].mxu0
      %v4158 = vadd.f32 %v4021, %v4157
      %v4159 = vpop.f32.mrb[0].mxu0
      %4160 = vmatprep.mubr.f32.mxu0 0.0
      %4161 = vmatmul.mubr.f32.gmra.mrb[0].mxu0 %v4056
      %v4162 = vpop.f32.mrb[0].mxu0
      %v4163 = vadd.f32 %v4026, %v4162
      %v4164 = vpop.f32.mrb[0].mxu0
      %4165 = vmatprep.mubr.f32.mxu0 0.0
      %4166 = vmatmul.mubr.f32.gmra.mrb[0].mxu0 %v4059
      %v4167 = vpop.f32.mrb[0].mxu0
      %v4168 = vadd.f32 %v4031, %v4167
      %v4169 = vpop.f32.mrb[0].mxu0
      %4170 = vdwg.mxu0
      %v4171 = vld [vmem:[%s9] sm:$0x1]
      %v4173 = vlaneseq
      %v4174 = vshrl.u32 %v4173, 7
      %v4175 = vsub.s32 0, %v4174
      %v4176 = vrot.slane %v4171, %v4175
      %v4178 = vadd.f32 %v4128, %v4176
      %v4179 = vadd.f32 %v4133, %v4176
      %v4180 = vadd.f32 %v4138, %v4176
      %v4181 = vadd.f32 %v4143, %v4176
      %v4182 = vadd.f32 %v4148, %v4176
      %v4183 = vadd.f32 %v4153, %v4176
      %v4184 = vadd.f32 %v4158, %v4176
      %v4185 = vadd.f32 %v4163, %v4176
      %v4186 = vadd.f32 %v4168, %v4176
      %4187 = vst.msk [vmem:[%s361 + $0x48] sm:$0xff] %vm387, %v4178
      %4188 = vst.msk [vmem:[%s361 + $0x50] sm:$0xff] %vm387, %v4179
      %4189 = vst.msk [vmem:[%s361 + $0x58] sm:$0xff] %vm387, %v4180
      %4190 = vst.msk [vmem:[%s361 + $0x60] sm:$0xff] %vm387, %v4181
      %4191 = vst.msk [vmem:[%s361 + $0x68] sm:$0xff] %vm387, %v4182
      %4192 = vst.msk [vmem:[%s361 + $0x70] sm:$0xff] %vm387, %v4183
      %4193 = vst.msk [vmem:[%s361 + $0x78] sm:$0xff] %vm387, %v4184
      %4194 = vst.msk [vmem:[%s361 + $0x80] sm:$0xff] %vm387, %v4185
      %4195 = vst.msk [vmem:[%s361 + $0x88] sm:$0xff] %vm387, %v4186
      %s4196 = smul.u32 18, %s21
      %p4197 = scmp.lt.s32.totalorder %s4196, 35
      %s4198 = scalar_select %p4197, %s4196, 35
      %s4199 = smul.addr %s4198, 8
      %s4200 = scalar_lea.vmem %s10, %s4199
      // Predicated region
      $region61: #{tpu_custom_call.1} parent=59 // pred_check
        %p4201 = pneg %p254
      $region62: #{tpu_custom_call.1} parent=59 // pred_check_branch
        %4203 = sbr.rel (%p4201) target = $region64
      $region63: #{tpu_custom_call.1} parent=59 // pred_region
        %s4204 = smul.u32 18, %s21
      $region64: #{tpu_custom_call.1} parent=59 // pred_fallthru
        _
    $region60: #{tpu_custom_call.1} parent=5 // pred_fallthru
      _
    %p4205 = scmp.le.s32.totalorder 2, %s16
    // Predicated region
    $region65: #{tpu_custom_call.1} parent=5 // pred_check
      %p4206 = pneg %p4205
    $region66: #{tpu_custom_call.1} parent=5 // pred_check_branch
      %4208 = sbr.rel (%p4206) target = $region68
    $region67: #{tpu_custom_call.1} parent=5 // pred_region
      %s4209 = ssub.s32 %s16, 2
      // Predicated region
      $region69: #{tpu_custom_call.1} parent=67 // pred_check
        %p4210 = pneg %p260
      $region70: #{tpu_custom_call.1} parent=67 // pred_check_branch
        %4212 = sbr.rel (%p4210) target = $region72
      $region71: #{tpu_custom_call.1} parent=67 // pred_region
        %s4213 = smul.u32 18, %s22
        %p4214 = scmp.lt.s32.totalorder %s4213, 35
        %s4215 = scalar_select %p4214, %s4213, 35
        %s4216 = smul.addr %s4215, 8
        %s4217 = scalar_lea.vmem %s10, %s4216
      $region72: #{tpu_custom_call.1} parent=67 // pred_fallthru
        _
    $region68: #{tpu_custom_call.1} parent=5 // pred_fallthru
      _
  $region6: #{tpu_custom_call.1} parent=0 // loop_footer
    %s20 = sadd.s32 1, %s16
  $region7: #{tpu_custom_call.1} parent=0 // loop_footer_branch
    %15 = sbr.rel target = $region3
  $region8: #{tpu_custom_call.1} parent=0 // loop_exit
    _

</llo_original>
